<compile_context>
chip_gen: v6e
topology: v6e:2x2x1
jax: 0.10.0
libtpu: 0.0.40
codegen_flags: <defaults>
</compile_context>

<pallas_src>
import jax
import jax.numpy as jnp
from jax.experimental import pallas as pl
from jax.experimental.pallas import tpu as pltpu

LAYER_SIZES = [512, 256, 128, 64, 32, 16, 1]   # from BetPredictionModel.__init__
LANE = 128


def _round_up(n, m):
    return ((n + m - 1) // m) * m


def _mlp_kernel(x_ref,
                w1, b1, w2, b2, w3, b3, w4, b4, w5, b5, w6, b6, w7, b7,
                out_ref):
    """Whole forward pass: 6 MXU matmuls (bf16 in, f32 acc) with f32 bias+ReLU,
    then the final (padded) 128 -> 1 layer as a VPU multiply + lane reduction."""

    def lin_relu(h_bf16, w_ref, b_ref):
        y = jnp.dot(h_bf16, w_ref[...], preferred_element_type=jnp.float32)
        return jnp.maximum(y + b_ref[...], 0.0)           # bias + ReLU in f32

    h = x_ref[...].astype(jnp.bfloat16)
    h = lin_relu(h, w1, b1).astype(jnp.bfloat16)
    h = lin_relu(h, w2, b2).astype(jnp.bfloat16)
    h = lin_relu(h, w3, b3).astype(jnp.bfloat16)
    h = lin_relu(h, w4, b4).astype(jnp.bfloat16)
    h = lin_relu(h, w5, b5).astype(jnp.bfloat16)
    h = lin_relu(h, w6, b6)                               # keep f32 for VPU tail

    # Final layer: N=1 MXU matmul would waste an entire MXU pass -> VPU/XLU.
    y = jnp.sum(h * w7[...], axis=-1)                     # (batch_tile,)
    out_ref[...] = (y.reshape(1, -1) + b7[...]).astype(out_ref.dtype)


def init_params(input_size, key):
    """PyTorch nn.Linear-style init: U(-1/sqrt(fan_in), +1/sqrt(fan_in)).
    Returns raw f32 (W(in,out), b(1,out)) pairs."""
    params = []
    fan_in = input_size
    for out_dim in LAYER_SIZES:
        key, kw, kb = jax.random.split(key, 3)
        bound = 1.0 / float(fan_in) ** 0.5
        w = jax.random.uniform(kw, (fan_in, out_dim), jnp.float32, -bound, bound)
        b = jax.random.uniform(kb, (1, out_dim), jnp.float32, -bound, bound)
        params.append((w, b))
        fan_in = out_dim
    return params


def prepare_params(raw_params, input_size):
    """Kernel-ready params:
      * hidden outputs narrower than 128 are zero-padded to 128 lanes (exact,
        see header comment),
      * MXU-layer weights cast to bf16 once (biases stay f32),
      * final 16->1 layer stored as an f32 row vector (1, 128) for the VPU path.
    """
    prepared = []
    prev_out = input_size
    n = len(raw_params)
    for i, (w, b) in enumerate(raw_params):
        in_dim, out_dim = w.shape
        if prev_out > in_dim:                              # pad K to previous padded N
            w = jnp.pad(w, ((0, prev_out - in_dim), (0, 0)))
        if i < n - 1:
            out_pad = _round_up(out_dim, LANE)
            if out_pad > out_dim:
                w = jnp.pad(w, ((0, 0), (0, out_pad - out_dim)))
                b = jnp.pad(b, ((0, 0), (0, out_pad - out_dim)))
            prepared.append((w.astype(jnp.bfloat16), b.astype(jnp.float32)))
            prev_out = out_pad
        else:                                              # last layer -> f32 row vector
            prepared.append((w.T.astype(jnp.float32), b.astype(jnp.float32)))
    return prepared


def bet_prediction_forward(x, prepared, *, batch_tile=256):
    """x: (B, input_size) f32.  prepared: output of prepare_params().
    batch_tile: rows per grid step (multiple of 256 keeps v6e/v7x MXU passes
    full).  For v7x megacore, use B >= 2*batch_tile so the 'parallel' grid axis
    has >= 2 steps to shard across the two TensorCores."""
    B, F = x.shape
    b_pad = _round_up(B, batch_tile)
    if b_pad != B:
        x = jnp.pad(x, ((0, b_pad - B), (0, 0)))
    grid = (b_pad // batch_tile,)

    # x tiled along batch; every weight/bias is a full-array block resident in
    # VMEM for all grid steps (constant index_map -> fetched once).
    in_specs = [pl.BlockSpec((batch_tile, F), lambda i: (i, 0))]
    flat_params = []
    for (w, b) in prepared:
        in_specs.append(pl.BlockSpec(w.shape, lambda i: (0, 0)))
        in_specs.append(pl.BlockSpec(b.shape, lambda i: (0, 0)))
        flat_params.extend([w, b])

    # Lane-dense output slab: (1, B) so the store is an unmasked full-lane vst.
    out_specs = pl.BlockSpec((1, batch_tile), lambda i: (0, i))

    flops = 0
    bytes_accessed = x.size * x.dtype.itemsize + b_pad * 4
    for i, (w, b) in enumerate(prepared):
        bytes_accessed += w.size * w.dtype.itemsize + b.size * b.dtype.itemsize
        if i < len(prepared) - 1:
            flops += 2 * b_pad * w.shape[0] * w.shape[1]
        else:
            flops += 2 * b_pad * w.shape[1]

    out = pl.pallas_call(
        _mlp_kernel,
        grid=grid,
        in_specs=in_specs,
        out_specs=out_specs,
        out_shape=jax.ShapeDtypeStruct((1, b_pad), jnp.float32),
        compiler_params=pltpu.CompilerParams(
            dimension_semantics=("parallel",)),
        cost_estimate=pl.CostEstimate(
            flops=flops, transcendentals=0, bytes_accessed=bytes_accessed),
    )(x, *flat_params)

    return out[0, :B].reshape(B, 1)


def reference_forward(x, raw_params, *, mimic_kernel_precision=True):
    """Pure-JAX reference.  With mimic_kernel_precision=True it applies the same
    bf16-matmul / f32-bias+ReLU numerics as the kernel so tolerances stay tight."""
    h = x
    n = len(raw_params)
    for i, (w, b) in enumerate(raw_params):
        if i < n - 1:
            if mimic_kernel_precision:
                y = jnp.dot(h.astype(jnp.bfloat16), w.astype(jnp.bfloat16),
                            preferred_element_type=jnp.float32) + b
            else:
                y = h @ w + b
            h = jnp.maximum(y, 0.0)
        else:
            h = h @ w + b                                   # final layer stays f32
    return h


if __name__ == "__main__":
    key = jax.random.PRNGKey(0)
    k_x, k_p = jax.random.split(key)

    batch = 8
    input_size = 32
    x = jax.random.normal(k_x, (batch, input_size), jnp.float32)

    raw_params = init_params(input_size, k_p)
    prepared = prepare_params(raw_params, input_size)

    out = bet_prediction_forward(x, prepared, batch_tile=256)
    out = jax.block_until_ready(out)
    assert out.shape == (batch, 1)

    ref = reference_forward(x, raw_params, mimic_kernel_precision=True)
    assert jnp.allclose(out, ref, atol=2e-3, rtol=2e-3), "mismatch vs reference"

    print("KERNEL_OK")
</pallas_src>

<mosaic_0001>
module attributes {stable_mosaic.version = 11 : i64} {
  func.func @_mlp_kernel(%arg0: i32, %arg1: memref<256x32xf32, #tpu.memory_space<vmem>>, %arg2: memref<32x512xbf16, #tpu.memory_space<vmem>>, %arg3: memref<1x512xf32, #tpu.memory_space<vmem>>, %arg4: memref<512x256xbf16, #tpu.memory_space<vmem>>, %arg5: memref<1x256xf32, #tpu.memory_space<vmem>>, %arg6: memref<256x128xbf16, #tpu.memory_space<vmem>>, %arg7: memref<1x128xf32, #tpu.memory_space<vmem>>, %arg8: memref<128x128xbf16, #tpu.memory_space<vmem>>, %arg9: memref<1x128xf32, #tpu.memory_space<vmem>>, %arg10: memref<128x128xbf16, #tpu.memory_space<vmem>>, %arg11: memref<1x128xf32, #tpu.memory_space<vmem>>, %arg12: memref<128x128xbf16, #tpu.memory_space<vmem>>, %arg13: memref<1x128xf32, #tpu.memory_space<vmem>>, %arg14: memref<1x128xf32, #tpu.memory_space<vmem>>, %arg15: memref<1x1xf32, #tpu.memory_space<vmem>>, %arg16: memref<1x256xf32, #tpu.memory_space<vmem>>) attributes {dimension_semantics = [#tpu.dimension_semantics<parallel>], iteration_bounds = array<i64: 1>, scalar_prefetch = 0 : i64, scratch_operands = 0 : i64, tpu.core_type = #tpu.core_type<tc>, window_params = [{transform_indices = @transform_0, window_bounds = array<i64: 256, 32>}, {pipeline_mode = #tpu.pipeline_mode<synchronous>, transform_indices = @transform_1, window_bounds = array<i64: 32, 512>}, {pipeline_mode = #tpu.pipeline_mode<synchronous>, transform_indices = @transform_2, window_bounds = array<i64: 1, 512>}, {pipeline_mode = #tpu.pipeline_mode<synchronous>, transform_indices = @transform_3, window_bounds = array<i64: 512, 256>}, {pipeline_mode = #tpu.pipeline_mode<synchronous>, transform_indices = @transform_4, window_bounds = array<i64: 1, 256>}, {pipeline_mode = #tpu.pipeline_mode<synchronous>, transform_indices = @transform_5, window_bounds = array<i64: 256, 128>}, {pipeline_mode = #tpu.pipeline_mode<synchronous>, transform_indices = @transform_6, window_bounds = array<i64: 1, 128>}, {pipeline_mode = #tpu.pipeline_mode<synchronous>, transform_indices = @transform_7, window_bounds = array<i64: 128, 128>}, {pipeline_mode = #tpu.pipeline_mode<synchronous>, transform_indices = @transform_8, window_bounds = array<i64: 1, 128>}, {pipeline_mode = #tpu.pipeline_mode<synchronous>, transform_indices = @transform_9, window_bounds = array<i64: 128, 128>}, {pipeline_mode = #tpu.pipeline_mode<synchronous>, transform_indices = @transform_10, window_bounds = array<i64: 1, 128>}, {pipeline_mode = #tpu.pipeline_mode<synchronous>, transform_indices = @transform_11, window_bounds = array<i64: 128, 128>}, {pipeline_mode = #tpu.pipeline_mode<synchronous>, transform_indices = @transform_12, window_bounds = array<i64: 1, 128>}, {pipeline_mode = #tpu.pipeline_mode<synchronous>, transform_indices = @transform_13, window_bounds = array<i64: 1, 128>}, {pipeline_mode = #tpu.pipeline_mode<synchronous>, transform_indices = @transform_14, window_bounds = array<i64: 1, 1>}, {transform_indices = @transform_15, window_bounds = array<i64: 1, 256>}]} {
    %c0 = arith.constant 0 : index
    %c0_0 = arith.constant 0 : index
    %0 = vector.load %arg1[%c0, %c0_0] : memref<256x32xf32, #tpu.memory_space<vmem>>, vector<256x32xf32>
    %1 = arith.truncf %0 : vector<256x32xf32> to vector<256x32xbf16>
    %c0_1 = arith.constant 0 : index
    %c0_2 = arith.constant 0 : index
    %2 = vector.load %arg2[%c0_1, %c0_2] : memref<32x512xbf16, #tpu.memory_space<vmem>>, vector<32x512xbf16>
    %cst = arith.constant dense<0.000000e+00> : vector<256x512xf32>
    %3 = tpu.matmul %1, %2, %cst {dimension_numbers = #tpu.dot_dimension_numbers<[1], [0], [0], [1], [0, 0, 1, 1], [], []>} : vector<256x32xbf16>, vector<32x512xbf16>, vector<256x512xf32> -> vector<256x512xf32>
    %c0_3 = arith.constant 0 : index
    %c0_4 = arith.constant 0 : index
    %4 = vector.load %arg3[%c0_3, %c0_4] : memref<1x512xf32, #tpu.memory_space<vmem>>, vector<1x512xf32>
    %5 = vector.broadcast %4 : vector<1x512xf32> to vector<256x512xf32>
    %6 = arith.addf %3, %5 : vector<256x512xf32>
    %cst_5 = arith.constant 0.000000e+00 : f32
    %7 = vector.broadcast %cst_5 : f32 to vector<256x512xf32>
    %8 = arith.maximumf %6, %7 : vector<256x512xf32>
    %9 = arith.truncf %8 : vector<256x512xf32> to vector<256x512xbf16>
    %c0_6 = arith.constant 0 : index
    %c0_7 = arith.constant 0 : index
    %10 = vector.load %arg4[%c0_6, %c0_7] : memref<512x256xbf16, #tpu.memory_space<vmem>>, vector<512x256xbf16>
    %cst_8 = arith.constant dense<0.000000e+00> : vector<256x256xf32>
    %11 = tpu.matmul %9, %10, %cst_8 {dimension_numbers = #tpu.dot_dimension_numbers<[1], [0], [0], [1], [0, 0, 1, 1], [], []>} : vector<256x512xbf16>, vector<512x256xbf16>, vector<256x256xf32> -> vector<256x256xf32>
    %c0_9 = arith.constant 0 : index
    %c0_10 = arith.constant 0 : index
    %12 = vector.load %arg5[%c0_9, %c0_10] : memref<1x256xf32, #tpu.memory_space<vmem>>, vector<1x256xf32>
    %13 = vector.broadcast %12 : vector<1x256xf32> to vector<256x256xf32>
    %14 = arith.addf %11, %13 : vector<256x256xf32>
    %cst_11 = arith.constant 0.000000e+00 : f32
    %15 = vector.broadcast %cst_11 : f32 to vector<256x256xf32>
    %16 = arith.maximumf %14, %15 : vector<256x256xf32>
    %17 = arith.truncf %16 : vector<256x256xf32> to vector<256x256xbf16>
    %c0_12 = arith.constant 0 : index
    %c0_13 = arith.constant 0 : index
    %18 = vector.load %arg6[%c0_12, %c0_13] : memref<256x128xbf16, #tpu.memory_space<vmem>>, vector<256x128xbf16>
    %cst_14 = arith.constant dense<0.000000e+00> : vector<256x128xf32>
    %19 = tpu.matmul %17, %18, %cst_14 {dimension_numbers = #tpu.dot_dimension_numbers<[1], [0], [0], [1], [0, 0, 1, 1], [], []>} : vector<256x256xbf16>, vector<256x128xbf16>, vector<256x128xf32> -> vector<256x128xf32>
    %c0_15 = arith.constant 0 : index
    %c0_16 = arith.constant 0 : index
    %20 = vector.load %arg7[%c0_15, %c0_16] : memref<1x128xf32, #tpu.memory_space<vmem>>, vector<1x128xf32>
    %21 = vector.broadcast %20 : vector<1x128xf32> to vector<256x128xf32>
    %22 = arith.addf %19, %21 : vector<256x128xf32>
    %cst_17 = arith.constant 0.000000e+00 : f32
    %23 = vector.broadcast %cst_17 : f32 to vector<256x128xf32>
    %24 = arith.maximumf %22, %23 : vector<256x128xf32>
    %25 = arith.truncf %24 : vector<256x128xf32> to vector<256x128xbf16>
    %c0_18 = arith.constant 0 : index
    %c0_19 = arith.constant 0 : index
    %26 = vector.load %arg8[%c0_18, %c0_19] : memref<128x128xbf16, #tpu.memory_space<vmem>>, vector<128x128xbf16>
    %cst_20 = arith.constant dense<0.000000e+00> : vector<256x128xf32>
    %27 = tpu.matmul %25, %26, %cst_20 {dimension_numbers = #tpu.dot_dimension_numbers<[1], [0], [0], [1], [0, 0, 1, 1], [], []>} : vector<256x128xbf16>, vector<128x128xbf16>, vector<256x128xf32> -> vector<256x128xf32>
    %c0_21 = arith.constant 0 : index
    %c0_22 = arith.constant 0 : index
    %28 = vector.load %arg9[%c0_21, %c0_22] : memref<1x128xf32, #tpu.memory_space<vmem>>, vector<1x128xf32>
    %29 = vector.broadcast %28 : vector<1x128xf32> to vector<256x128xf32>
    %30 = arith.addf %27, %29 : vector<256x128xf32>
    %cst_23 = arith.constant 0.000000e+00 : f32
    %31 = vector.broadcast %cst_23 : f32 to vector<256x128xf32>
    %32 = arith.maximumf %30, %31 : vector<256x128xf32>
    %33 = arith.truncf %32 : vector<256x128xf32> to vector<256x128xbf16>
    %c0_24 = arith.constant 0 : index
    %c0_25 = arith.constant 0 : index
    %34 = vector.load %arg10[%c0_24, %c0_25] : memref<128x128xbf16, #tpu.memory_space<vmem>>, vector<128x128xbf16>
    %cst_26 = arith.constant dense<0.000000e+00> : vector<256x128xf32>
    %35 = tpu.matmul %33, %34, %cst_26 {dimension_numbers = #tpu.dot_dimension_numbers<[1], [0], [0], [1], [0, 0, 1, 1], [], []>} : vector<256x128xbf16>, vector<128x128xbf16>, vector<256x128xf32> -> vector<256x128xf32>
    %c0_27 = arith.constant 0 : index
    %c0_28 = arith.constant 0 : index
    %36 = vector.load %arg11[%c0_27, %c0_28] : memref<1x128xf32, #tpu.memory_space<vmem>>, vector<1x128xf32>
    %37 = vector.broadcast %36 : vector<1x128xf32> to vector<256x128xf32>
    %38 = arith.addf %35, %37 : vector<256x128xf32>
    %cst_29 = arith.constant 0.000000e+00 : f32
    %39 = vector.broadcast %cst_29 : f32 to vector<256x128xf32>
    %40 = arith.maximumf %38, %39 : vector<256x128xf32>
    %41 = arith.truncf %40 : vector<256x128xf32> to vector<256x128xbf16>
    %c0_30 = arith.constant 0 : index
    %c0_31 = arith.constant 0 : index
    %42 = vector.load %arg12[%c0_30, %c0_31] : memref<128x128xbf16, #tpu.memory_space<vmem>>, vector<128x128xbf16>
    %cst_32 = arith.constant dense<0.000000e+00> : vector<256x128xf32>
    %43 = tpu.matmul %41, %42, %cst_32 {dimension_numbers = #tpu.dot_dimension_numbers<[1], [0], [0], [1], [0, 0, 1, 1], [], []>} : vector<256x128xbf16>, vector<128x128xbf16>, vector<256x128xf32> -> vector<256x128xf32>
    %c0_33 = arith.constant 0 : index
    %c0_34 = arith.constant 0 : index
    %44 = vector.load %arg13[%c0_33, %c0_34] : memref<1x128xf32, #tpu.memory_space<vmem>>, vector<1x128xf32>
    %45 = vector.broadcast %44 : vector<1x128xf32> to vector<256x128xf32>
    %46 = arith.addf %43, %45 : vector<256x128xf32>
    %cst_35 = arith.constant 0.000000e+00 : f32
    %47 = vector.broadcast %cst_35 : f32 to vector<256x128xf32>
    %48 = arith.maximumf %46, %47 : vector<256x128xf32>
    %c0_36 = arith.constant 0 : index
    %c0_37 = arith.constant 0 : index
    %49 = vector.load %arg14[%c0_36, %c0_37] : memref<1x128xf32, #tpu.memory_space<vmem>>, vector<1x128xf32>
    %50 = vector.broadcast %49 : vector<1x128xf32> to vector<256x128xf32>
    %51 = arith.mulf %48, %50 : vector<256x128xf32>
    %cst_38 = arith.constant dense<0.000000e+00> : vector<256xf32>
    %52 = vector.multi_reduction <add>, %51, %cst_38 [1] : vector<256x128xf32> to vector<256xf32>
    %53 = vector.shape_cast %52 : vector<256xf32> to vector<1x256xf32>
    %c0_39 = arith.constant 0 : index
    %c0_40 = arith.constant 0 : index
    %54 = vector.load %arg15[%c0_39, %c0_40] : memref<1x1xf32, #tpu.memory_space<vmem>>, vector<1x1xf32>
    %55 = vector.broadcast %54 : vector<1x1xf32> to vector<1x256xf32>
    %56 = arith.addf %53, %55 : vector<1x256xf32>
    %c0_41 = arith.constant 0 : index
    %c0_42 = arith.constant 0 : index
    %57 = vector.load %arg16[%c0_41, %c0_42] : memref<1x256xf32, #tpu.memory_space<vmem>>, vector<1x256xf32>
    tpu.vector_store %arg16[%c0_41, %c0_42], %56 {strides = array<i32>} : memref<1x256xf32, #tpu.memory_space<vmem>>, vector<1x256xf32>,
    return
  }
  func.func @transform_0(%arg0: i32) -> (i32, i32) {
    %c0_i32 = arith.constant 0 : i32
    %c0_i32_0 = arith.constant 0 : i32
    return %arg0, %c0_i32 : i32, i32
  }
  func.func @transform_1(%arg0: i32) -> (i32, i32) {
    %c0_i32 = arith.constant 0 : i32
    %c0_i32_0 = arith.constant 0 : i32
    %c0_i32_1 = arith.constant 0 : i32
    return %c0_i32, %c0_i32_0 : i32, i32
  }
  func.func @transform_2(%arg0: i32) -> (i32, i32) {
    %c0_i32 = arith.constant 0 : i32
    %c0_i32_0 = arith.constant 0 : i32
    %c0_i32_1 = arith.constant 0 : i32
    return %c0_i32, %c0_i32_0 : i32, i32
  }
  func.func @transform_3(%arg0: i32) -> (i32, i32) {
    %c0_i32 = arith.constant 0 : i32
    %c0_i32_0 = arith.constant 0 : i32
    %c0_i32_1 = arith.constant 0 : i32
    return %c0_i32, %c0_i32_0 : i32, i32
  }
  func.func @transform_4(%arg0: i32) -> (i32, i32) {
    %c0_i32 = arith.constant 0 : i32
    %c0_i32_0 = arith.constant 0 : i32
    %c0_i32_1 = arith.constant 0 : i32
    return %c0_i32, %c0_i32_0 : i32, i32
  }
  func.func @transform_5(%arg0: i32) -> (i32, i32) {
    %c0_i32 = arith.constant 0 : i32
    %c0_i32_0 = arith.constant 0 : i32
    %c0_i32_1 = arith.constant 0 : i32
    return %c0_i32, %c0_i32_0 : i32, i32
  }
  func.func @transform_6(%arg0: i32) -> (i32, i32) {
    %c0_i32 = arith.constant 0 : i32
    %c0_i32_0 = arith.constant 0 : i32
    %c0_i32_1 = arith.constant 0 : i32
    return %c0_i32, %c0_i32_0 : i32, i32
  }
  func.func @transform_7(%arg0: i32) -> (i32, i32) {
    %c0_i32 = arith.constant 0 : i32
    %c0_i32_0 = arith.constant 0 : i32
    %c0_i32_1 = arith.constant 0 : i32
    return %c0_i32, %c0_i32_0 : i32, i32
  }
  func.func @transform_8(%arg0: i32) -> (i32, i32) {
    %c0_i32 = arith.constant 0 : i32
    %c0_i32_0 = arith.constant 0 : i32
    %c0_i32_1 = arith.constant 0 : i32
    return %c0_i32, %c0_i32_0 : i32, i32
  }
  func.func @transform_9(%arg0: i32) -> (i32, i32) {
    %c0_i32 = arith.constant 0 : i32
    %c0_i32_0 = arith.constant 0 : i32
    %c0_i32_1 = arith.constant 0 : i32
    return %c0_i32, %c0_i32_0 : i32, i32
  }
  func.func @transform_10(%arg0: i32) -> (i32, i32) {
    %c0_i32 = arith.constant 0 : i32
    %c0_i32_0 = arith.constant 0 : i32
    %c0_i32_1 = arith.constant 0 : i32
    return %c0_i32, %c0_i32_0 : i32, i32
  }
  func.func @transform_11(%arg0: i32) -> (i32, i32) {
    %c0_i32 = arith.constant 0 : i32
    %c0_i32_0 = arith.constant 0 : i32
    %c0_i32_1 = arith.constant 0 : i32
    return %c0_i32, %c0_i32_0 : i32, i32
  }
  func.func @transform_12(%arg0: i32) -> (i32, i32) {
    %c0_i32 = arith.constant 0 : i32
    %c0_i32_0 = arith.constant 0 : i32
    %c0_i32_1 = arith.constant 0 : i32
    return %c0_i32, %c0_i32_0 : i32, i32
  }
  func.func @transform_13(%arg0: i32) -> (i32, i32) {
    %c0_i32 = arith.constant 0 : i32
    %c0_i32_0 = arith.constant 0 : i32
    %c0_i32_1 = arith.constant 0 : i32
    return %c0_i32, %c0_i32_0 : i32, i32
  }
  func.func @transform_14(%arg0: i32) -> (i32, i32) {
    %c0_i32 = arith.constant 0 : i32
    %c0_i32_0 = arith.constant 0 : i32
    %c0_i32_1 = arith.constant 0 : i32
    return %c0_i32, %c0_i32_0 : i32, i32
  }
  func.func @transform_15(%arg0: i32) -> (i32, i32) {
    %c0_i32 = arith.constant 0 : i32
    %c0_i32_0 = arith.constant 0 : i32
    return %c0_i32, %arg0 : i32, i32
  }
}

</mosaic_0001>

<llo_original>
// kernel: tpu_custom_call.1
$region0: #{tpu_custom_call.1}
  #allocation0 [shape = 'u32[]', space=smem, size = 0x4, offset = 0x4, fixed_abs, tag = 'smem constant byte address 0x4 - core index']
  #allocation1 [shape = 'u32[144,128]{1,0:T(1,128)}', space=vmem, size = 0x12000, scoped, tag = 'internal scratch']
  #allocation2 [shape = 'f32[1,1]{1,0:T(1,128)S(1)}', space=vmem, size = 0x200, scoped, tag = 'scoped memory for tpu_custom_call.1']
  %s0 = inlined_call_operand.vmem [shape: f32[256,32], index: 0, kind: input, shape index: {}]
  %s1 = inlined_call_operand.vmem [shape: bf16[32,512], index: 1, kind: input, shape index: {}]
  %s2 = inlined_call_operand.hbm [shape: f32[1,512], index: 2, kind: input, shape index: {}]
  %s3 = inlined_call_operand.hbm [shape: bf16[512,256], index: 3, kind: input, shape index: {}]
  %s4 = inlined_call_operand.vmem [shape: f32[1,256], index: 4, kind: input, shape index: {}]
  %s5 = inlined_call_operand.vmem [shape: bf16[256,128], index: 5, kind: input, shape index: {}]
  %s6 = inlined_call_operand.vmem [shape: f32[1,128], index: 6, kind: input, shape index: {}]
  %s7 = inlined_call_operand.vmem [shape: bf16[128,128], index: 7, kind: input, shape index: {}]
  %s8 = inlined_call_operand.vmem [shape: f32[1,128], index: 8, kind: input, shape index: {}]
  %s9 = inlined_call_operand.vmem [shape: bf16[128,128], index: 9, kind: input, shape index: {}]
  %s10 = inlined_call_operand.vmem [shape: f32[1,128], index: 10, kind: input, shape index: {}]
  %s11 = inlined_call_operand.hbm [shape: bf16[128,128], index: 11, kind: input, shape index: {}]
  %s12 = inlined_call_operand.vmem [shape: f32[1,128], index: 12, kind: input, shape index: {}]
  %s13 = inlined_call_operand.vmem [shape: f32[1,128], index: 13, kind: input, shape index: {}]
  %s14 = inlined_call_operand.<no memory space> [shape: f32[1,1], index: 14, kind: input, shape index: {}]
  %s15 = inlined_call_operand.hbm [shape: f32[1,256], index: 15, kind: output, shape index: {}]
  %s16 = sld [smem:[#allocation0]]
  $region82: #{tpu_custom_call.1} parent=0
    _
  %s18 = ssub.s32 1, %s16
  %s19 = scalar_select 0, %s18, %s16
  %v20 = vstv %s14
  %21 = vst [vmem:[#allocation2] sm:$0x1] %v20
  $region1: #{tpu_custom_call.1} parent=0
    #allocation3 [shape = 'u8[2048]{0}', space=vmem, size = 0x800, scoped, tag = 'input window, operand 2, single buffered']
    #allocation4 [shape = 's32[1]{0}', space=sflag, size = 0x4, scoped, tag = 'scoped memory for tpu_custom_call.1']
    #allocation5 [shape = 's32[1]{0}', space=sflag, size = 0x4, scoped, tag = 'scoped memory for tpu_custom_call.1']
    #allocation6 [shape = 'u8[262144]{0}', space=vmem, size = 0x40000, scoped, tag = 'input window, operand 3, single buffered']
    #allocation7 [shape = 's32[1]{0}', space=sflag, size = 0x4, scoped, tag = 'scoped memory for tpu_custom_call.1']
    #allocation8 [shape = 'u8[32768]{0}', space=vmem, size = 0x8000, scoped, tag = 'input window, operand 11, single buffered']
    #allocation9 [shape = 'u8[1024]{0}', space=vmem, size = 0x400, scoped, tag = 'output window, operand 0, single buffered']
    %22 = vsyncpa [#allocation4], 0
    %23 = vsyncpa [#allocation7], 0
    %24 = vsyncpa [#allocation5], 0
    // Predicated region
    $region2: #{tpu_custom_call.1} parent=1 // pred_check
      _
    $region3: #{tpu_custom_call.1} parent=1 // pred_check_branch
      %26 = sbr.rel (0) target = $region5
    $region4: #{tpu_custom_call.1} parent=1 // pred_region
      _
    $region5: #{tpu_custom_call.1} parent=1 // pred_fallthru
      _
    // Predicated region
    $region6: #{tpu_custom_call.1} parent=1 // pred_check
      _
    $region7: #{tpu_custom_call.1} parent=1 // pred_check_branch
      %28 = sbr.rel (0) target = $region9
    $region8: #{tpu_custom_call.1} parent=1 // pred_region
      _
    $region9: #{tpu_custom_call.1} parent=1 // pred_fallthru
      _
    // Predicated region
    $region10: #{tpu_custom_call.1} parent=1 // pred_check
      _
    $region11: #{tpu_custom_call.1} parent=1 // pred_check_branch
      %30 = sbr.rel (0) target = $region13
    $region12: #{tpu_custom_call.1} parent=1 // pred_region
      %s32 = ssub.s32 64, 64
      %33 = vsyncadd [#allocation4], %s32
      %s35 = sshll.u32 [#allocation3], 4
      %s36 = int_to_ptr.vmem [resolvable:$true] %s35
      %38 = dma.hbm_to_vmem [thread:$0]  %s2, 64, %s36, [#allocation4]
    $region13: #{tpu_custom_call.1} parent=1 // pred_fallthru
      _
    // Predicated region
    $region14: #{tpu_custom_call.1} parent=1 // pred_check
      _
    $region15: #{tpu_custom_call.1} parent=1 // pred_check_branch
      %40 = sbr.rel (0) target = $region17
    $region16: #{tpu_custom_call.1} parent=1 // pred_region
      %s42 = ssub.s32 8192, 8192
      %43 = vsyncadd [#allocation7], %s42
      %s44 = sshll.u32 [#allocation6], 4
      %s45 = int_to_ptr.vmem [resolvable:$true] %s44
      %50 = dma.hbm_to_vmem [thread:$0]  %s3, 8192, %s45, [#allocation7], 128, 128, 8
    $region17: #{tpu_custom_call.1} parent=1 // pred_fallthru
      _
    // Predicated region
    $region18: #{tpu_custom_call.1} parent=1 // pred_check
      _
    $region19: #{tpu_custom_call.1} parent=1 // pred_check_branch
      %52 = sbr.rel (0) target = $region21
    $region20: #{tpu_custom_call.1} parent=1 // pred_region
      _
    $region21: #{tpu_custom_call.1} parent=1 // pred_fallthru
      _
    // Predicated region
    $region22: #{tpu_custom_call.1} parent=1 // pred_check
      _
    $region23: #{tpu_custom_call.1} parent=1 // pred_check_branch
      %54 = sbr.rel (0) target = $region25
    $region24: #{tpu_custom_call.1} parent=1 // pred_region
      _
    $region25: #{tpu_custom_call.1} parent=1 // pred_fallthru
      _
    // Predicated region
    $region26: #{tpu_custom_call.1} parent=1 // pred_check
      _
    $region27: #{tpu_custom_call.1} parent=1 // pred_check_branch
      %56 = sbr.rel (0) target = $region29
    $region28: #{tpu_custom_call.1} parent=1 // pred_region
      _
    $region29: #{tpu_custom_call.1} parent=1 // pred_fallthru
      _
    // Predicated region
    $region30: #{tpu_custom_call.1} parent=1 // pred_check
      _
    $region31: #{tpu_custom_call.1} parent=1 // pred_check_branch
      %58 = sbr.rel (0) target = $region33
    $region32: #{tpu_custom_call.1} parent=1 // pred_region
      _
    $region33: #{tpu_custom_call.1} parent=1 // pred_fallthru
      _
    // Predicated region
    $region34: #{tpu_custom_call.1} parent=1 // pred_check
      _
    $region35: #{tpu_custom_call.1} parent=1 // pred_check_branch
      %60 = sbr.rel (0) target = $region37
    $region36: #{tpu_custom_call.1} parent=1 // pred_region
      _
    $region37: #{tpu_custom_call.1} parent=1 // pred_fallthru
      _
    // Predicated region
    $region38: #{tpu_custom_call.1} parent=1 // pred_check
      _
    $region39: #{tpu_custom_call.1} parent=1 // pred_check_branch
      %62 = sbr.rel (0) target = $region41
    $region40: #{tpu_custom_call.1} parent=1 // pred_region
      _
    $region41: #{tpu_custom_call.1} parent=1 // pred_fallthru
      _
    // Predicated region
    $region42: #{tpu_custom_call.1} parent=1 // pred_check
      _
    $region43: #{tpu_custom_call.1} parent=1 // pred_check_branch
      %64 = sbr.rel (0) target = $region45
    $region44: #{tpu_custom_call.1} parent=1 // pred_region
      _
    $region45: #{tpu_custom_call.1} parent=1 // pred_fallthru
      _
    // Predicated region
    $region46: #{tpu_custom_call.1} parent=1 // pred_check
      _
    $region47: #{tpu_custom_call.1} parent=1 // pred_check_branch
      %66 = sbr.rel (0) target = $region49
    $region48: #{tpu_custom_call.1} parent=1 // pred_region
      %s68 = ssub.s32 1024, 1024
      %69 = vsyncadd [#allocation7], %s68
      %s70 = sshll.u32 [#allocation8], 4
      %s71 = int_to_ptr.vmem [resolvable:$true] %s70
      %76 = dma.hbm_to_vmem [thread:$0]  %s11, 1024, %s71, [#allocation7], 64, 64, 4
    $region49: #{tpu_custom_call.1} parent=1 // pred_fallthru
      _
    // Predicated region
    $region50: #{tpu_custom_call.1} parent=1 // pred_check
      _
    $region51: #{tpu_custom_call.1} parent=1 // pred_check_branch
      %78 = sbr.rel (0) target = $region53
    $region52: #{tpu_custom_call.1} parent=1 // pred_region
      _
    $region53: #{tpu_custom_call.1} parent=1 // pred_fallthru
      _
    // Predicated region
    $region54: #{tpu_custom_call.1} parent=1 // pred_check
      _
    $region55: #{tpu_custom_call.1} parent=1 // pred_check_branch
      %80 = sbr.rel (0) target = $region57
    $region56: #{tpu_custom_call.1} parent=1 // pred_region
      _
    $region57: #{tpu_custom_call.1} parent=1 // pred_fallthru
      _
    // Predicated region
    $region58: #{tpu_custom_call.1} parent=1 // pred_check
      _
    $region59: #{tpu_custom_call.1} parent=1 // pred_check_branch
      %82 = sbr.rel (0) target = $region61
    $region60: #{tpu_custom_call.1} parent=1 // pred_region
      _
    $region61: #{tpu_custom_call.1} parent=1 // pred_fallthru
      _
    // Predicated region
    $region62: #{tpu_custom_call.1} parent=1 // pred_check
      _
    $region63: #{tpu_custom_call.1} parent=1 // pred_check_branch
      %84 = sbr.rel (0) target = $region65
    $region64: #{tpu_custom_call.1} parent=1 // pred_region
      %85 = dma.done [#allocation4], 64
    $region65: #{tpu_custom_call.1} parent=1 // pred_fallthru
      _
    // Predicated region
    $region66: #{tpu_custom_call.1} parent=1 // pred_check
      _
    $region67: #{tpu_custom_call.1} parent=1 // pred_check_branch
      %87 = sbr.rel (0) target = $region69
    $region68: #{tpu_custom_call.1} parent=1 // pred_region
      %88 = dma.done [#allocation7], 8192
    $region69: #{tpu_custom_call.1} parent=1 // pred_fallthru
      _
    // Predicated region
    $region70: #{tpu_custom_call.1} parent=1 // pred_check
      _
    $region71: #{tpu_custom_call.1} parent=1 // pred_check_branch
      %90 = sbr.rel (0) target = $region73
    $region72: #{tpu_custom_call.1} parent=1 // pred_region
      %91 = dma.done [#allocation7], 1024
    $region73: #{tpu_custom_call.1} parent=1 // pred_fallthru
      _
    %v93 = vld [vmem:[%s0] sm:$0xff]
    %v94 = vld [vmem:[%s0 + $0x8] sm:$0xff]
    %v95 = vld [vmem:[%s0 + $0x10] sm:$0xff]
    %v96 = vld [vmem:[%s0 + $0x18] sm:$0xff]
    %v97 = vld [vmem:[%s0 + $0x20] sm:$0xff]
    %v98 = vld [vmem:[%s0 + $0x28] sm:$0xff]
    %v99 = vld [vmem:[%s0 + $0x30] sm:$0xff]
    %v100 = vld [vmem:[%s0 + $0x38] sm:$0xff]
    %v101 = vld [vmem:[%s0 + $0x40] sm:$0xff]
    %v102 = vld [vmem:[%s0 + $0x48] sm:$0xff]
    %v103 = vld [vmem:[%s0 + $0x50] sm:$0xff]
    %v104 = vld [vmem:[%s0 + $0x58] sm:$0xff]
    %v105 = vld [vmem:[%s0 + $0x60] sm:$0xff]
    %v106 = vld [vmem:[%s0 + $0x68] sm:$0xff]
    %v107 = vld [vmem:[%s0 + $0x70] sm:$0xff]
    %v108 = vld [vmem:[%s0 + $0x78] sm:$0xff]
    %v109 = vld [vmem:[%s0 + $0x80] sm:$0xff]
    %v110 = vld [vmem:[%s0 + $0x88] sm:$0xff]
    %v111 = vld [vmem:[%s0 + $0x90] sm:$0xff]
    %v112 = vld [vmem:[%s0 + $0x98] sm:$0xff]
    %v113 = vld [vmem:[%s0 + $0xa0] sm:$0xff]
    %v114 = vld [vmem:[%s0 + $0xa8] sm:$0xff]
    %v115 = vld [vmem:[%s0 + $0xb0] sm:$0xff]
    %v116 = vld [vmem:[%s0 + $0xb8] sm:$0xff]
    %v117 = vld [vmem:[%s0 + $0xc0] sm:$0xff]
    %v118 = vld [vmem:[%s0 + $0xc8] sm:$0xff]
    %v119 = vld [vmem:[%s0 + $0xd0] sm:$0xff]
    %v120 = vld [vmem:[%s0 + $0xd8] sm:$0xff]
    %v121 = vld [vmem:[%s0 + $0xe0] sm:$0xff]
    %v122 = vld [vmem:[%s0 + $0xe8] sm:$0xff]
    %v123 = vld [vmem:[%s0 + $0xf0] sm:$0xff]
    %v124 = vld [vmem:[%s0 + $0xf8] sm:$0xff]
    %v125 = vpack.c.bf16 %v94, %v93
    %v126 = vpack.c.bf16 %v96, %v95
    %v127 = vpack.c.bf16 %v98, %v97
    %v128 = vpack.c.bf16 %v100, %v99
    %v129 = vpack.c.bf16 %v102, %v101
    %v130 = vpack.c.bf16 %v104, %v103
    %v131 = vpack.c.bf16 %v106, %v105
    %v132 = vpack.c.bf16 %v108, %v107
    %v133 = vpack.c.bf16 %v110, %v109
    %v134 = vpack.c.bf16 %v112, %v111
    %v135 = vpack.c.bf16 %v114, %v113
    %v136 = vpack.c.bf16 %v116, %v115
    %v137 = vpack.c.bf16 %v118, %v117
    %v138 = vpack.c.bf16 %v120, %v119
    %v139 = vpack.c.bf16 %v122, %v121
    %v140 = vpack.c.bf16 %v124, %v123
    %v141 = vld [vmem:[%s1] sm:$0xff]
    %v142 = vld [vmem:[%s1 + $0x8] sm:$0xff]
    %v143 = vld [vmem:[%s1 + $0x10] sm:$0xff]
    %v144 = vld [vmem:[%s1 + $0x18] sm:$0xff]
    %v145 = vld [vmem:[%s1 + $0x20] sm:$0xff]
    %v146 = vld [vmem:[%s1 + $0x28] sm:$0xff]
    %v147 = vld [vmem:[%s1 + $0x30] sm:$0xff]
    %v148 = vld [vmem:[%s1 + $0x38] sm:$0xff]
    %v149 = vld [vmem:[#allocation3] sm:$0xf]
    %v151 = vlaneseq
    %v152 = vshrl.u32 %v151, 7
    %v153 = vsub.s32 0, %v152
    %v154 = vrot.slane %v149, %v153
    %v155 = vlaneseq
    %v156 = vshrl.u32 %v155, 7
    %v157 = vsub.s32 1, %v156
    %v158 = vrot.slane %v149, %v157
    %v159 = vlaneseq
    %v160 = vshrl.u32 %v159, 7
    %v161 = vsub.s32 2, %v160
    %v162 = vrot.slane %v149, %v161
    %v163 = vlaneseq
    %v164 = vshrl.u32 %v163, 7
    %v165 = vsub.s32 3, %v164
    %v166 = vrot.slane %v149, %v165
    %v179 = vunpack.c.l.b16 %v141
    %v180 = vunpack.c.h.b16 %v141
    %v181 = vunpack.c.l.b16 %v142
    %v182 = vunpack.c.h.b16 %v142
    %v183 = vunpack.c.l.b16 %v143
    %v184 = vunpack.c.h.b16 %v143
    %v185 = vunpack.c.l.b16 %v144
    %v186 = vunpack.c.h.b16 %v144
    %v187 = vunpack.c.l.b16 %v145
    %v188 = vunpack.c.h.b16 %v145
    %v189 = vunpack.c.l.b16 %v146
    %v190 = vunpack.c.h.b16 %v146
    %v191 = vunpack.c.l.b16 %v147
    %v192 = vunpack.c.h.b16 %v147
    %v193 = vunpack.c.l.b16 %v148
    %v194 = vunpack.c.h.b16 %v148
    %v195 = vpack.c.b16 %v183, %v179
    %v196 = vpack.c.b16 %v184, %v180
    %v197 = vpack.c.b16 %v185, %v181
    %v198 = vpack.c.b16 %v186, %v182
    %v199 = vpack.c.b16 %v191, %v187
    %v200 = vpack.c.b16 %v192, %v188
    %v201 = vpack.c.b16 %v193, %v189
    %v202 = vpack.c.b16 %v194, %v190
    %vm211 = vcmask 261120
    %v213 = vsel %vm211, %v125, 0
    %v216 = vsel %vm211, %v126, 0
    %v219 = vsel %vm211, %v127, 0
    %v222 = vsel %vm211, %v128, 0
    %v225 = vsel %vm211, %v129, 0
    %v228 = vsel %vm211, %v130, 0
    %v231 = vsel %vm211, %v131, 0
    %v234 = vsel %vm211, %v132, 0
    %v237 = vsel %vm211, %v133, 0
    %v240 = vsel %vm211, %v134, 0
    %v243 = vsel %vm211, %v135, 0
    %v246 = vsel %vm211, %v136, 0
    %v249 = vsel %vm211, %v137, 0
    %v252 = vsel %vm211, %v138, 0
    %v255 = vsel %vm211, %v139, 0
    %v258 = vsel %vm211, %v140, 0
    %260 = vmatprep.subr.bf16.mxu0 0
    %261 = vmatpush1.bf16.msra.mxu0 0
    %262 = vmatprep.subr.bf16.mxu0 0
    %263 = vmatpush1.bf16.msra.mxu0 0
    %264 = vmatprep.subr.bf16.mxu0 0
    %265 = vmatpush1.bf16.msra.mxu0 0
    %266 = vmatprep.subr.bf16.mxu0 0
    %267 = vmatpush1.bf16.msra.mxu0 0
    %268 = vmatprep.subr.bf16.mxu0 0
    %269 = vmatpush1.bf16.msra.mxu0 0
    %270 = vmatprep.subr.bf16.mxu0 0
    %271 = vmatpush1.bf16.msra.mxu0 0
    %272 = vmatprep.subr.bf16.mxu0 %v200
    %273 = vmatpush1.bf16.msra.mxu0 %v199
    %274 = vmatprep.subr.bf16.mxu0 %v196
    %275 = vmatpush1.bf16.msra.mxu0 %v195
    %276 = vmatprep.subr.bf16.mxu0 0
    %277 = vmatpush2.bf16.msra.mxu0 0
    %278 = vmatprep.subr.bf16.mxu0 0
    %279 = vmatpush2.bf16.msra.mxu0 0
    %280 = vmatprep.subr.bf16.mxu0 0
    %281 = vmatpush2.bf16.msra.mxu0 0
    %282 = vmatprep.subr.bf16.mxu0 0
    %283 = vmatpush2.bf16.msra.mxu0 0
    %284 = vmatprep.subr.bf16.mxu0 0
    %285 = vmatpush2.bf16.msra.mxu0 0
    %286 = vmatprep.subr.bf16.mxu0 0
    %287 = vmatpush2.bf16.msra.mxu0 0
    %288 = vmatprep.subr.bf16.mxu0 0
    %289 = vmatpush2.bf16.msra.mxu0 0
    %290 = vmatprep.subr.bf16.mxu0 0
    %291 = vmatpush2.bf16.msra.mxu0 0
    %292 = vmatprep.mubr.bf16.mxu0 0
    %293 = vmatmul.mubr.bf16.gmra.mxu0 %v213
    %v294 = vpop.f32.mrf.mxu0
    %v295 = vadd.f32 %v154, %v294
    %v296 = vpop.f32.mrf.mxu0
    %v297 = vadd.f32 %v158, %v296
    %v298 = vpop.f32.mrf.mxu0
    %v299 = vadd.f32 %v154, %v298
    %v300 = vpop.f32.mrf.mxu0
    %v301 = vadd.f32 %v158, %v300
    %302 = vmatprep.mubr.bf16.mxu0 0
    %303 = vmatmul.mubr.bf16.gmra.mxu0 %v216
    %v304 = vpop.f32.mrf.mxu0
    %v305 = vadd.f32 %v154, %v304
    %v306 = vpop.f32.mrf.mxu0
    %v307 = vadd.f32 %v158, %v306
    %v308 = vpop.f32.mrf.mxu0
    %v309 = vadd.f32 %v154, %v308
    %v310 = vpop.f32.mrf.mxu0
    %v311 = vadd.f32 %v158, %v310
    %312 = vmatprep.mubr.bf16.mxu0 0
    %313 = vmatmul.mubr.bf16.gmra.mxu0 %v219
    %v314 = vpop.f32.mrf.mxu0
    %v315 = vadd.f32 %v154, %v314
    %v316 = vpop.f32.mrf.mxu0
    %v317 = vadd.f32 %v158, %v316
    %v318 = vpop.f32.mrf.mxu0
    %v319 = vadd.f32 %v154, %v318
    %v320 = vpop.f32.mrf.mxu0
    %v321 = vadd.f32 %v158, %v320
    %322 = vmatprep.mubr.bf16.mxu0 0
    %323 = vmatmul.mubr.bf16.gmra.mxu0 %v222
    %v324 = vpop.f32.mrf.mxu0
    %v325 = vadd.f32 %v154, %v324
    %v326 = vpop.f32.mrf.mxu0
    %v327 = vadd.f32 %v158, %v326
    %v328 = vpop.f32.mrf.mxu0
    %v329 = vadd.f32 %v154, %v328
    %v330 = vpop.f32.mrf.mxu0
    %v331 = vadd.f32 %v158, %v330
    %332 = vmatprep.mubr.bf16.mxu0 0
    %333 = vmatmul.mubr.bf16.gmra.mxu0 %v225
    %v334 = vpop.f32.mrf.mxu0
    %v335 = vadd.f32 %v154, %v334
    %v336 = vpop.f32.mrf.mxu0
    %v337 = vadd.f32 %v158, %v336
    %v338 = vpop.f32.mrf.mxu0
    %v339 = vadd.f32 %v154, %v338
    %v340 = vpop.f32.mrf.mxu0
    %v341 = vadd.f32 %v158, %v340
    %342 = vmatprep.mubr.bf16.mxu0 0
    %343 = vmatmul.mubr.bf16.gmra.mxu0 %v228
    %v344 = vpop.f32.mrf.mxu0
    %v345 = vadd.f32 %v154, %v344
    %v346 = vpop.f32.mrf.mxu0
    %v347 = vadd.f32 %v158, %v346
    %v348 = vpop.f32.mrf.mxu0
    %v349 = vadd.f32 %v154, %v348
    %v350 = vpop.f32.mrf.mxu0
    %v351 = vadd.f32 %v158, %v350
    %352 = vmatprep.mubr.bf16.mxu0 0
    %353 = vmatmul.mubr.bf16.gmra.mxu0 %v231
    %v354 = vpop.f32.mrf.mxu0
    %v355 = vadd.f32 %v154, %v354
    %v356 = vpop.f32.mrf.mxu0
    %v357 = vadd.f32 %v158, %v356
    %v358 = vpop.f32.mrf.mxu0
    %v359 = vadd.f32 %v154, %v358
    %v360 = vpop.f32.mrf.mxu0
    %v361 = vadd.f32 %v158, %v360
    %362 = vmatprep.mubr.bf16.mxu0 0
    %363 = vmatmul.mubr.bf16.gmra.mxu0 %v234
    %v364 = vpop.f32.mrf.mxu0
    %v365 = vadd.f32 %v154, %v364
    %v366 = vpop.f32.mrf.mxu0
    %v367 = vadd.f32 %v158, %v366
    %v368 = vpop.f32.mrf.mxu0
    %v369 = vadd.f32 %v154, %v368
    %v370 = vpop.f32.mrf.mxu0
    %v371 = vadd.f32 %v158, %v370
    %372 = vmatprep.mubr.bf16.mxu0 0
    %373 = vmatmul.mubr.bf16.gmra.mxu0 %v237
    %v374 = vpop.f32.mrf.mxu0
    %v375 = vadd.f32 %v154, %v374
    %v376 = vpop.f32.mrf.mxu0
    %v377 = vadd.f32 %v158, %v376
    %v378 = vpop.f32.mrf.mxu0
    %v379 = vadd.f32 %v154, %v378
    %v380 = vpop.f32.mrf.mxu0
    %v381 = vadd.f32 %v158, %v380
    %382 = vmatprep.mubr.bf16.mxu0 0
    %383 = vmatmul.mubr.bf16.gmra.mxu0 %v240
    %v384 = vpop.f32.mrf.mxu0
    %v385 = vadd.f32 %v154, %v384
    %v386 = vpop.f32.mrf.mxu0
    %v387 = vadd.f32 %v158, %v386
    %v388 = vpop.f32.mrf.mxu0
    %v389 = vadd.f32 %v154, %v388
    %v390 = vpop.f32.mrf.mxu0
    %v391 = vadd.f32 %v158, %v390
    %392 = vmatprep.mubr.bf16.mxu0 0
    %393 = vmatmul.mubr.bf16.gmra.mxu0 %v243
    %v394 = vpop.f32.mrf.mxu0
    %v395 = vadd.f32 %v154, %v394
    %v396 = vpop.f32.mrf.mxu0
    %v397 = vadd.f32 %v158, %v396
    %v398 = vpop.f32.mrf.mxu0
    %v399 = vadd.f32 %v154, %v398
    %v400 = vpop.f32.mrf.mxu0
    %v401 = vadd.f32 %v158, %v400
    %402 = vmatprep.mubr.bf16.mxu0 0
    %403 = vmatmul.mubr.bf16.gmra.mxu0 %v246
    %v404 = vpop.f32.mrf.mxu0
    %v405 = vadd.f32 %v154, %v404
    %v406 = vpop.f32.mrf.mxu0
    %v407 = vadd.f32 %v158, %v406
    %v408 = vpop.f32.mrf.mxu0
    %v409 = vadd.f32 %v154, %v408
    %v410 = vpop.f32.mrf.mxu0
    %v411 = vadd.f32 %v158, %v410
    %412 = vmatprep.mubr.bf16.mxu0 0
    %413 = vmatmul.mubr.bf16.gmra.mxu0 %v249
    %v414 = vpop.f32.mrf.mxu0
    %v415 = vadd.f32 %v154, %v414
    %v416 = vpop.f32.mrf.mxu0
    %v417 = vadd.f32 %v158, %v416
    %v418 = vpop.f32.mrf.mxu0
    %v419 = vadd.f32 %v154, %v418
    %v420 = vpop.f32.mrf.mxu0
    %v421 = vadd.f32 %v158, %v420
    %422 = vmatprep.mubr.bf16.mxu0 0
    %423 = vmatmul.mubr.bf16.gmra.mxu0 %v252
    %v424 = vpop.f32.mrf.mxu0
    %v425 = vadd.f32 %v154, %v424
    %v426 = vpop.f32.mrf.mxu0
    %v427 = vadd.f32 %v158, %v426
    %v428 = vpop.f32.mrf.mxu0
    %v429 = vadd.f32 %v154, %v428
    %v430 = vpop.f32.mrf.mxu0
    %v431 = vadd.f32 %v158, %v430
    %432 = vmatprep.mubr.bf16.mxu0 0
    %433 = vmatmul.mubr.bf16.gmra.mxu0 %v255
    %v434 = vpop.f32.mrf.mxu0
    %v435 = vadd.f32 %v154, %v434
    %v436 = vpop.f32.mrf.mxu0
    %v437 = vadd.f32 %v158, %v436
    %v438 = vpop.f32.mrf.mxu0
    %v439 = vadd.f32 %v154, %v438
    %v440 = vpop.f32.mrf.mxu0
    %v441 = vadd.f32 %v158, %v440
    %442 = vmatprep.mubr.bf16.mxu0 0
    %443 = vmatmul.mubr.bf16.gmra.mxu0 %v258
    %v444 = vpop.f32.mrf.mxu0
    %v445 = vadd.f32 %v154, %v444
    %v446 = vpop.f32.mrf.mxu0
    %v447 = vadd.f32 %v158, %v446
    %v448 = vpop.f32.mrf.mxu0
    %v449 = vadd.f32 %v154, %v448
    %v450 = vpop.f32.mrf.mxu0
    %v451 = vadd.f32 %v158, %v450
    %452 = vdwg.mxu0
    %453 = vmatprep.subr.bf16.mxu0 0
    %454 = vmatpush1.bf16.msra.mxu0 0
    %455 = vmatprep.subr.bf16.mxu0 0
    %456 = vmatpush1.bf16.msra.mxu0 0
    %457 = vmatprep.subr.bf16.mxu0 0
    %458 = vmatpush1.bf16.msra.mxu0 0
    %459 = vmatprep.subr.bf16.mxu0 0
    %460 = vmatpush1.bf16.msra.mxu0 0
    %461 = vmatprep.subr.bf16.mxu0 0
    %462 = vmatpush1.bf16.msra.mxu0 0
    %463 = vmatprep.subr.bf16.mxu0 0
    %464 = vmatpush1.bf16.msra.mxu0 0
    %465 = vmatprep.subr.bf16.mxu0 %v202
    %466 = vmatpush1.bf16.msra.mxu0 %v201
    %467 = vmatprep.subr.bf16.mxu0 %v198
    %468 = vmatpush1.bf16.msra.mxu0 %v197
    %469 = vmatprep.subr.bf16.mxu0 0
    %470 = vmatpush2.bf16.msra.mxu0 0
    %471 = vmatprep.subr.bf16.mxu0 0
    %472 = vmatpush2.bf16.msra.mxu0 0
    %473 = vmatprep.subr.bf16.mxu0 0
    %474 = vmatpush2.bf16.msra.mxu0 0
    %475 = vmatprep.subr.bf16.mxu0 0
    %476 = vmatpush2.bf16.msra.mxu0 0
    %477 = vmatprep.subr.bf16.mxu0 0
    %478 = vmatpush2.bf16.msra.mxu0 0
    %479 = vmatprep.subr.bf16.mxu0 0
    %480 = vmatpush2.bf16.msra.mxu0 0
    %481 = vmatprep.subr.bf16.mxu0 0
    %482 = vmatpush2.bf16.msra.mxu0 0
    %483 = vmatprep.subr.bf16.mxu0 0
    %484 = vmatpush2.bf16.msra.mxu0 0
    %485 = vmatprep.mubr.bf16.mxu0 0
    %486 = vmatmul.mubr.bf16.gmra.mxu0 %v213
    %v487 = vpop.f32.mrf.mxu0
    %v488 = vadd.f32 %v162, %v487
    %v489 = vpop.f32.mrf.mxu0
    %v490 = vadd.f32 %v166, %v489
    %v491 = vpop.f32.mrf.mxu0
    %v492 = vadd.f32 %v162, %v491
    %v493 = vpop.f32.mrf.mxu0
    %v494 = vadd.f32 %v166, %v493
    %495 = vmatprep.mubr.bf16.mxu0 0
    %496 = vmatmul.mubr.bf16.gmra.mxu0 %v216
    %v497 = vpop.f32.mrf.mxu0
    %v498 = vadd.f32 %v162, %v497
    %v499 = vpop.f32.mrf.mxu0
    %v500 = vadd.f32 %v166, %v499
    %v501 = vpop.f32.mrf.mxu0
    %v502 = vadd.f32 %v162, %v501
    %v503 = vpop.f32.mrf.mxu0
    %v504 = vadd.f32 %v166, %v503
    %505 = vmatprep.mubr.bf16.mxu0 0
    %506 = vmatmul.mubr.bf16.gmra.mxu0 %v219
    %v507 = vpop.f32.mrf.mxu0
    %v508 = vadd.f32 %v162, %v507
    %v509 = vpop.f32.mrf.mxu0
    %v510 = vadd.f32 %v166, %v509
    %v511 = vpop.f32.mrf.mxu0
    %v512 = vadd.f32 %v162, %v511
    %v513 = vpop.f32.mrf.mxu0
    %v514 = vadd.f32 %v166, %v513
    %515 = vmatprep.mubr.bf16.mxu0 0
    %516 = vmatmul.mubr.bf16.gmra.mxu0 %v222
    %v517 = vpop.f32.mrf.mxu0
    %v518 = vadd.f32 %v162, %v517
    %v519 = vpop.f32.mrf.mxu0
    %v520 = vadd.f32 %v166, %v519
    %v521 = vpop.f32.mrf.mxu0
    %v522 = vadd.f32 %v162, %v521
    %v523 = vpop.f32.mrf.mxu0
    %v524 = vadd.f32 %v166, %v523
    %525 = vmatprep.mubr.bf16.mxu0 0
    %526 = vmatmul.mubr.bf16.gmra.mxu0 %v225
    %v527 = vpop.f32.mrf.mxu0
    %v528 = vadd.f32 %v162, %v527
    %v529 = vpop.f32.mrf.mxu0
    %v530 = vadd.f32 %v166, %v529
    %v531 = vpop.f32.mrf.mxu0
    %v532 = vadd.f32 %v162, %v531
    %v533 = vpop.f32.mrf.mxu0
    %v534 = vadd.f32 %v166, %v533
    %535 = vmatprep.mubr.bf16.mxu0 0
    %536 = vmatmul.mubr.bf16.gmra.mxu0 %v228
    %v537 = vpop.f32.mrf.mxu0
    %v538 = vadd.f32 %v162, %v537
    %v539 = vpop.f32.mrf.mxu0
    %v540 = vadd.f32 %v166, %v539
    %v541 = vpop.f32.mrf.mxu0
    %v542 = vadd.f32 %v162, %v541
    %v543 = vpop.f32.mrf.mxu0
    %v544 = vadd.f32 %v166, %v543
    %545 = vmatprep.mubr.bf16.mxu0 0
    %546 = vmatmul.mubr.bf16.gmra.mxu0 %v231
    %v547 = vpop.f32.mrf.mxu0
    %v548 = vadd.f32 %v162, %v547
    %v549 = vpop.f32.mrf.mxu0
    %v550 = vadd.f32 %v166, %v549
    %v551 = vpop.f32.mrf.mxu0
    %v552 = vadd.f32 %v162, %v551
    %v553 = vpop.f32.mrf.mxu0
    %v554 = vadd.f32 %v166, %v553
    %555 = vmatprep.mubr.bf16.mxu0 0
    %556 = vmatmul.mubr.bf16.gmra.mxu0 %v234
    %v557 = vpop.f32.mrf.mxu0
    %v558 = vadd.f32 %v162, %v557
    %v559 = vpop.f32.mrf.mxu0
    %v560 = vadd.f32 %v166, %v559
    %v561 = vpop.f32.mrf.mxu0
    %v562 = vadd.f32 %v162, %v561
    %v563 = vpop.f32.mrf.mxu0
    %v564 = vadd.f32 %v166, %v563
    %565 = vmatprep.mubr.bf16.mxu0 0
    %566 = vmatmul.mubr.bf16.gmra.mxu0 %v237
    %v567 = vpop.f32.mrf.mxu0
    %v568 = vadd.f32 %v162, %v567
    %v569 = vpop.f32.mrf.mxu0
    %v570 = vadd.f32 %v166, %v569
    %v571 = vpop.f32.mrf.mxu0
    %v572 = vadd.f32 %v162, %v571
    %v573 = vpop.f32.mrf.mxu0
    %v574 = vadd.f32 %v166, %v573
    %575 = vmatprep.mubr.bf16.mxu0 0
    %576 = vmatmul.mubr.bf16.gmra.mxu0 %v240
    %v577 = vpop.f32.mrf.mxu0
    %v578 = vadd.f32 %v162, %v577
    %v579 = vpop.f32.mrf.mxu0
    %v580 = vadd.f32 %v166, %v579
    %v581 = vpop.f32.mrf.mxu0
    %v582 = vadd.f32 %v162, %v581
    %v583 = vpop.f32.mrf.mxu0
    %v584 = vadd.f32 %v166, %v583
    %585 = vmatprep.mubr.bf16.mxu0 0
    %586 = vmatmul.mubr.bf16.gmra.mxu0 %v243
    %v587 = vpop.f32.mrf.mxu0
    %v588 = vadd.f32 %v162, %v587
    %v589 = vpop.f32.mrf.mxu0
    %v590 = vadd.f32 %v166, %v589
    %v591 = vpop.f32.mrf.mxu0
    %v592 = vadd.f32 %v162, %v591
    %v593 = vpop.f32.mrf.mxu0
    %v594 = vadd.f32 %v166, %v593
    %595 = vmatprep.mubr.bf16.mxu0 0
    %596 = vmatmul.mubr.bf16.gmra.mxu0 %v246
    %v597 = vpop.f32.mrf.mxu0
    %v598 = vadd.f32 %v162, %v597
    %v599 = vpop.f32.mrf.mxu0
    %v600 = vadd.f32 %v166, %v599
    %v601 = vpop.f32.mrf.mxu0
    %v602 = vadd.f32 %v162, %v601
    %v603 = vpop.f32.mrf.mxu0
    %v604 = vadd.f32 %v166, %v603
    %605 = vmatprep.mubr.bf16.mxu0 0
    %606 = vmatmul.mubr.bf16.gmra.mxu0 %v249
    %v607 = vpop.f32.mrf.mxu0
    %v608 = vadd.f32 %v162, %v607
    %v609 = vpop.f32.mrf.mxu0
    %v610 = vadd.f32 %v166, %v609
    %v611 = vpop.f32.mrf.mxu0
    %v612 = vadd.f32 %v162, %v611
    %v613 = vpop.f32.mrf.mxu0
    %v614 = vadd.f32 %v166, %v613
    %615 = vmatprep.mubr.bf16.mxu0 0
    %616 = vmatmul.mubr.bf16.gmra.mxu0 %v252
    %v617 = vpop.f32.mrf.mxu0
    %v618 = vadd.f32 %v162, %v617
    %v619 = vpop.f32.mrf.mxu0
    %v620 = vadd.f32 %v166, %v619
    %v621 = vpop.f32.mrf.mxu0
    %v622 = vadd.f32 %v162, %v621
    %v623 = vpop.f32.mrf.mxu0
    %v624 = vadd.f32 %v166, %v623
    %625 = vmatprep.mubr.bf16.mxu0 0
    %626 = vmatmul.mubr.bf16.gmra.mxu0 %v255
    %v627 = vpop.f32.mrf.mxu0
    %v628 = vadd.f32 %v162, %v627
    %v629 = vpop.f32.mrf.mxu0
    %v630 = vadd.f32 %v166, %v629
    %v631 = vpop.f32.mrf.mxu0
    %v632 = vadd.f32 %v162, %v631
    %v633 = vpop.f32.mrf.mxu0
    %v634 = vadd.f32 %v166, %v633
    %635 = vmatprep.mubr.bf16.mxu0 0
    %636 = vmatmul.mubr.bf16.gmra.mxu0 %v258
    %v637 = vpop.f32.mrf.mxu0
    %v638 = vadd.f32 %v162, %v637
    %v639 = vpop.f32.mrf.mxu0
    %v640 = vadd.f32 %v166, %v639
    %v641 = vpop.f32.mrf.mxu0
    %v642 = vadd.f32 %v162, %v641
    %v643 = vpop.f32.mrf.mxu0
    %v644 = vadd.f32 %v166, %v643
    %645 = vdwg.mxu0
    %v646 = vmax.f32 %v295, 0.0
    %v647 = vmax.f32 %v297, 0.0
    %v648 = vmax.f32 %v488, 0.0
    %v649 = vmax.f32 %v490, 0.0
    %v650 = vmax.f32 %v299, 0.0
    %v651 = vmax.f32 %v301, 0.0
    %v652 = vmax.f32 %v492, 0.0
    %v653 = vmax.f32 %v494, 0.0
    %v654 = vmax.f32 %v305, 0.0
    %v655 = vmax.f32 %v307, 0.0
    %v656 = vmax.f32 %v498, 0.0
    %v657 = vmax.f32 %v500, 0.0
    %v658 = vmax.f32 %v309, 0.0
    %v659 = vmax.f32 %v311, 0.0
    %v660 = vmax.f32 %v502, 0.0
    %v661 = vmax.f32 %v504, 0.0
    %v662 = vmax.f32 %v315, 0.0
    %v663 = vmax.f32 %v317, 0.0
    %v664 = vmax.f32 %v508, 0.0
    %v665 = vmax.f32 %v510, 0.0
    %v666 = vmax.f32 %v319, 0.0
    %v667 = vmax.f32 %v321, 0.0
    %v668 = vmax.f32 %v512, 0.0
    %v669 = vmax.f32 %v514, 0.0
    %v670 = vmax.f32 %v325, 0.0
    %v671 = vmax.f32 %v327, 0.0
    %v672 = vmax.f32 %v518, 0.0
    %v673 = vmax.f32 %v520, 0.0
    %v674 = vmax.f32 %v329, 0.0
    %v675 = vmax.f32 %v331, 0.0
    %v676 = vmax.f32 %v522, 0.0
    %v677 = vmax.f32 %v524, 0.0
    %v678 = vmax.f32 %v335, 0.0
    %v679 = vmax.f32 %v337, 0.0
    %v680 = vmax.f32 %v528, 0.0
    %v681 = vmax.f32 %v530, 0.0
    %v682 = vmax.f32 %v339, 0.0
    %v683 = vmax.f32 %v341, 0.0
    %v684 = vmax.f32 %v532, 0.0
    %v685 = vmax.f32 %v534, 0.0
    %v686 = vmax.f32 %v345, 0.0
    %v687 = vmax.f32 %v347, 0.0
    %v688 = vmax.f32 %v538, 0.0
    %v689 = vmax.f32 %v540, 0.0
    %v690 = vmax.f32 %v349, 0.0
    %v691 = vmax.f32 %v351, 0.0
    %v692 = vmax.f32 %v542, 0.0
    %v693 = vmax.f32 %v544, 0.0
    %v694 = vmax.f32 %v355, 0.0
    %v695 = vmax.f32 %v357, 0.0
    %v696 = vmax.f32 %v548, 0.0
    %v697 = vmax.f32 %v550, 0.0
    %v698 = vmax.f32 %v359, 0.0
    %v699 = vmax.f32 %v361, 0.0
    %v700 = vmax.f32 %v552, 0.0
    %v701 = vmax.f32 %v554, 0.0
    %v702 = vmax.f32 %v365, 0.0
    %v703 = vmax.f32 %v367, 0.0
    %v704 = vmax.f32 %v558, 0.0
    %v705 = vmax.f32 %v560, 0.0
    %v706 = vmax.f32 %v369, 0.0
    %v707 = vmax.f32 %v371, 0.0
    %v708 = vmax.f32 %v562, 0.0
    %v709 = vmax.f32 %v564, 0.0
    %v710 = vmax.f32 %v375, 0.0
    %v711 = vmax.f32 %v377, 0.0
    %v712 = vmax.f32 %v568, 0.0
    %v713 = vmax.f32 %v570, 0.0
    %v714 = vmax.f32 %v379, 0.0
    %v715 = vmax.f32 %v381, 0.0
    %v716 = vmax.f32 %v572, 0.0
    %v717 = vmax.f32 %v574, 0.0
    %v718 = vmax.f32 %v385, 0.0
    %v719 = vmax.f32 %v387, 0.0
    %v720 = vmax.f32 %v578, 0.0
    %v721 = vmax.f32 %v580, 0.0
    %v722 = vmax.f32 %v389, 0.0
    %v723 = vmax.f32 %v391, 0.0
    %v724 = vmax.f32 %v582, 0.0
    %v725 = vmax.f32 %v584, 0.0
    %v726 = vmax.f32 %v395, 0.0
    %v727 = vmax.f32 %v397, 0.0
    %v728 = vmax.f32 %v588, 0.0
    %v729 = vmax.f32 %v590, 0.0
    %v730 = vmax.f32 %v399, 0.0
    %v731 = vmax.f32 %v401, 0.0
    %v732 = vmax.f32 %v592, 0.0
    %v733 = vmax.f32 %v594, 0.0
    %v734 = vmax.f32 %v405, 0.0
    %v735 = vmax.f32 %v407, 0.0
    %v736 = vmax.f32 %v598, 0.0
    %v737 = vmax.f32 %v600, 0.0
    %v738 = vmax.f32 %v409, 0.0
    %v739 = vmax.f32 %v411, 0.0
    %v740 = vmax.f32 %v602, 0.0
    %v741 = vmax.f32 %v604, 0.0
    %v742 = vmax.f32 %v415, 0.0
    %v743 = vmax.f32 %v417, 0.0
    %v744 = vmax.f32 %v608, 0.0
    %v745 = vmax.f32 %v610, 0.0
    %v746 = vmax.f32 %v419, 0.0
    %v747 = vmax.f32 %v421, 0.0
    %v748 = vmax.f32 %v612, 0.0
    %v749 = vmax.f32 %v614, 0.0
    %v750 = vmax.f32 %v425, 0.0
    %v751 = vmax.f32 %v427, 0.0
    %v752 = vmax.f32 %v618, 0.0
    %v753 = vmax.f32 %v620, 0.0
    %v754 = vmax.f32 %v429, 0.0
    %v755 = vmax.f32 %v431, 0.0
    %v756 = vmax.f32 %v622, 0.0
    %v757 = vmax.f32 %v624, 0.0
    %v758 = vmax.f32 %v435, 0.0
    %v759 = vmax.f32 %v437, 0.0
    %v760 = vmax.f32 %v628, 0.0
    %v761 = vmax.f32 %v630, 0.0
    %v762 = vmax.f32 %v439, 0.0
    %v763 = vmax.f32 %v441, 0.0
    %v764 = vmax.f32 %v632, 0.0
    %v765 = vmax.f32 %v634, 0.0
    %v766 = vmax.f32 %v445, 0.0
    %v767 = vmax.f32 %v447, 0.0
    %v768 = vmax.f32 %v638, 0.0
    %v769 = vmax.f32 %v640, 0.0
    %v770 = vmax.f32 %v449, 0.0
    %v771 = vmax.f32 %v451, 0.0
    %v772 = vmax.f32 %v642, 0.0
    %v773 = vmax.f32 %v644, 0.0
    %v774 = vpack.c.bf16 %v650, %v646
    %v775 = vpack.c.bf16 %v651, %v647
    %v776 = vpack.c.bf16 %v652, %v648
    %v777 = vpack.c.bf16 %v653, %v649
    %v778 = vpack.c.bf16 %v658, %v654
    %v779 = vpack.c.bf16 %v659, %v655
    %v780 = vpack.c.bf16 %v660, %v656
    %v781 = vpack.c.bf16 %v661, %v657
    %v782 = vpack.c.bf16 %v666, %v662
    %v783 = vpack.c.bf16 %v667, %v663
    %v784 = vpack.c.bf16 %v668, %v664
    %v785 = vpack.c.bf16 %v669, %v665
    %v786 = vpack.c.bf16 %v674, %v670
    %v787 = vpack.c.bf16 %v675, %v671
    %v788 = vpack.c.bf16 %v676, %v672
    %v789 = vpack.c.bf16 %v677, %v673
    %v790 = vpack.c.bf16 %v682, %v678
    %v791 = vpack.c.bf16 %v683, %v679
    %v792 = vpack.c.bf16 %v684, %v680
    %v793 = vpack.c.bf16 %v685, %v681
    %v794 = vpack.c.bf16 %v690, %v686
    %v795 = vpack.c.bf16 %v691, %v687
    %v796 = vpack.c.bf16 %v692, %v688
    %v797 = vpack.c.bf16 %v693, %v689
    %v798 = vpack.c.bf16 %v698, %v694
    %v799 = vpack.c.bf16 %v699, %v695
    %v800 = vpack.c.bf16 %v700, %v696
    %v801 = vpack.c.bf16 %v701, %v697
    %v802 = vpack.c.bf16 %v706, %v702
    %v803 = vpack.c.bf16 %v707, %v703
    %v804 = vpack.c.bf16 %v708, %v704
    %v805 = vpack.c.bf16 %v709, %v705
    %v806 = vpack.c.bf16 %v714, %v710
    %v807 = vpack.c.bf16 %v715, %v711
    %v808 = vpack.c.bf16 %v716, %v712
    %v809 = vpack.c.bf16 %v717, %v713
    %v810 = vpack.c.bf16 %v722, %v718
    %v811 = vpack.c.bf16 %v723, %v719
    %v812 = vpack.c.bf16 %v724, %v720
    %v813 = vpack.c.bf16 %v725, %v721
    %v814 = vpack.c.bf16 %v730, %v726
    %v815 = vpack.c.bf16 %v731, %v727
    %v816 = vpack.c.bf16 %v732, %v728
    %v817 = vpack.c.bf16 %v733, %v729
    %v818 = vpack.c.bf16 %v738, %v734
    %v819 = vpack.c.bf16 %v739, %v735
    %v820 = vpack.c.bf16 %v740, %v736
    %v821 = vpack.c.bf16 %v741, %v737
    %v822 = vpack.c.bf16 %v746, %v742
    %v823 = vpack.c.bf16 %v747, %v743
    %v824 = vpack.c.bf16 %v748, %v744
    %v825 = vpack.c.bf16 %v749, %v745
    %v826 = vpack.c.bf16 %v754, %v750
    %v827 = vpack.c.bf16 %v755, %v751
    %v828 = vpack.c.bf16 %v756, %v752
    %v829 = vpack.c.bf16 %v757, %v753
    %v830 = vpack.c.bf16 %v762, %v758
    %v831 = vpack.c.bf16 %v763, %v759
    %v832 = vpack.c.bf16 %v764, %v760
    %v833 = vpack.c.bf16 %v765, %v761
    %v834 = vpack.c.bf16 %v770, %v766
    %v835 = vpack.c.bf16 %v771, %v767
    %v836 = vpack.c.bf16 %v772, %v768
    %v837 = vpack.c.bf16 %v773, %v769
    %v838 = vld [vmem:[#allocation6] sm:$0xff]
    %v839 = vld [vmem:[#allocation6 + $0x8] sm:$0xff]
    %v840 = vld [vmem:[#allocation6 + $0x10] sm:$0xff]
    %v841 = vld [vmem:[#allocation6 + $0x18] sm:$0xff]
    %v842 = vld [vmem:[#allocation6 + $0x20] sm:$0xff]
    %v843 = vld [vmem:[#allocation6 + $0x28] sm:$0xff]
    %v844 = vld [vmem:[#allocation6 + $0x30] sm:$0xff]
    %v845 = vld [vmem:[#allocation6 + $0x38] sm:$0xff]
    %v846 = vld [vmem:[#allocation6 + $0x40] sm:$0xff]
    %v847 = vld [vmem:[#allocation6 + $0x48] sm:$0xff]
    %v848 = vld [vmem:[#allocation6 + $0x50] sm:$0xff]
    %v849 = vld [vmem:[#allocation6 + $0x58] sm:$0xff]
    %v850 = vld [vmem:[#allocation6 + $0x60] sm:$0xff]
    %v851 = vld [vmem:[#allocation6 + $0x68] sm:$0xff]
    %v852 = vld [vmem:[#allocation6 + $0x70] sm:$0xff]
    %v853 = vld [vmem:[#allocation6 + $0x78] sm:$0xff]
    %v854 = vld [vmem:[#allocation6 + $0x80] sm:$0xff]
    %v855 = vld [vmem:[#allocation6 + $0x88] sm:$0xff]
    %v856 = vld [vmem:[#allocation6 + $0x90] sm:$0xff]
    %v857 = vld [vmem:[#allocation6 + $0x98] sm:$0xff]
    %v858 = vld [vmem:[#allocation6 + $0xa0] sm:$0xff]
    %v859 = vld [vmem:[#allocation6 + $0xa8] sm:$0xff]
    %v860 = vld [vmem:[#allocation6 + $0xb0] sm:$0xff]
    %v861 = vld [vmem:[#allocation6 + $0xb8] sm:$0xff]
    %v862 = vld [vmem:[#allocation6 + $0xc0] sm:$0xff]
    %v863 = vld [vmem:[#allocation6 + $0xc8] sm:$0xff]
    %v864 = vld [vmem:[#allocation6 + $0xd0] sm:$0xff]
    %v865 = vld [vmem:[#allocation6 + $0xd8] sm:$0xff]
    %v866 = vld [vmem:[#allocation6 + $0xe0] sm:$0xff]
    %v867 = vld [vmem:[#allocation6 + $0xe8] sm:$0xff]
    %v868 = vld [vmem:[#allocation6 + $0xf0] sm:$0xff]
    %v869 = vld [vmem:[#allocation6 + $0xf8] sm:$0xff]
    %v870 = vld [vmem:[#allocation6 + $0x100] sm:$0xff]
    %v871 = vld [vmem:[#allocation6 + $0x108] sm:$0xff]
    %v872 = vld [vmem:[#allocation6 + $0x110] sm:$0xff]
    %v873 = vld [vmem:[#allocation6 + $0x118] sm:$0xff]
    %v874 = vld [vmem:[#allocation6 + $0x120] sm:$0xff]
    %v875 = vld [vmem:[#allocation6 + $0x128] sm:$0xff]
    %v876 = vld [vmem:[#allocation6 + $0x130] sm:$0xff]
    %v877 = vld [vmem:[#allocation6 + $0x138] sm:$0xff]
    %v878 = vld [vmem:[#allocation6 + $0x140] sm:$0xff]
    %v879 = vld [vmem:[#allocation6 + $0x148] sm:$0xff]
    %v880 = vld [vmem:[#allocation6 + $0x150] sm:$0xff]
    %v881 = vld [vmem:[#allocation6 + $0x158] sm:$0xff]
    %v882 = vld [vmem:[#allocation6 + $0x160] sm:$0xff]
    %v883 = vld [vmem:[#allocation6 + $0x168] sm:$0xff]
    %v884 = vld [vmem:[#allocation6 + $0x170] sm:$0xff]
    %v885 = vld [vmem:[#allocation6 + $0x178] sm:$0xff]
    %v886 = vld [vmem:[#allocation6 + $0x180] sm:$0xff]
    %v887 = vld [vmem:[#allocation6 + $0x188] sm:$0xff]
    %v888 = vld [vmem:[#allocation6 + $0x190] sm:$0xff]
    %v889 = vld [vmem:[#allocation6 + $0x198] sm:$0xff]
    %v890 = vld [vmem:[#allocation6 + $0x1a0] sm:$0xff]
    %v891 = vld [vmem:[#allocation6 + $0x1a8] sm:$0xff]
    %v892 = vld [vmem:[#allocation6 + $0x1b0] sm:$0xff]
    %v893 = vld [vmem:[#allocation6 + $0x1b8] sm:$0xff]
    %v894 = vld [vmem:[#allocation6 + $0x1c0] sm:$0xff]
    %v895 = vld [vmem:[#allocation6 + $0x1c8] sm:$0xff]
    %v896 = vld [vmem:[#allocation6 + $0x1d0] sm:$0xff]
    %v897 = vld [vmem:[#allocation6 + $0x1d8] sm:$0xff]
    %v898 = vld [vmem:[#allocation6 + $0x1e0] sm:$0xff]
    %v899 = vld [vmem:[#allocation6 + $0x1e8] sm:$0xff]
    %v900 = vld [vmem:[#allocation6 + $0x1f0] sm:$0xff]
    %v901 = vld [vmem:[#allocation6 + $0x1f8] sm:$0xff]
    %v902 = vld [vmem:[%s4] sm:$0x3]
    %v904 = vlaneseq
    %v905 = vshrl.u32 %v904, 7
    %v906 = vsub.s32 0, %v905
    %v907 = vrot.slane %v902, %v906
    %v908 = vlaneseq
    %v909 = vshrl.u32 %v908, 7
    %v910 = vsub.s32 1, %v909
    %v911 = vrot.slane %v902, %v910
    %v978 = vunpack.c.l.b16 %v838
    %v979 = vunpack.c.h.b16 %v838
    %v980 = vunpack.c.l.b16 %v839
    %v981 = vunpack.c.h.b16 %v839
    %v982 = vunpack.c.l.b16 %v840
    %v983 = vunpack.c.h.b16 %v840
    %v984 = vunpack.c.l.b16 %v841
    %v985 = vunpack.c.h.b16 %v841
    %v986 = vunpack.c.l.b16 %v842
    %v987 = vunpack.c.h.b16 %v842
    %v988 = vunpack.c.l.b16 %v843
    %v989 = vunpack.c.h.b16 %v843
    %v990 = vunpack.c.l.b16 %v844
    %v991 = vunpack.c.h.b16 %v844
    %v992 = vunpack.c.l.b16 %v845
    %v993 = vunpack.c.h.b16 %v845
    %v994 = vunpack.c.l.b16 %v846
    %v995 = vunpack.c.h.b16 %v846
    %v996 = vunpack.c.l.b16 %v847
    %v997 = vunpack.c.h.b16 %v847
    %v998 = vunpack.c.l.b16 %v848
    %v999 = vunpack.c.h.b16 %v848
    %v1000 = vunpack.c.l.b16 %v849
    %v1001 = vunpack.c.h.b16 %v849
    %v1002 = vunpack.c.l.b16 %v850
    %v1003 = vunpack.c.h.b16 %v850
    %v1004 = vunpack.c.l.b16 %v851
    %v1005 = vunpack.c.h.b16 %v851
    %v1006 = vunpack.c.l.b16 %v852
    %v1007 = vunpack.c.h.b16 %v852
    %v1008 = vunpack.c.l.b16 %v853
    %v1009 = vunpack.c.h.b16 %v853
    %v1010 = vunpack.c.l.b16 %v854
    %v1011 = vunpack.c.h.b16 %v854
    %v1012 = vunpack.c.l.b16 %v855
    %v1013 = vunpack.c.h.b16 %v855
    %v1014 = vunpack.c.l.b16 %v856
    %v1015 = vunpack.c.h.b16 %v856
    %v1016 = vunpack.c.l.b16 %v857
    %v1017 = vunpack.c.h.b16 %v857
    %v1018 = vunpack.c.l.b16 %v858
    %v1019 = vunpack.c.h.b16 %v858
    %v1020 = vunpack.c.l.b16 %v859
    %v1021 = vunpack.c.h.b16 %v859
    %v1022 = vunpack.c.l.b16 %v860
    %v1023 = vunpack.c.h.b16 %v860
    %v1024 = vunpack.c.l.b16 %v861
    %v1025 = vunpack.c.h.b16 %v861
    %v1026 = vunpack.c.l.b16 %v862
    %v1027 = vunpack.c.h.b16 %v862
    %v1028 = vunpack.c.l.b16 %v863
    %v1029 = vunpack.c.h.b16 %v863
    %v1030 = vunpack.c.l.b16 %v864
    %v1031 = vunpack.c.h.b16 %v864
    %v1032 = vunpack.c.l.b16 %v865
    %v1033 = vunpack.c.h.b16 %v865
    %v1034 = vunpack.c.l.b16 %v866
    %v1035 = vunpack.c.h.b16 %v866
    %v1036 = vunpack.c.l.b16 %v867
    %v1037 = vunpack.c.h.b16 %v867
    %v1038 = vunpack.c.l.b16 %v868
    %v1039 = vunpack.c.h.b16 %v868
    %v1040 = vunpack.c.l.b16 %v869
    %v1041 = vunpack.c.h.b16 %v869
    %v1042 = vunpack.c.l.b16 %v870
    %v1043 = vunpack.c.h.b16 %v870
    %v1044 = vunpack.c.l.b16 %v871
    %v1045 = vunpack.c.h.b16 %v871
    %v1046 = vunpack.c.l.b16 %v872
    %v1047 = vunpack.c.h.b16 %v872
    %v1048 = vunpack.c.l.b16 %v873
    %v1049 = vunpack.c.h.b16 %v873
    %v1050 = vunpack.c.l.b16 %v874
    %v1051 = vunpack.c.h.b16 %v874
    %v1052 = vunpack.c.l.b16 %v875
    %v1053 = vunpack.c.h.b16 %v875
    %v1054 = vunpack.c.l.b16 %v876
    %v1055 = vunpack.c.h.b16 %v876
    %v1056 = vunpack.c.l.b16 %v877
    %v1057 = vunpack.c.h.b16 %v877
    %v1058 = vunpack.c.l.b16 %v878
    %v1059 = vunpack.c.h.b16 %v878
    %v1060 = vunpack.c.l.b16 %v879
    %v1061 = vunpack.c.h.b16 %v879
    %v1062 = vunpack.c.l.b16 %v880
    %v1063 = vunpack.c.h.b16 %v880
    %v1064 = vunpack.c.l.b16 %v881
    %v1065 = vunpack.c.h.b16 %v881
    %v1066 = vunpack.c.l.b16 %v882
    %v1067 = vunpack.c.h.b16 %v882
    %v1068 = vunpack.c.l.b16 %v883
    %v1069 = vunpack.c.h.b16 %v883
    %v1070 = vunpack.c.l.b16 %v884
    %v1071 = vunpack.c.h.b16 %v884
    %v1072 = vunpack.c.l.b16 %v885
    %v1073 = vunpack.c.h.b16 %v885
    %v1074 = vunpack.c.l.b16 %v886
    %v1075 = vunpack.c.h.b16 %v886
    %v1076 = vunpack.c.l.b16 %v887
    %v1077 = vunpack.c.h.b16 %v887
    %v1078 = vunpack.c.l.b16 %v888
    %v1079 = vunpack.c.h.b16 %v888
    %v1080 = vunpack.c.l.b16 %v889
    %v1081 = vunpack.c.h.b16 %v889
    %v1082 = vunpack.c.l.b16 %v890
    %v1083 = vunpack.c.h.b16 %v890
    %v1084 = vunpack.c.l.b16 %v891
    %v1085 = vunpack.c.h.b16 %v891
    %v1086 = vunpack.c.l.b16 %v892
    %v1087 = vunpack.c.h.b16 %v892
    %v1088 = vunpack.c.l.b16 %v893
    %v1089 = vunpack.c.h.b16 %v893
    %v1090 = vunpack.c.l.b16 %v894
    %v1091 = vunpack.c.h.b16 %v894
    %v1092 = vunpack.c.l.b16 %v895
    %v1093 = vunpack.c.h.b16 %v895
    %v1094 = vunpack.c.l.b16 %v896
    %v1095 = vunpack.c.h.b16 %v896
    %v1096 = vunpack.c.l.b16 %v897
    %v1097 = vunpack.c.h.b16 %v897
    %v1098 = vunpack.c.l.b16 %v898
    %v1099 = vunpack.c.h.b16 %v898
    %v1100 = vunpack.c.l.b16 %v899
    %v1101 = vunpack.c.h.b16 %v899
    %v1102 = vunpack.c.l.b16 %v900
    %v1103 = vunpack.c.h.b16 %v900
    %v1104 = vunpack.c.l.b16 %v901
    %v1105 = vunpack.c.h.b16 %v901
    %v1106 = vpack.c.b16 %v980, %v978
    %v1107 = vpack.c.b16 %v981, %v979
    %v1108 = vpack.c.b16 %v984, %v982
    %v1109 = vpack.c.b16 %v985, %v983
    %v1110 = vpack.c.b16 %v988, %v986
    %v1111 = vpack.c.b16 %v989, %v987
    %v1112 = vpack.c.b16 %v992, %v990
    %v1113 = vpack.c.b16 %v993, %v991
    %v1114 = vpack.c.b16 %v996, %v994
    %v1115 = vpack.c.b16 %v997, %v995
    %v1116 = vpack.c.b16 %v1000, %v998
    %v1117 = vpack.c.b16 %v1001, %v999
    %v1118 = vpack.c.b16 %v1004, %v1002
    %v1119 = vpack.c.b16 %v1005, %v1003
    %v1120 = vpack.c.b16 %v1008, %v1006
    %v1121 = vpack.c.b16 %v1009, %v1007
    %v1122 = vpack.c.b16 %v1012, %v1010
    %v1123 = vpack.c.b16 %v1013, %v1011
    %v1124 = vpack.c.b16 %v1016, %v1014
    %v1125 = vpack.c.b16 %v1017, %v1015
    %v1126 = vpack.c.b16 %v1020, %v1018
    %v1127 = vpack.c.b16 %v1021, %v1019
    %v1128 = vpack.c.b16 %v1024, %v1022
    %v1129 = vpack.c.b16 %v1025, %v1023
    %v1130 = vpack.c.b16 %v1028, %v1026
    %v1131 = vpack.c.b16 %v1029, %v1027
    %v1132 = vpack.c.b16 %v1032, %v1030
    %v1133 = vpack.c.b16 %v1033, %v1031
    %v1134 = vpack.c.b16 %v1036, %v1034
    %v1135 = vpack.c.b16 %v1037, %v1035
    %v1136 = vpack.c.b16 %v1040, %v1038
    %v1137 = vpack.c.b16 %v1041, %v1039
    %v1138 = vpack.c.b16 %v1044, %v1042
    %v1139 = vpack.c.b16 %v1045, %v1043
    %v1140 = vpack.c.b16 %v1048, %v1046
    %v1141 = vpack.c.b16 %v1049, %v1047
    %v1142 = vpack.c.b16 %v1052, %v1050
    %v1143 = vpack.c.b16 %v1053, %v1051
    %v1144 = vpack.c.b16 %v1056, %v1054
    %v1145 = vpack.c.b16 %v1057, %v1055
    %v1146 = vpack.c.b16 %v1060, %v1058
    %v1147 = vpack.c.b16 %v1061, %v1059
    %v1148 = vpack.c.b16 %v1064, %v1062
    %v1149 = vpack.c.b16 %v1065, %v1063
    %v1150 = vpack.c.b16 %v1068, %v1066
    %v1151 = vpack.c.b16 %v1069, %v1067
    %v1152 = vpack.c.b16 %v1072, %v1070
    %v1153 = vpack.c.b16 %v1073, %v1071
    %v1154 = vpack.c.b16 %v1076, %v1074
    %v1155 = vpack.c.b16 %v1077, %v1075
    %v1156 = vpack.c.b16 %v1080, %v1078
    %v1157 = vpack.c.b16 %v1081, %v1079
    %v1158 = vpack.c.b16 %v1084, %v1082
    %v1159 = vpack.c.b16 %v1085, %v1083
    %v1160 = vpack.c.b16 %v1088, %v1086
    %v1161 = vpack.c.b16 %v1089, %v1087
    %v1162 = vpack.c.b16 %v1092, %v1090
    %v1163 = vpack.c.b16 %v1093, %v1091
    %v1164 = vpack.c.b16 %v1096, %v1094
    %v1165 = vpack.c.b16 %v1097, %v1095
    %v1166 = vpack.c.b16 %v1100, %v1098
    %v1167 = vpack.c.b16 %v1101, %v1099
    %v1168 = vpack.c.b16 %v1104, %v1102
    %v1169 = vpack.c.b16 %v1105, %v1103
    %1234 = vmatprep.subr.bf16.mxu0 %v1121
    %1235 = vmatpush1.bf16.msra.mxu0 %v1120
    %1236 = vmatprep.subr.bf16.mxu0 %v1119
    %1237 = vmatpush1.bf16.msra.mxu0 %v1118
    %1238 = vmatprep.subr.bf16.mxu0 %v1117
    %1239 = vmatpush1.bf16.msra.mxu0 %v1116
    %1240 = vmatprep.subr.bf16.mxu0 %v1115
    %1241 = vmatpush1.bf16.msra.mxu0 %v1114
    %1242 = vmatprep.subr.bf16.mxu0 %v1113
    %1243 = vmatpush1.bf16.msra.mxu0 %v1112
    %1244 = vmatprep.subr.bf16.mxu0 %v1111
    %1245 = vmatpush1.bf16.msra.mxu0 %v1110
    %1246 = vmatprep.subr.bf16.mxu0 %v1109
    %1247 = vmatpush1.bf16.msra.mxu0 %v1108
    %1248 = vmatprep.subr.bf16.mxu0 %v1107
    %1249 = vmatpush1.bf16.msra.mxu0 %v1106
    %1250 = vmatprep.subr.bf16.mxu0 %v1137
    %1251 = vmatpush2.bf16.msra.mxu0 %v1136
    %1252 = vmatprep.subr.bf16.mxu0 %v1135
    %1253 = vmatpush2.bf16.msra.mxu0 %v1134
    %1254 = vmatprep.subr.bf16.mxu0 %v1133
    %1255 = vmatpush2.bf16.msra.mxu0 %v1132
    %1256 = vmatprep.subr.bf16.mxu0 %v1131
    %1257 = vmatpush2.bf16.msra.mxu0 %v1130
    %1258 = vmatprep.subr.bf16.mxu0 %v1129
    %1259 = vmatpush2.bf16.msra.mxu0 %v1128
    %1260 = vmatprep.subr.bf16.mxu0 %v1127
    %1261 = vmatpush2.bf16.msra.mxu0 %v1126
    %1262 = vmatprep.subr.bf16.mxu0 %v1125
    %1263 = vmatpush2.bf16.msra.mxu0 %v1124
    %1264 = vmatprep.subr.bf16.mxu0 %v1123
    %1265 = vmatpush2.bf16.msra.mxu0 %v1122
    %1266 = vmatprep.mubr.bf16.mxu0 %v775
    %1267 = vmatmul.mubr.bf16.gmra.mxu0 %v774
    %v1268 = vpop.f32.mrf.mxu0
    %v1269 = vadd.f32 %v907, %v1268
    %v1270 = vpop.f32.mrf.mxu0
    %v1271 = vadd.f32 %v911, %v1270
    %v1272 = vpop.f32.mrf.mxu0
    %v1273 = vadd.f32 %v907, %v1272
    %v1274 = vpop.f32.mrf.mxu0
    %v1275 = vadd.f32 %v911, %v1274
    %1276 = vmatprep.mubr.bf16.mxu0 %v779
    %1277 = vmatmul.mubr.bf16.gmra.mxu0 %v778
    %v1278 = vpop.f32.mrf.mxu0
    %v1279 = vadd.f32 %v907, %v1278
    %v1280 = vpop.f32.mrf.mxu0
    %v1281 = vadd.f32 %v911, %v1280
    %v1282 = vpop.f32.mrf.mxu0
    %v1283 = vadd.f32 %v907, %v1282
    %v1284 = vpop.f32.mrf.mxu0
    %v1285 = vadd.f32 %v911, %v1284
    %1286 = vmatprep.mubr.bf16.mxu0 %v783
    %1287 = vmatmul.mubr.bf16.gmra.mxu0 %v782
    %v1288 = vpop.f32.mrf.mxu0
    %v1289 = vadd.f32 %v907, %v1288
    %v1290 = vpop.f32.mrf.mxu0
    %v1291 = vadd.f32 %v911, %v1290
    %v1292 = vpop.f32.mrf.mxu0
    %v1293 = vadd.f32 %v907, %v1292
    %v1294 = vpop.f32.mrf.mxu0
    %v1295 = vadd.f32 %v911, %v1294
    %1296 = vmatprep.mubr.bf16.mxu0 %v787
    %1297 = vmatmul.mubr.bf16.gmra.mxu0 %v786
    %v1298 = vpop.f32.mrf.mxu0
    %v1299 = vadd.f32 %v907, %v1298
    %v1300 = vpop.f32.mrf.mxu0
    %v1301 = vadd.f32 %v911, %v1300
    %v1302 = vpop.f32.mrf.mxu0
    %v1303 = vadd.f32 %v907, %v1302
    %v1304 = vpop.f32.mrf.mxu0
    %v1305 = vadd.f32 %v911, %v1304
    %1306 = vmatprep.mubr.bf16.mxu0 %v791
    %1307 = vmatmul.mubr.bf16.gmra.mxu0 %v790
    %v1308 = vpop.f32.mrf.mxu0
    %v1309 = vadd.f32 %v907, %v1308
    %v1310 = vpop.f32.mrf.mxu0
    %v1311 = vadd.f32 %v911, %v1310
    %v1312 = vpop.f32.mrf.mxu0
    %v1313 = vadd.f32 %v907, %v1312
    %v1314 = vpop.f32.mrf.mxu0
    %v1315 = vadd.f32 %v911, %v1314
    %1316 = vmatprep.mubr.bf16.mxu0 %v795
    %1317 = vmatmul.mubr.bf16.gmra.mxu0 %v794
    %v1318 = vpop.f32.mrf.mxu0
    %v1319 = vadd.f32 %v907, %v1318
    %v1320 = vpop.f32.mrf.mxu0
    %v1321 = vadd.f32 %v911, %v1320
    %v1322 = vpop.f32.mrf.mxu0
    %v1323 = vadd.f32 %v907, %v1322
    %v1324 = vpop.f32.mrf.mxu0
    %v1325 = vadd.f32 %v911, %v1324
    %1326 = vmatprep.mubr.bf16.mxu0 %v799
    %1327 = vmatmul.mubr.bf16.gmra.mxu0 %v798
    %v1328 = vpop.f32.mrf.mxu0
    %v1329 = vadd.f32 %v907, %v1328
    %v1330 = vpop.f32.mrf.mxu0
    %v1331 = vadd.f32 %v911, %v1330
    %v1332 = vpop.f32.mrf.mxu0
    %v1333 = vadd.f32 %v907, %v1332
    %v1334 = vpop.f32.mrf.mxu0
    %v1335 = vadd.f32 %v911, %v1334
    %1336 = vmatprep.mubr.bf16.mxu0 %v803
    %1337 = vmatmul.mubr.bf16.gmra.mxu0 %v802
    %v1338 = vpop.f32.mrf.mxu0
    %v1339 = vadd.f32 %v907, %v1338
    %v1340 = vpop.f32.mrf.mxu0
    %v1341 = vadd.f32 %v911, %v1340
    %v1342 = vpop.f32.mrf.mxu0
    %v1343 = vadd.f32 %v907, %v1342
    %v1344 = vpop.f32.mrf.mxu0
    %v1345 = vadd.f32 %v911, %v1344
    %1346 = vmatprep.mubr.bf16.mxu0 %v807
    %1347 = vmatmul.mubr.bf16.gmra.mxu0 %v806
    %v1348 = vpop.f32.mrf.mxu0
    %v1349 = vadd.f32 %v907, %v1348
    %v1350 = vpop.f32.mrf.mxu0
    %v1351 = vadd.f32 %v911, %v1350
    %v1352 = vpop.f32.mrf.mxu0
    %v1353 = vadd.f32 %v907, %v1352
    %v1354 = vpop.f32.mrf.mxu0
    %v1355 = vadd.f32 %v911, %v1354
    %1356 = vmatprep.mubr.bf16.mxu0 %v811
    %1357 = vmatmul.mubr.bf16.gmra.mxu0 %v810
    %v1358 = vpop.f32.mrf.mxu0
    %v1359 = vadd.f32 %v907, %v1358
    %v1360 = vpop.f32.mrf.mxu0
    %v1361 = vadd.f32 %v911, %v1360
    %v1362 = vpop.f32.mrf.mxu0
    %v1363 = vadd.f32 %v907, %v1362
    %v1364 = vpop.f32.mrf.mxu0
    %v1365 = vadd.f32 %v911, %v1364
    %1366 = vmatprep.mubr.bf16.mxu0 %v815
    %1367 = vmatmul.mubr.bf16.gmra.mxu0 %v814
    %v1368 = vpop.f32.mrf.mxu0
    %v1369 = vadd.f32 %v907, %v1368
    %v1370 = vpop.f32.mrf.mxu0
    %v1371 = vadd.f32 %v911, %v1370
    %v1372 = vpop.f32.mrf.mxu0
    %v1373 = vadd.f32 %v907, %v1372
    %v1374 = vpop.f32.mrf.mxu0
    %v1375 = vadd.f32 %v911, %v1374
    %1376 = vmatprep.mubr.bf16.mxu0 %v819
    %1377 = vmatmul.mubr.bf16.gmra.mxu0 %v818
    %v1378 = vpop.f32.mrf.mxu0
    %v1379 = vadd.f32 %v907, %v1378
    %v1380 = vpop.f32.mrf.mxu0
    %v1381 = vadd.f32 %v911, %v1380
    %v1382 = vpop.f32.mrf.mxu0
    %v1383 = vadd.f32 %v907, %v1382
    %v1384 = vpop.f32.mrf.mxu0
    %v1385 = vadd.f32 %v911, %v1384
    %1386 = vmatprep.mubr.bf16.mxu0 %v823
    %1387 = vmatmul.mubr.bf16.gmra.mxu0 %v822
    %v1388 = vpop.f32.mrf.mxu0
    %v1389 = vadd.f32 %v907, %v1388
    %v1390 = vpop.f32.mrf.mxu0
    %v1391 = vadd.f32 %v911, %v1390
    %v1392 = vpop.f32.mrf.mxu0
    %v1393 = vadd.f32 %v907, %v1392
    %v1394 = vpop.f32.mrf.mxu0
    %v1395 = vadd.f32 %v911, %v1394
    %1396 = vmatprep.mubr.bf16.mxu0 %v827
    %1397 = vmatmul.mubr.bf16.gmra.mxu0 %v826
    %v1398 = vpop.f32.mrf.mxu0
    %v1399 = vadd.f32 %v907, %v1398
    %v1400 = vpop.f32.mrf.mxu0
    %v1401 = vadd.f32 %v911, %v1400
    %v1402 = vpop.f32.mrf.mxu0
    %v1403 = vadd.f32 %v907, %v1402
    %v1404 = vpop.f32.mrf.mxu0
    %v1405 = vadd.f32 %v911, %v1404
    %1406 = vmatprep.mubr.bf16.mxu0 %v831
    %1407 = vmatmul.mubr.bf16.gmra.mxu0 %v830
    %v1408 = vpop.f32.mrf.mxu0
    %v1409 = vadd.f32 %v907, %v1408
    %v1410 = vpop.f32.mrf.mxu0
    %v1411 = vadd.f32 %v911, %v1410
    %v1412 = vpop.f32.mrf.mxu0
    %v1413 = vadd.f32 %v907, %v1412
    %v1414 = vpop.f32.mrf.mxu0
    %v1415 = vadd.f32 %v911, %v1414
    %1416 = vmatprep.mubr.bf16.mxu0 %v835
    %1417 = vmatmul.mubr.bf16.gmra.mxu0 %v834
    %v1418 = vpop.f32.mrf.mxu0
    %v1419 = vadd.f32 %v907, %v1418
    %v1420 = vpop.f32.mrf.mxu0
    %v1421 = vadd.f32 %v911, %v1420
    %v1422 = vpop.f32.mrf.mxu0
    %v1423 = vadd.f32 %v907, %v1422
    %v1424 = vpop.f32.mrf.mxu0
    %v1425 = vadd.f32 %v911, %v1424
    %1426 = vdwg.mxu0
    %1427 = vmatprep.subr.bf16.mxu0 %v1153
    %1428 = vmatpush1.bf16.msra.mxu0 %v1152
    %1429 = vmatprep.subr.bf16.mxu0 %v1151
    %1430 = vmatpush1.bf16.msra.mxu0 %v1150
    %1431 = vmatprep.subr.bf16.mxu0 %v1149
    %1432 = vmatpush1.bf16.msra.mxu0 %v1148
    %1433 = vmatprep.subr.bf16.mxu0 %v1147
    %1434 = vmatpush1.bf16.msra.mxu0 %v1146
    %1435 = vmatprep.subr.bf16.mxu0 %v1145
    %1436 = vmatpush1.bf16.msra.mxu0 %v1144
    %1437 = vmatprep.subr.bf16.mxu0 %v1143
    %1438 = vmatpush1.bf16.msra.mxu0 %v1142
    %1439 = vmatprep.subr.bf16.mxu0 %v1141
    %1440 = vmatpush1.bf16.msra.mxu0 %v1140
    %1441 = vmatprep.subr.bf16.mxu0 %v1139
    %1442 = vmatpush1.bf16.msra.mxu0 %v1138
    %1443 = vmatprep.subr.bf16.mxu0 %v1169
    %1444 = vmatpush2.bf16.msra.mxu0 %v1168
    %1445 = vmatprep.subr.bf16.mxu0 %v1167
    %1446 = vmatpush2.bf16.msra.mxu0 %v1166
    %1447 = vmatprep.subr.bf16.mxu0 %v1165
    %1448 = vmatpush2.bf16.msra.mxu0 %v1164
    %1449 = vmatprep.subr.bf16.mxu0 %v1163
    %1450 = vmatpush2.bf16.msra.mxu0 %v1162
    %1451 = vmatprep.subr.bf16.mxu0 %v1161
    %1452 = vmatpush2.bf16.msra.mxu0 %v1160
    %1453 = vmatprep.subr.bf16.mxu0 %v1159
    %1454 = vmatpush2.bf16.msra.mxu0 %v1158
    %1455 = vmatprep.subr.bf16.mxu0 %v1157
    %1456 = vmatpush2.bf16.msra.mxu0 %v1156
    %1457 = vmatprep.subr.bf16.mxu0 %v1155
    %1458 = vmatpush2.bf16.msra.mxu0 %v1154
    %1459 = vmatprep.mubr.bf16.mxu0 %v777
    %1460 = vmatmul.mubr.bf16.gmra.mxu0 %v776
    %v1461 = vpop.f32.mrf.mxu0
    %v1462 = vadd.f32 %v1269, %v1461
    %v1463 = vpop.f32.mrf.mxu0
    %v1464 = vadd.f32 %v1271, %v1463
    %v1465 = vpop.f32.mrf.mxu0
    %v1466 = vadd.f32 %v1273, %v1465
    %v1467 = vpop.f32.mrf.mxu0
    %v1468 = vadd.f32 %v1275, %v1467
    %1469 = vmatprep.mubr.bf16.mxu0 %v781
    %1470 = vmatmul.mubr.bf16.gmra.mxu0 %v780
    %v1471 = vpop.f32.mrf.mxu0
    %v1472 = vadd.f32 %v1279, %v1471
    %v1473 = vpop.f32.mrf.mxu0
    %v1474 = vadd.f32 %v1281, %v1473
    %v1475 = vpop.f32.mrf.mxu0
    %v1476 = vadd.f32 %v1283, %v1475
    %v1477 = vpop.f32.mrf.mxu0
    %v1478 = vadd.f32 %v1285, %v1477
    %1479 = vmatprep.mubr.bf16.mxu0 %v785
    %1480 = vmatmul.mubr.bf16.gmra.mxu0 %v784
    %v1481 = vpop.f32.mrf.mxu0
    %v1482 = vadd.f32 %v1289, %v1481
    %v1483 = vpop.f32.mrf.mxu0
    %v1484 = vadd.f32 %v1291, %v1483
    %v1485 = vpop.f32.mrf.mxu0
    %v1486 = vadd.f32 %v1293, %v1485
    %v1487 = vpop.f32.mrf.mxu0
    %v1488 = vadd.f32 %v1295, %v1487
    %1489 = vmatprep.mubr.bf16.mxu0 %v789
    %1490 = vmatmul.mubr.bf16.gmra.mxu0 %v788
    %v1491 = vpop.f32.mrf.mxu0
    %v1492 = vadd.f32 %v1299, %v1491
    %v1493 = vpop.f32.mrf.mxu0
    %v1494 = vadd.f32 %v1301, %v1493
    %v1495 = vpop.f32.mrf.mxu0
    %v1496 = vadd.f32 %v1303, %v1495
    %v1497 = vpop.f32.mrf.mxu0
    %v1498 = vadd.f32 %v1305, %v1497
    %1499 = vmatprep.mubr.bf16.mxu0 %v793
    %1500 = vmatmul.mubr.bf16.gmra.mxu0 %v792
    %v1501 = vpop.f32.mrf.mxu0
    %v1502 = vadd.f32 %v1309, %v1501
    %v1503 = vpop.f32.mrf.mxu0
    %v1504 = vadd.f32 %v1311, %v1503
    %v1505 = vpop.f32.mrf.mxu0
    %v1506 = vadd.f32 %v1313, %v1505
    %v1507 = vpop.f32.mrf.mxu0
    %v1508 = vadd.f32 %v1315, %v1507
    %1509 = vmatprep.mubr.bf16.mxu0 %v797
    %1510 = vmatmul.mubr.bf16.gmra.mxu0 %v796
    %v1511 = vpop.f32.mrf.mxu0
    %v1512 = vadd.f32 %v1319, %v1511
    %v1513 = vpop.f32.mrf.mxu0
    %v1514 = vadd.f32 %v1321, %v1513
    %v1515 = vpop.f32.mrf.mxu0
    %v1516 = vadd.f32 %v1323, %v1515
    %v1517 = vpop.f32.mrf.mxu0
    %v1518 = vadd.f32 %v1325, %v1517
    %1519 = vmatprep.mubr.bf16.mxu0 %v801
    %1520 = vmatmul.mubr.bf16.gmra.mxu0 %v800
    %v1521 = vpop.f32.mrf.mxu0
    %v1522 = vadd.f32 %v1329, %v1521
    %v1523 = vpop.f32.mrf.mxu0
    %v1524 = vadd.f32 %v1331, %v1523
    %v1525 = vpop.f32.mrf.mxu0
    %v1526 = vadd.f32 %v1333, %v1525
    %v1527 = vpop.f32.mrf.mxu0
    %v1528 = vadd.f32 %v1335, %v1527
    %1529 = vmatprep.mubr.bf16.mxu0 %v805
    %1530 = vmatmul.mubr.bf16.gmra.mxu0 %v804
    %v1531 = vpop.f32.mrf.mxu0
    %v1532 = vadd.f32 %v1339, %v1531
    %v1533 = vpop.f32.mrf.mxu0
    %v1534 = vadd.f32 %v1341, %v1533
    %v1535 = vpop.f32.mrf.mxu0
    %v1536 = vadd.f32 %v1343, %v1535
    %v1537 = vpop.f32.mrf.mxu0
    %v1538 = vadd.f32 %v1345, %v1537
    %1539 = vmatprep.mubr.bf16.mxu0 %v809
    %1540 = vmatmul.mubr.bf16.gmra.mxu0 %v808
    %v1541 = vpop.f32.mrf.mxu0
    %v1542 = vadd.f32 %v1349, %v1541
    %v1543 = vpop.f32.mrf.mxu0
    %v1544 = vadd.f32 %v1351, %v1543
    %v1545 = vpop.f32.mrf.mxu0
    %v1546 = vadd.f32 %v1353, %v1545
    %v1547 = vpop.f32.mrf.mxu0
    %v1548 = vadd.f32 %v1355, %v1547
    %1549 = vmatprep.mubr.bf16.mxu0 %v813
    %1550 = vmatmul.mubr.bf16.gmra.mxu0 %v812
    %v1551 = vpop.f32.mrf.mxu0
    %v1552 = vadd.f32 %v1359, %v1551
    %v1553 = vpop.f32.mrf.mxu0
    %v1554 = vadd.f32 %v1361, %v1553
    %v1555 = vpop.f32.mrf.mxu0
    %v1556 = vadd.f32 %v1363, %v1555
    %v1557 = vpop.f32.mrf.mxu0
    %v1558 = vadd.f32 %v1365, %v1557
    %1559 = vmatprep.mubr.bf16.mxu0 %v817
    %1560 = vmatmul.mubr.bf16.gmra.mxu0 %v816
    %v1561 = vpop.f32.mrf.mxu0
    %v1562 = vadd.f32 %v1369, %v1561
    %v1563 = vpop.f32.mrf.mxu0
    %v1564 = vadd.f32 %v1371, %v1563
    %v1565 = vpop.f32.mrf.mxu0
    %v1566 = vadd.f32 %v1373, %v1565
    %v1567 = vpop.f32.mrf.mxu0
    %v1568 = vadd.f32 %v1375, %v1567
    %1569 = vmatprep.mubr.bf16.mxu0 %v821
    %1570 = vmatmul.mubr.bf16.gmra.mxu0 %v820
    %v1571 = vpop.f32.mrf.mxu0
    %v1572 = vadd.f32 %v1379, %v1571
    %v1573 = vpop.f32.mrf.mxu0
    %v1574 = vadd.f32 %v1381, %v1573
    %v1575 = vpop.f32.mrf.mxu0
    %v1576 = vadd.f32 %v1383, %v1575
    %v1577 = vpop.f32.mrf.mxu0
    %v1578 = vadd.f32 %v1385, %v1577
    %1579 = vmatprep.mubr.bf16.mxu0 %v825
    %1580 = vmatmul.mubr.bf16.gmra.mxu0 %v824
    %v1581 = vpop.f32.mrf.mxu0
    %v1582 = vadd.f32 %v1389, %v1581
    %v1583 = vpop.f32.mrf.mxu0
    %v1584 = vadd.f32 %v1391, %v1583
    %v1585 = vpop.f32.mrf.mxu0
    %v1586 = vadd.f32 %v1393, %v1585
    %v1587 = vpop.f32.mrf.mxu0
    %v1588 = vadd.f32 %v1395, %v1587
    %1589 = vmatprep.mubr.bf16.mxu0 %v829
    %1590 = vmatmul.mubr.bf16.gmra.mxu0 %v828
    %v1591 = vpop.f32.mrf.mxu0
    %v1592 = vadd.f32 %v1399, %v1591
    %v1593 = vpop.f32.mrf.mxu0
    %v1594 = vadd.f32 %v1401, %v1593
    %v1595 = vpop.f32.mrf.mxu0
    %v1596 = vadd.f32 %v1403, %v1595
    %v1597 = vpop.f32.mrf.mxu0
    %v1598 = vadd.f32 %v1405, %v1597
    %1599 = vmatprep.mubr.bf16.mxu0 %v833
    %1600 = vmatmul.mubr.bf16.gmra.mxu0 %v832
    %v1601 = vpop.f32.mrf.mxu0
    %v1602 = vadd.f32 %v1409, %v1601
    %v1603 = vpop.f32.mrf.mxu0
    %v1604 = vadd.f32 %v1411, %v1603
    %v1605 = vpop.f32.mrf.mxu0
    %v1606 = vadd.f32 %v1413, %v1605
    %v1607 = vpop.f32.mrf.mxu0
    %v1608 = vadd.f32 %v1415, %v1607
    %1609 = vmatprep.mubr.bf16.mxu0 %v837
    %1610 = vmatmul.mubr.bf16.gmra.mxu0 %v836
    %v1611 = vpop.f32.mrf.mxu0
    %v1612 = vadd.f32 %v1419, %v1611
    %v1613 = vpop.f32.mrf.mxu0
    %v1614 = vadd.f32 %v1421, %v1613
    %v1615 = vpop.f32.mrf.mxu0
    %v1616 = vadd.f32 %v1423, %v1615
    %v1617 = vpop.f32.mrf.mxu0
    %v1618 = vadd.f32 %v1425, %v1617
    %1619 = vdwg.mxu0
    %v1620 = vmax.f32 %v1462, 0.0
    %v1621 = vmax.f32 %v1464, 0.0
    %v1622 = vmax.f32 %v1466, 0.0
    %v1623 = vmax.f32 %v1468, 0.0
    %v1624 = vmax.f32 %v1472, 0.0
    %v1625 = vmax.f32 %v1474, 0.0
    %v1626 = vmax.f32 %v1476, 0.0
    %v1627 = vmax.f32 %v1478, 0.0
    %v1628 = vmax.f32 %v1482, 0.0
    %v1629 = vmax.f32 %v1484, 0.0
    %v1630 = vmax.f32 %v1486, 0.0
    %v1631 = vmax.f32 %v1488, 0.0
    %v1632 = vmax.f32 %v1492, 0.0
    %v1633 = vmax.f32 %v1494, 0.0
    %v1634 = vmax.f32 %v1496, 0.0
    %v1635 = vmax.f32 %v1498, 0.0
    %v1636 = vmax.f32 %v1502, 0.0
    %v1637 = vmax.f32 %v1504, 0.0
    %v1638 = vmax.f32 %v1506, 0.0
    %v1639 = vmax.f32 %v1508, 0.0
    %v1640 = vmax.f32 %v1512, 0.0
    %v1641 = vmax.f32 %v1514, 0.0
    %v1642 = vmax.f32 %v1516, 0.0
    %v1643 = vmax.f32 %v1518, 0.0
    %v1644 = vmax.f32 %v1522, 0.0
    %v1645 = vmax.f32 %v1524, 0.0
    %v1646 = vmax.f32 %v1526, 0.0
    %v1647 = vmax.f32 %v1528, 0.0
    %v1648 = vmax.f32 %v1532, 0.0
    %v1649 = vmax.f32 %v1534, 0.0
    %v1650 = vmax.f32 %v1536, 0.0
    %v1651 = vmax.f32 %v1538, 0.0
    %v1652 = vmax.f32 %v1542, 0.0
    %v1653 = vmax.f32 %v1544, 0.0
    %v1654 = vmax.f32 %v1546, 0.0
    %v1655 = vmax.f32 %v1548, 0.0
    %v1656 = vmax.f32 %v1552, 0.0
    %v1657 = vmax.f32 %v1554, 0.0
    %v1658 = vmax.f32 %v1556, 0.0
    %v1659 = vmax.f32 %v1558, 0.0
    %v1660 = vmax.f32 %v1562, 0.0
    %v1661 = vmax.f32 %v1564, 0.0
    %v1662 = vmax.f32 %v1566, 0.0
    %v1663 = vmax.f32 %v1568, 0.0
    %v1664 = vmax.f32 %v1572, 0.0
    %v1665 = vmax.f32 %v1574, 0.0
    %v1666 = vmax.f32 %v1576, 0.0
    %v1667 = vmax.f32 %v1578, 0.0
    %v1668 = vmax.f32 %v1582, 0.0
    %v1669 = vmax.f32 %v1584, 0.0
    %v1670 = vmax.f32 %v1586, 0.0
    %v1671 = vmax.f32 %v1588, 0.0
    %v1672 = vmax.f32 %v1592, 0.0
    %v1673 = vmax.f32 %v1594, 0.0
    %v1674 = vmax.f32 %v1596, 0.0
    %v1675 = vmax.f32 %v1598, 0.0
    %v1676 = vmax.f32 %v1602, 0.0
    %v1677 = vmax.f32 %v1604, 0.0
    %v1678 = vmax.f32 %v1606, 0.0
    %v1679 = vmax.f32 %v1608, 0.0
    %v1680 = vmax.f32 %v1612, 0.0
    %v1681 = vmax.f32 %v1614, 0.0
    %v1682 = vmax.f32 %v1616, 0.0
    %v1683 = vmax.f32 %v1618, 0.0
    %v1684 = vpack.c.bf16 %v1622, %v1620
    %v1685 = vpack.c.bf16 %v1623, %v1621
    %v1686 = vpack.c.bf16 %v1626, %v1624
    %v1687 = vpack.c.bf16 %v1627, %v1625
    %v1688 = vpack.c.bf16 %v1630, %v1628
    %v1689 = vpack.c.bf16 %v1631, %v1629
    %v1690 = vpack.c.bf16 %v1634, %v1632
    %v1691 = vpack.c.bf16 %v1635, %v1633
    %v1692 = vpack.c.bf16 %v1638, %v1636
    %v1693 = vpack.c.bf16 %v1639, %v1637
    %v1694 = vpack.c.bf16 %v1642, %v1640
    %v1695 = vpack.c.bf16 %v1643, %v1641
    %v1696 = vpack.c.bf16 %v1646, %v1644
    %v1697 = vpack.c.bf16 %v1647, %v1645
    %v1698 = vpack.c.bf16 %v1650, %v1648
    %v1699 = vpack.c.bf16 %v1651, %v1649
    %v1700 = vpack.c.bf16 %v1654, %v1652
    %v1701 = vpack.c.bf16 %v1655, %v1653
    %v1702 = vpack.c.bf16 %v1658, %v1656
    %v1703 = vpack.c.bf16 %v1659, %v1657
    %v1704 = vpack.c.bf16 %v1662, %v1660
    %v1705 = vpack.c.bf16 %v1663, %v1661
    %v1706 = vpack.c.bf16 %v1666, %v1664
    %v1707 = vpack.c.bf16 %v1667, %v1665
    %v1708 = vpack.c.bf16 %v1670, %v1668
    %v1709 = vpack.c.bf16 %v1671, %v1669
    %v1710 = vpack.c.bf16 %v1674, %v1672
    %v1711 = vpack.c.bf16 %v1675, %v1673
    %v1712 = vpack.c.bf16 %v1678, %v1676
    %v1713 = vpack.c.bf16 %v1679, %v1677
    %v1714 = vpack.c.bf16 %v1682, %v1680
    %v1715 = vpack.c.bf16 %v1683, %v1681
    %v1716 = vld [vmem:[%s5] sm:$0xf]
    %v1717 = vld [vmem:[%s5 + $0x4] sm:$0xf]
    %v1718 = vld [vmem:[%s5 + $0x8] sm:$0xf]
    %v1719 = vld [vmem:[%s5 + $0xc] sm:$0xf]
    %v1720 = vld [vmem:[%s5 + $0x10] sm:$0xf]
    %v1721 = vld [vmem:[%s5 + $0x14] sm:$0xf]
    %v1722 = vld [vmem:[%s5 + $0x18] sm:$0xf]
    %v1723 = vld [vmem:[%s5 + $0x1c] sm:$0xf]
    %v1724 = vld [vmem:[%s5 + $0x20] sm:$0xf]
    %v1725 = vld [vmem:[%s5 + $0x24] sm:$0xf]
    %v1726 = vld [vmem:[%s5 + $0x28] sm:$0xf]
    %v1727 = vld [vmem:[%s5 + $0x2c] sm:$0xf]
    %v1728 = vld [vmem:[%s5 + $0x30] sm:$0xf]
    %v1729 = vld [vmem:[%s5 + $0x34] sm:$0xf]
    %v1730 = vld [vmem:[%s5 + $0x38] sm:$0xf]
    %v1731 = vld [vmem:[%s5 + $0x3c] sm:$0xf]
    %v1732 = vld [vmem:[%s5 + $0x40] sm:$0xf]
    %v1733 = vld [vmem:[%s5 + $0x44] sm:$0xf]
    %v1734 = vld [vmem:[%s5 + $0x48] sm:$0xf]
    %v1735 = vld [vmem:[%s5 + $0x4c] sm:$0xf]
    %v1736 = vld [vmem:[%s5 + $0x50] sm:$0xf]
    %v1737 = vld [vmem:[%s5 + $0x54] sm:$0xf]
    %v1738 = vld [vmem:[%s5 + $0x58] sm:$0xf]
    %v1739 = vld [vmem:[%s5 + $0x5c] sm:$0xf]
    %v1740 = vld [vmem:[%s5 + $0x60] sm:$0xf]
    %v1741 = vld [vmem:[%s5 + $0x64] sm:$0xf]
    %v1742 = vld [vmem:[%s5 + $0x68] sm:$0xf]
    %v1743 = vld [vmem:[%s5 + $0x6c] sm:$0xf]
    %v1744 = vld [vmem:[%s5 + $0x70] sm:$0xf]
    %v1745 = vld [vmem:[%s5 + $0x74] sm:$0xf]
    %v1746 = vld [vmem:[%s5 + $0x78] sm:$0xf]
    %v1747 = vld [vmem:[%s5 + $0x7c] sm:$0xf]
    %v1748 = vld [vmem:[%s6] sm:$0x1]
    %v1750 = vlaneseq
    %v1751 = vshrl.u32 %v1750, 7
    %v1752 = vsub.s32 0, %v1751
    %v1753 = vrot.slane %v1748, %v1752
    %v1787 = vunpack.c.l.b16 %v1716
    %v1788 = vunpack.c.l.b16 %v1717
    %v1789 = vunpack.c.l.b16 %v1718
    %v1790 = vunpack.c.l.b16 %v1719
    %v1791 = vunpack.c.l.b16 %v1720
    %v1792 = vunpack.c.l.b16 %v1721
    %v1793 = vunpack.c.l.b16 %v1722
    %v1794 = vunpack.c.l.b16 %v1723
    %v1795 = vunpack.c.l.b16 %v1724
    %v1796 = vunpack.c.l.b16 %v1725
    %v1797 = vunpack.c.l.b16 %v1726
    %v1798 = vunpack.c.l.b16 %v1727
    %v1799 = vunpack.c.l.b16 %v1728
    %v1800 = vunpack.c.l.b16 %v1729
    %v1801 = vunpack.c.l.b16 %v1730
    %v1802 = vunpack.c.l.b16 %v1731
    %v1803 = vunpack.c.l.b16 %v1732
    %v1804 = vunpack.c.l.b16 %v1733
    %v1805 = vunpack.c.l.b16 %v1734
    %v1806 = vunpack.c.l.b16 %v1735
    %v1807 = vunpack.c.l.b16 %v1736
    %v1808 = vunpack.c.l.b16 %v1737
    %v1809 = vunpack.c.l.b16 %v1738
    %v1810 = vunpack.c.l.b16 %v1739
    %v1811 = vunpack.c.l.b16 %v1740
    %v1812 = vunpack.c.l.b16 %v1741
    %v1813 = vunpack.c.l.b16 %v1742
    %v1814 = vunpack.c.l.b16 %v1743
    %v1815 = vunpack.c.l.b16 %v1744
    %v1816 = vunpack.c.l.b16 %v1745
    %v1817 = vunpack.c.l.b16 %v1746
    %v1818 = vunpack.c.l.b16 %v1747
    %v1819 = vpack.c.b16 %v1788, %v1787
    %v1820 = vpack.c.b16 %v1790, %v1789
    %v1821 = vpack.c.b16 %v1792, %v1791
    %v1822 = vpack.c.b16 %v1794, %v1793
    %v1823 = vpack.c.b16 %v1796, %v1795
    %v1824 = vpack.c.b16 %v1798, %v1797
    %v1825 = vpack.c.b16 %v1800, %v1799
    %v1826 = vpack.c.b16 %v1802, %v1801
    %v1827 = vpack.c.b16 %v1804, %v1803
    %v1828 = vpack.c.b16 %v1806, %v1805
    %v1829 = vpack.c.b16 %v1808, %v1807
    %v1830 = vpack.c.b16 %v1810, %v1809
    %v1831 = vpack.c.b16 %v1812, %v1811
    %v1832 = vpack.c.b16 %v1814, %v1813
    %v1833 = vpack.c.b16 %v1816, %v1815
    %v1834 = vpack.c.b16 %v1818, %v1817
    %1851 = vmatprep.subr.bf16.mxu0 0
    %1852 = vmatpush1.bf16.msra.mxu0 %v1826
    %1853 = vmatprep.subr.bf16.mxu0 0
    %1854 = vmatpush1.bf16.msra.mxu0 %v1825
    %1855 = vmatprep.subr.bf16.mxu0 0
    %1856 = vmatpush1.bf16.msra.mxu0 %v1824
    %1857 = vmatprep.subr.bf16.mxu0 0
    %1858 = vmatpush1.bf16.msra.mxu0 %v1823
    %1859 = vmatprep.subr.bf16.mxu0 0
    %1860 = vmatpush1.bf16.msra.mxu0 %v1822
    %1861 = vmatprep.subr.bf16.mxu0 0
    %1862 = vmatpush1.bf16.msra.mxu0 %v1821
    %1863 = vmatprep.subr.bf16.mxu0 0
    %1864 = vmatpush1.bf16.msra.mxu0 %v1820
    %1865 = vmatprep.subr.bf16.mxu0 0
    %1866 = vmatpush1.bf16.msra.mxu0 %v1819
    %1867 = vmatprep.subr.bf16.mxu0 0
    %1868 = vmatpush2.bf16.msra.mxu0 %v1834
    %1869 = vmatprep.subr.bf16.mxu0 0
    %1870 = vmatpush2.bf16.msra.mxu0 %v1833
    %1871 = vmatprep.subr.bf16.mxu0 0
    %1872 = vmatpush2.bf16.msra.mxu0 %v1832
    %1873 = vmatprep.subr.bf16.mxu0 0
    %1874 = vmatpush2.bf16.msra.mxu0 %v1831
    %1875 = vmatprep.subr.bf16.mxu0 0
    %1876 = vmatpush2.bf16.msra.mxu0 %v1830
    %1877 = vmatprep.subr.bf16.mxu0 0
    %1878 = vmatpush2.bf16.msra.mxu0 %v1829
    %1879 = vmatprep.subr.bf16.mxu0 0
    %1880 = vmatpush2.bf16.msra.mxu0 %v1828
    %1881 = vmatprep.subr.bf16.mxu0 0
    %1882 = vmatpush2.bf16.msra.mxu0 %v1827
    %1883 = vmatprep.mubr.bf16.mxu0 %v1685
    %1884 = vmatmul.mubr.bf16.gmra.mxu0 %v1684
    %v1885 = vpop.f32.mrf.mxu0
    %v1886 = vadd.f32 %v1753, %v1885
    %v1887 = vpop.f32.mrf.mxu0
    %v1888 = vpop.f32.mrf.mxu0
    %v1889 = vadd.f32 %v1753, %v1888
    %v1890 = vpop.f32.mrf.mxu0
    %1891 = vmatprep.mubr.bf16.mxu0 %v1687
    %1892 = vmatmul.mubr.bf16.gmra.mxu0 %v1686
    %v1893 = vpop.f32.mrf.mxu0
    %v1894 = vadd.f32 %v1753, %v1893
    %v1895 = vpop.f32.mrf.mxu0
    %v1896 = vpop.f32.mrf.mxu0
    %v1897 = vadd.f32 %v1753, %v1896
    %v1898 = vpop.f32.mrf.mxu0
    %1899 = vmatprep.mubr.bf16.mxu0 %v1689
    %1900 = vmatmul.mubr.bf16.gmra.mxu0 %v1688
    %v1901 = vpop.f32.mrf.mxu0
    %v1902 = vadd.f32 %v1753, %v1901
    %v1903 = vpop.f32.mrf.mxu0
    %v1904 = vpop.f32.mrf.mxu0
    %v1905 = vadd.f32 %v1753, %v1904
    %v1906 = vpop.f32.mrf.mxu0
    %1907 = vmatprep.mubr.bf16.mxu0 %v1691
    %1908 = vmatmul.mubr.bf16.gmra.mxu0 %v1690
    %v1909 = vpop.f32.mrf.mxu0
    %v1910 = vadd.f32 %v1753, %v1909
    %v1911 = vpop.f32.mrf.mxu0
    %v1912 = vpop.f32.mrf.mxu0
    %v1913 = vadd.f32 %v1753, %v1912
    %v1914 = vpop.f32.mrf.mxu0
    %1915 = vmatprep.mubr.bf16.mxu0 %v1693
    %1916 = vmatmul.mubr.bf16.gmra.mxu0 %v1692
    %v1917 = vpop.f32.mrf.mxu0
    %v1918 = vadd.f32 %v1753, %v1917
    %v1919 = vpop.f32.mrf.mxu0
    %v1920 = vpop.f32.mrf.mxu0
    %v1921 = vadd.f32 %v1753, %v1920
    %v1922 = vpop.f32.mrf.mxu0
    %1923 = vmatprep.mubr.bf16.mxu0 %v1695
    %1924 = vmatmul.mubr.bf16.gmra.mxu0 %v1694
    %v1925 = vpop.f32.mrf.mxu0
    %v1926 = vadd.f32 %v1753, %v1925
    %v1927 = vpop.f32.mrf.mxu0
    %v1928 = vpop.f32.mrf.mxu0
    %v1929 = vadd.f32 %v1753, %v1928
    %v1930 = vpop.f32.mrf.mxu0
    %1931 = vmatprep.mubr.bf16.mxu0 %v1697
    %1932 = vmatmul.mubr.bf16.gmra.mxu0 %v1696
    %v1933 = vpop.f32.mrf.mxu0
    %v1934 = vadd.f32 %v1753, %v1933
    %v1935 = vpop.f32.mrf.mxu0
    %v1936 = vpop.f32.mrf.mxu0
    %v1937 = vadd.f32 %v1753, %v1936
    %v1938 = vpop.f32.mrf.mxu0
    %1939 = vmatprep.mubr.bf16.mxu0 %v1699
    %1940 = vmatmul.mubr.bf16.gmra.mxu0 %v1698
    %v1941 = vpop.f32.mrf.mxu0
    %v1942 = vadd.f32 %v1753, %v1941
    %v1943 = vpop.f32.mrf.mxu0
    %v1944 = vpop.f32.mrf.mxu0
    %v1945 = vadd.f32 %v1753, %v1944
    %v1946 = vpop.f32.mrf.mxu0
    %1947 = vmatprep.mubr.bf16.mxu0 %v1701
    %1948 = vmatmul.mubr.bf16.gmra.mxu0 %v1700
    %v1949 = vpop.f32.mrf.mxu0
    %v1950 = vadd.f32 %v1753, %v1949
    %v1951 = vpop.f32.mrf.mxu0
    %v1952 = vpop.f32.mrf.mxu0
    %v1953 = vadd.f32 %v1753, %v1952
    %v1954 = vpop.f32.mrf.mxu0
    %1955 = vmatprep.mubr.bf16.mxu0 %v1703
    %1956 = vmatmul.mubr.bf16.gmra.mxu0 %v1702
    %v1957 = vpop.f32.mrf.mxu0
    %v1958 = vadd.f32 %v1753, %v1957
    %v1959 = vpop.f32.mrf.mxu0
    %v1960 = vpop.f32.mrf.mxu0
    %v1961 = vadd.f32 %v1753, %v1960
    %v1962 = vpop.f32.mrf.mxu0
    %1963 = vmatprep.mubr.bf16.mxu0 %v1705
    %1964 = vmatmul.mubr.bf16.gmra.mxu0 %v1704
    %v1965 = vpop.f32.mrf.mxu0
    %v1966 = vadd.f32 %v1753, %v1965
    %v1967 = vpop.f32.mrf.mxu0
    %v1968 = vpop.f32.mrf.mxu0
    %v1969 = vadd.f32 %v1753, %v1968
    %v1970 = vpop.f32.mrf.mxu0
    %1971 = vmatprep.mubr.bf16.mxu0 %v1707
    %1972 = vmatmul.mubr.bf16.gmra.mxu0 %v1706
    %v1973 = vpop.f32.mrf.mxu0
    %v1974 = vadd.f32 %v1753, %v1973
    %v1975 = vpop.f32.mrf.mxu0
    %v1976 = vpop.f32.mrf.mxu0
    %v1977 = vadd.f32 %v1753, %v1976
    %v1978 = vpop.f32.mrf.mxu0
    %1979 = vmatprep.mubr.bf16.mxu0 %v1709
    %1980 = vmatmul.mubr.bf16.gmra.mxu0 %v1708
    %v1981 = vpop.f32.mrf.mxu0
    %v1982 = vadd.f32 %v1753, %v1981
    %v1983 = vpop.f32.mrf.mxu0
    %v1984 = vpop.f32.mrf.mxu0
    %v1985 = vadd.f32 %v1753, %v1984
    %v1986 = vpop.f32.mrf.mxu0
    %1987 = vmatprep.mubr.bf16.mxu0 %v1711
    %1988 = vmatmul.mubr.bf16.gmra.mxu0 %v1710
    %v1989 = vpop.f32.mrf.mxu0
    %v1990 = vadd.f32 %v1753, %v1989
    %v1991 = vpop.f32.mrf.mxu0
    %v1992 = vpop.f32.mrf.mxu0
    %v1993 = vadd.f32 %v1753, %v1992
    %v1994 = vpop.f32.mrf.mxu0
    %1995 = vmatprep.mubr.bf16.mxu0 %v1713
    %1996 = vmatmul.mubr.bf16.gmra.mxu0 %v1712
    %v1997 = vpop.f32.mrf.mxu0
    %v1998 = vadd.f32 %v1753, %v1997
    %v1999 = vpop.f32.mrf.mxu0
    %v2000 = vpop.f32.mrf.mxu0
    %v2001 = vadd.f32 %v1753, %v2000
    %v2002 = vpop.f32.mrf.mxu0
    %2003 = vmatprep.mubr.bf16.mxu0 %v1715
    %2004 = vmatmul.mubr.bf16.gmra.mxu0 %v1714
    %v2005 = vpop.f32.mrf.mxu0
    %v2006 = vadd.f32 %v1753, %v2005
    %v2007 = vpop.f32.mrf.mxu0
    %v2008 = vpop.f32.mrf.mxu0
    %v2009 = vadd.f32 %v1753, %v2008
    %v2010 = vpop.f32.mrf.mxu0
    %2011 = vdwg.mxu0
    %v2012 = vmax.f32 %v1886, 0.0
    %v2013 = vmax.f32 %v1889, 0.0
    %v2014 = vmax.f32 %v1894, 0.0
    %v2015 = vmax.f32 %v1897, 0.0
    %v2016 = vmax.f32 %v1902, 0.0
    %v2017 = vmax.f32 %v1905, 0.0
    %v2018 = vmax.f32 %v1910, 0.0
    %v2019 = vmax.f32 %v1913, 0.0
    %v2020 = vmax.f32 %v1918, 0.0
    %v2021 = vmax.f32 %v1921, 0.0
    %v2022 = vmax.f32 %v1926, 0.0
    %v2023 = vmax.f32 %v1929, 0.0
    %v2024 = vmax.f32 %v1934, 0.0
    %v2025 = vmax.f32 %v1937, 0.0
    %v2026 = vmax.f32 %v1942, 0.0
    %v2027 = vmax.f32 %v1945, 0.0
    %v2028 = vmax.f32 %v1950, 0.0
    %v2029 = vmax.f32 %v1953, 0.0
    %v2030 = vmax.f32 %v1958, 0.0
    %v2031 = vmax.f32 %v1961, 0.0
    %v2032 = vmax.f32 %v1966, 0.0
    %v2033 = vmax.f32 %v1969, 0.0
    %v2034 = vmax.f32 %v1974, 0.0
    %v2035 = vmax.f32 %v1977, 0.0
    %v2036 = vmax.f32 %v1982, 0.0
    %v2037 = vmax.f32 %v1985, 0.0
    %v2038 = vmax.f32 %v1990, 0.0
    %v2039 = vmax.f32 %v1993, 0.0
    %v2040 = vmax.f32 %v1998, 0.0
    %v2041 = vmax.f32 %v2001, 0.0
    %v2042 = vmax.f32 %v2006, 0.0
    %v2043 = vmax.f32 %v2009, 0.0
    %v2044 = vpack.c.bf16 %v2013, %v2012
    %v2045 = vpack.c.bf16 %v2015, %v2014
    %v2046 = vpack.c.bf16 %v2017, %v2016
    %v2047 = vpack.c.bf16 %v2019, %v2018
    %v2048 = vpack.c.bf16 %v2021, %v2020
    %v2049 = vpack.c.bf16 %v2023, %v2022
    %v2050 = vpack.c.bf16 %v2025, %v2024
    %v2051 = vpack.c.bf16 %v2027, %v2026
    %v2052 = vpack.c.bf16 %v2029, %v2028
    %v2053 = vpack.c.bf16 %v2031, %v2030
    %v2054 = vpack.c.bf16 %v2033, %v2032
    %v2055 = vpack.c.bf16 %v2035, %v2034
    %v2056 = vpack.c.bf16 %v2037, %v2036
    %v2057 = vpack.c.bf16 %v2039, %v2038
    %v2058 = vpack.c.bf16 %v2041, %v2040
    %v2059 = vpack.c.bf16 %v2043, %v2042
    %v2060 = vld [vmem:[%s7] sm:$0xf]
    %v2061 = vld [vmem:[%s7 + $0x4] sm:$0xf]
    %v2062 = vld [vmem:[%s7 + $0x8] sm:$0xf]
    %v2063 = vld [vmem:[%s7 + $0xc] sm:$0xf]
    %v2064 = vld [vmem:[%s7 + $0x10] sm:$0xf]
    %v2065 = vld [vmem:[%s7 + $0x14] sm:$0xf]
    %v2066 = vld [vmem:[%s7 + $0x18] sm:$0xf]
    %v2067 = vld [vmem:[%s7 + $0x1c] sm:$0xf]
    %v2068 = vld [vmem:[%s7 + $0x20] sm:$0xf]
    %v2069 = vld [vmem:[%s7 + $0x24] sm:$0xf]
    %v2070 = vld [vmem:[%s7 + $0x28] sm:$0xf]
    %v2071 = vld [vmem:[%s7 + $0x2c] sm:$0xf]
    %v2072 = vld [vmem:[%s7 + $0x30] sm:$0xf]
    %v2073 = vld [vmem:[%s7 + $0x34] sm:$0xf]
    %v2074 = vld [vmem:[%s7 + $0x38] sm:$0xf]
    %v2075 = vld [vmem:[%s7 + $0x3c] sm:$0xf]
    %v2076 = vld [vmem:[%s8] sm:$0x1]
    %v2078 = vlaneseq
    %v2079 = vshrl.u32 %v2078, 7
    %v2080 = vsub.s32 0, %v2079
    %v2081 = vrot.slane %v2076, %v2080
    %v2099 = vunpack.c.l.b16 %v2060
    %v2100 = vunpack.c.l.b16 %v2061
    %v2101 = vunpack.c.l.b16 %v2062
    %v2102 = vunpack.c.l.b16 %v2063
    %v2103 = vunpack.c.l.b16 %v2064
    %v2104 = vunpack.c.l.b16 %v2065
    %v2105 = vunpack.c.l.b16 %v2066
    %v2106 = vunpack.c.l.b16 %v2067
    %v2107 = vunpack.c.l.b16 %v2068
    %v2108 = vunpack.c.l.b16 %v2069
    %v2109 = vunpack.c.l.b16 %v2070
    %v2110 = vunpack.c.l.b16 %v2071
    %v2111 = vunpack.c.l.b16 %v2072
    %v2112 = vunpack.c.l.b16 %v2073
    %v2113 = vunpack.c.l.b16 %v2074
    %v2114 = vunpack.c.l.b16 %v2075
    %v2115 = vpack.c.b16 %v2100, %v2099
    %v2116 = vpack.c.b16 %v2102, %v2101
    %v2117 = vpack.c.b16 %v2104, %v2103
    %v2118 = vpack.c.b16 %v2106, %v2105
    %v2119 = vpack.c.b16 %v2108, %v2107
    %v2120 = vpack.c.b16 %v2110, %v2109
    %v2121 = vpack.c.b16 %v2112, %v2111
    %v2122 = vpack.c.b16 %v2114, %v2113
    %2131 = vmatprep.subr.bf16.mxu0 0
    %2132 = vmatpush1.bf16.msra.mxu0 %v2122
    %2133 = vmatprep.subr.bf16.mxu0 0
    %2134 = vmatpush1.bf16.msra.mxu0 %v2121
    %2135 = vmatprep.subr.bf16.mxu0 0
    %2136 = vmatpush1.bf16.msra.mxu0 %v2120
    %2137 = vmatprep.subr.bf16.mxu0 0
    %2138 = vmatpush1.bf16.msra.mxu0 %v2119
    %2139 = vmatprep.subr.bf16.mxu0 0
    %2140 = vmatpush1.bf16.msra.mxu0 %v2118
    %2141 = vmatprep.subr.bf16.mxu0 0
    %2142 = vmatpush1.bf16.msra.mxu0 %v2117
    %2143 = vmatprep.subr.bf16.mxu0 0
    %2144 = vmatpush1.bf16.msra.mxu0 %v2116
    %2145 = vmatprep.subr.bf16.mxu0 0
    %2146 = vmatpush1.bf16.msra.mxu0 %v2115
    %2147 = vmatprep.subr.bf16.mxu0 0
    %2148 = vmatpush2.bf16.msra.mxu0 0
    %2149 = vmatprep.subr.bf16.mxu0 0
    %2150 = vmatpush2.bf16.msra.mxu0 0
    %2151 = vmatprep.subr.bf16.mxu0 0
    %2152 = vmatpush2.bf16.msra.mxu0 0
    %2153 = vmatprep.subr.bf16.mxu0 0
    %2154 = vmatpush2.bf16.msra.mxu0 0
    %2155 = vmatprep.subr.bf16.mxu0 0
    %2156 = vmatpush2.bf16.msra.mxu0 0
    %2157 = vmatprep.subr.bf16.mxu0 0
    %2158 = vmatpush2.bf16.msra.mxu0 0
    %2159 = vmatprep.subr.bf16.mxu0 0
    %2160 = vmatpush2.bf16.msra.mxu0 0
    %2161 = vmatprep.subr.bf16.mxu0 0
    %2162 = vmatpush2.bf16.msra.mxu0 0
    %2163 = vmatprep.mubr.bf16.mxu0 0
    %2164 = vmatmul.mubr.bf16.gmra.mxu0 %v2044
    %v2165 = vpop.f32.mrf.mxu0
    %v2166 = vadd.f32 %v2081, %v2165
    %v2167 = vpop.f32.mrf.mxu0
    %v2168 = vpop.f32.mrf.mxu0
    %v2169 = vadd.f32 %v2081, %v2168
    %v2170 = vpop.f32.mrf.mxu0
    %2171 = vmatprep.mubr.bf16.mxu0 0
    %2172 = vmatmul.mubr.bf16.gmra.mxu0 %v2045
    %v2173 = vpop.f32.mrf.mxu0
    %v2174 = vadd.f32 %v2081, %v2173
    %v2175 = vpop.f32.mrf.mxu0
    %v2176 = vpop.f32.mrf.mxu0
    %v2177 = vadd.f32 %v2081, %v2176
    %v2178 = vpop.f32.mrf.mxu0
    %2179 = vmatprep.mubr.bf16.mxu0 0
    %2180 = vmatmul.mubr.bf16.gmra.mxu0 %v2046
    %v2181 = vpop.f32.mrf.mxu0
    %v2182 = vadd.f32 %v2081, %v2181
    %v2183 = vpop.f32.mrf.mxu0
    %v2184 = vpop.f32.mrf.mxu0
    %v2185 = vadd.f32 %v2081, %v2184
    %v2186 = vpop.f32.mrf.mxu0
    %2187 = vmatprep.mubr.bf16.mxu0 0
    %2188 = vmatmul.mubr.bf16.gmra.mxu0 %v2047
    %v2189 = vpop.f32.mrf.mxu0
    %v2190 = vadd.f32 %v2081, %v2189
    %v2191 = vpop.f32.mrf.mxu0
    %v2192 = vpop.f32.mrf.mxu0
    %v2193 = vadd.f32 %v2081, %v2192
    %v2194 = vpop.f32.mrf.mxu0
    %2195 = vmatprep.mubr.bf16.mxu0 0
    %2196 = vmatmul.mubr.bf16.gmra.mxu0 %v2048
    %v2197 = vpop.f32.mrf.mxu0
    %v2198 = vadd.f32 %v2081, %v2197
    %v2199 = vpop.f32.mrf.mxu0
    %v2200 = vpop.f32.mrf.mxu0
    %v2201 = vadd.f32 %v2081, %v2200
    %v2202 = vpop.f32.mrf.mxu0
    %2203 = vmatprep.mubr.bf16.mxu0 0
    %2204 = vmatmul.mubr.bf16.gmra.mxu0 %v2049
    %v2205 = vpop.f32.mrf.mxu0
    %v2206 = vadd.f32 %v2081, %v2205
    %v2207 = vpop.f32.mrf.mxu0
    %v2208 = vpop.f32.mrf.mxu0
    %v2209 = vadd.f32 %v2081, %v2208
    %v2210 = vpop.f32.mrf.mxu0
    %2211 = vmatprep.mubr.bf16.mxu0 0
    %2212 = vmatmul.mubr.bf16.gmra.mxu0 %v2050
    %v2213 = vpop.f32.mrf.mxu0
    %v2214 = vadd.f32 %v2081, %v2213
    %v2215 = vpop.f32.mrf.mxu0
    %v2216 = vpop.f32.mrf.mxu0
    %v2217 = vadd.f32 %v2081, %v2216
    %v2218 = vpop.f32.mrf.mxu0
    %2219 = vmatprep.mubr.bf16.mxu0 0
    %2220 = vmatmul.mubr.bf16.gmra.mxu0 %v2051
    %v2221 = vpop.f32.mrf.mxu0
    %v2222 = vadd.f32 %v2081, %v2221
    %v2223 = vpop.f32.mrf.mxu0
    %v2224 = vpop.f32.mrf.mxu0
    %v2225 = vadd.f32 %v2081, %v2224
    %v2226 = vpop.f32.mrf.mxu0
    %2227 = vmatprep.mubr.bf16.mxu0 0
    %2228 = vmatmul.mubr.bf16.gmra.mxu0 %v2052
    %v2229 = vpop.f32.mrf.mxu0
    %v2230 = vadd.f32 %v2081, %v2229
    %v2231 = vpop.f32.mrf.mxu0
    %v2232 = vpop.f32.mrf.mxu0
    %v2233 = vadd.f32 %v2081, %v2232
    %v2234 = vpop.f32.mrf.mxu0
    %2235 = vmatprep.mubr.bf16.mxu0 0
    %2236 = vmatmul.mubr.bf16.gmra.mxu0 %v2053
    %v2237 = vpop.f32.mrf.mxu0
    %v2238 = vadd.f32 %v2081, %v2237
    %v2239 = vpop.f32.mrf.mxu0
    %v2240 = vpop.f32.mrf.mxu0
    %v2241 = vadd.f32 %v2081, %v2240
    %v2242 = vpop.f32.mrf.mxu0
    %2243 = vmatprep.mubr.bf16.mxu0 0
    %2244 = vmatmul.mubr.bf16.gmra.mxu0 %v2054
    %v2245 = vpop.f32.mrf.mxu0
    %v2246 = vadd.f32 %v2081, %v2245
    %v2247 = vpop.f32.mrf.mxu0
    %v2248 = vpop.f32.mrf.mxu0
    %v2249 = vadd.f32 %v2081, %v2248
    %v2250 = vpop.f32.mrf.mxu0
    %2251 = vmatprep.mubr.bf16.mxu0 0
    %2252 = vmatmul.mubr.bf16.gmra.mxu0 %v2055
    %v2253 = vpop.f32.mrf.mxu0
    %v2254 = vadd.f32 %v2081, %v2253
    %v2255 = vpop.f32.mrf.mxu0
    %v2256 = vpop.f32.mrf.mxu0
    %v2257 = vadd.f32 %v2081, %v2256
    %v2258 = vpop.f32.mrf.mxu0
    %2259 = vmatprep.mubr.bf16.mxu0 0
    %2260 = vmatmul.mubr.bf16.gmra.mxu0 %v2056
    %v2261 = vpop.f32.mrf.mxu0
    %v2262 = vadd.f32 %v2081, %v2261
    %v2263 = vpop.f32.mrf.mxu0
    %v2264 = vpop.f32.mrf.mxu0
    %v2265 = vadd.f32 %v2081, %v2264
    %v2266 = vpop.f32.mrf.mxu0
    %2267 = vmatprep.mubr.bf16.mxu0 0
    %2268 = vmatmul.mubr.bf16.gmra.mxu0 %v2057
    %v2269 = vpop.f32.mrf.mxu0
    %v2270 = vadd.f32 %v2081, %v2269
    %v2271 = vpop.f32.mrf.mxu0
    %v2272 = vpop.f32.mrf.mxu0
    %v2273 = vadd.f32 %v2081, %v2272
    %v2274 = vpop.f32.mrf.mxu0
    %2275 = vmatprep.mubr.bf16.mxu0 0
    %2276 = vmatmul.mubr.bf16.gmra.mxu0 %v2058
    %v2277 = vpop.f32.mrf.mxu0
    %v2278 = vadd.f32 %v2081, %v2277
    %v2279 = vpop.f32.mrf.mxu0
    %v2280 = vpop.f32.mrf.mxu0
    %v2281 = vadd.f32 %v2081, %v2280
    %v2282 = vpop.f32.mrf.mxu0
    %2283 = vmatprep.mubr.bf16.mxu0 0
    %2284 = vmatmul.mubr.bf16.gmra.mxu0 %v2059
    %v2285 = vpop.f32.mrf.mxu0
    %v2286 = vadd.f32 %v2081, %v2285
    %v2287 = vpop.f32.mrf.mxu0
    %v2288 = vpop.f32.mrf.mxu0
    %v2289 = vadd.f32 %v2081, %v2288
    %v2290 = vpop.f32.mrf.mxu0
    %2291 = vdwg.mxu0
    %v2292 = vmax.f32 %v2166, 0.0
    %v2293 = vmax.f32 %v2169, 0.0
    %v2294 = vmax.f32 %v2174, 0.0
    %v2295 = vmax.f32 %v2177, 0.0
    %v2296 = vmax.f32 %v2182, 0.0
    %v2297 = vmax.f32 %v2185, 0.0
    %v2298 = vmax.f32 %v2190, 0.0
    %v2299 = vmax.f32 %v2193, 0.0
    %v2300 = vmax.f32 %v2198, 0.0
    %v2301 = vmax.f32 %v2201, 0.0
    %v2302 = vmax.f32 %v2206, 0.0
    %v2303 = vmax.f32 %v2209, 0.0
    %v2304 = vmax.f32 %v2214, 0.0
    %v2305 = vmax.f32 %v2217, 0.0
    %v2306 = vmax.f32 %v2222, 0.0
    %v2307 = vmax.f32 %v2225, 0.0
    %v2308 = vmax.f32 %v2230, 0.0
    %v2309 = vmax.f32 %v2233, 0.0
    %v2310 = vmax.f32 %v2238, 0.0
    %v2311 = vmax.f32 %v2241, 0.0
    %v2312 = vmax.f32 %v2246, 0.0
    %v2313 = vmax.f32 %v2249, 0.0
    %v2314 = vmax.f32 %v2254, 0.0
    %v2315 = vmax.f32 %v2257, 0.0
    %v2316 = vmax.f32 %v2262, 0.0
    %v2317 = vmax.f32 %v2265, 0.0
    %v2318 = vmax.f32 %v2270, 0.0
    %v2319 = vmax.f32 %v2273, 0.0
    %v2320 = vmax.f32 %v2278, 0.0
    %v2321 = vmax.f32 %v2281, 0.0
    %v2322 = vmax.f32 %v2286, 0.0
    %v2323 = vmax.f32 %v2289, 0.0
    %v2324 = vpack.c.bf16 %v2293, %v2292
    %v2325 = vpack.c.bf16 %v2295, %v2294
    %v2326 = vpack.c.bf16 %v2297, %v2296
    %v2327 = vpack.c.bf16 %v2299, %v2298
    %v2328 = vpack.c.bf16 %v2301, %v2300
    %v2329 = vpack.c.bf16 %v2303, %v2302
    %v2330 = vpack.c.bf16 %v2305, %v2304
    %v2331 = vpack.c.bf16 %v2307, %v2306
    %v2332 = vpack.c.bf16 %v2309, %v2308
    %v2333 = vpack.c.bf16 %v2311, %v2310
    %v2334 = vpack.c.bf16 %v2313, %v2312
    %v2335 = vpack.c.bf16 %v2315, %v2314
    %v2336 = vpack.c.bf16 %v2317, %v2316
    %v2337 = vpack.c.bf16 %v2319, %v2318
    %v2338 = vpack.c.bf16 %v2321, %v2320
    %v2339 = vpack.c.bf16 %v2323, %v2322
    %v2340 = vld [vmem:[%s9] sm:$0xf]
    %v2341 = vld [vmem:[%s9 + $0x4] sm:$0xf]
    %v2342 = vld [vmem:[%s9 + $0x8] sm:$0xf]
    %v2343 = vld [vmem:[%s9 + $0xc] sm:$0xf]
    %v2344 = vld [vmem:[%s9 + $0x10] sm:$0xf]
    %v2345 = vld [vmem:[%s9 + $0x14] sm:$0xf]
    %v2346 = vld [vmem:[%s9 + $0x18] sm:$0xf]
    %v2347 = vld [vmem:[%s9 + $0x1c] sm:$0xf]
    %v2348 = vld [vmem:[%s9 + $0x20] sm:$0xf]
    %v2349 = vld [vmem:[%s9 + $0x24] sm:$0xf]
    %v2350 = vld [vmem:[%s9 + $0x28] sm:$0xf]
    %v2351 = vld [vmem:[%s9 + $0x2c] sm:$0xf]
    %v2352 = vld [vmem:[%s9 + $0x30] sm:$0xf]
    %v2353 = vld [vmem:[%s9 + $0x34] sm:$0xf]
    %v2354 = vld [vmem:[%s9 + $0x38] sm:$0xf]
    %v2355 = vld [vmem:[%s9 + $0x3c] sm:$0xf]
    %v2356 = vld [vmem:[%s10] sm:$0x1]
    %v2358 = vlaneseq
    %v2359 = vshrl.u32 %v2358, 7
    %v2360 = vsub.s32 0, %v2359
    %v2361 = vrot.slane %v2356, %v2360
    %v2379 = vunpack.c.l.b16 %v2340
    %v2380 = vunpack.c.l.b16 %v2341
    %v2381 = vunpack.c.l.b16 %v2342
    %v2382 = vunpack.c.l.b16 %v2343
    %v2383 = vunpack.c.l.b16 %v2344
    %v2384 = vunpack.c.l.b16 %v2345
    %v2385 = vunpack.c.l.b16 %v2346
    %v2386 = vunpack.c.l.b16 %v2347
    %v2387 = vunpack.c.l.b16 %v2348
    %v2388 = vunpack.c.l.b16 %v2349
    %v2389 = vunpack.c.l.b16 %v2350
    %v2390 = vunpack.c.l.b16 %v2351
    %v2391 = vunpack.c.l.b16 %v2352
    %v2392 = vunpack.c.l.b16 %v2353
    %v2393 = vunpack.c.l.b16 %v2354
    %v2394 = vunpack.c.l.b16 %v2355
    %v2395 = vpack.c.b16 %v2380, %v2379
    %v2396 = vpack.c.b16 %v2382, %v2381
    %v2397 = vpack.c.b16 %v2384, %v2383
    %v2398 = vpack.c.b16 %v2386, %v2385
    %v2399 = vpack.c.b16 %v2388, %v2387
    %v2400 = vpack.c.b16 %v2390, %v2389
    %v2401 = vpack.c.b16 %v2392, %v2391
    %v2402 = vpack.c.b16 %v2394, %v2393
    %2411 = vmatprep.subr.bf16.mxu0 0
    %2412 = vmatpush1.bf16.msra.mxu0 %v2402
    %2413 = vmatprep.subr.bf16.mxu0 0
    %2414 = vmatpush1.bf16.msra.mxu0 %v2401
    %2415 = vmatprep.subr.bf16.mxu0 0
    %2416 = vmatpush1.bf16.msra.mxu0 %v2400
    %2417 = vmatprep.subr.bf16.mxu0 0
    %2418 = vmatpush1.bf16.msra.mxu0 %v2399
    %2419 = vmatprep.subr.bf16.mxu0 0
    %2420 = vmatpush1.bf16.msra.mxu0 %v2398
    %2421 = vmatprep.subr.bf16.mxu0 0
    %2422 = vmatpush1.bf16.msra.mxu0 %v2397
    %2423 = vmatprep.subr.bf16.mxu0 0
    %2424 = vmatpush1.bf16.msra.mxu0 %v2396
    %2425 = vmatprep.subr.bf16.mxu0 0
    %2426 = vmatpush1.bf16.msra.mxu0 %v2395
    %2427 = vmatprep.subr.bf16.mxu0 0
    %2428 = vmatpush2.bf16.msra.mxu0 0
    %2429 = vmatprep.subr.bf16.mxu0 0
    %2430 = vmatpush2.bf16.msra.mxu0 0
    %2431 = vmatprep.subr.bf16.mxu0 0
    %2432 = vmatpush2.bf16.msra.mxu0 0
    %2433 = vmatprep.subr.bf16.mxu0 0
    %2434 = vmatpush2.bf16.msra.mxu0 0
    %2435 = vmatprep.subr.bf16.mxu0 0
    %2436 = vmatpush2.bf16.msra.mxu0 0
    %2437 = vmatprep.subr.bf16.mxu0 0
    %2438 = vmatpush2.bf16.msra.mxu0 0
    %2439 = vmatprep.subr.bf16.mxu0 0
    %2440 = vmatpush2.bf16.msra.mxu0 0
    %2441 = vmatprep.subr.bf16.mxu0 0
    %2442 = vmatpush2.bf16.msra.mxu0 0
    %2443 = vmatprep.mubr.bf16.mxu0 0
    %2444 = vmatmul.mubr.bf16.gmra.mxu0 %v2324
    %v2445 = vpop.f32.mrf.mxu0
    %v2446 = vadd.f32 %v2361, %v2445
    %v2447 = vpop.f32.mrf.mxu0
    %v2448 = vpop.f32.mrf.mxu0
    %v2449 = vadd.f32 %v2361, %v2448
    %v2450 = vpop.f32.mrf.mxu0
    %2451 = vmatprep.mubr.bf16.mxu0 0
    %2452 = vmatmul.mubr.bf16.gmra.mxu0 %v2325
    %v2453 = vpop.f32.mrf.mxu0
    %v2454 = vadd.f32 %v2361, %v2453
    %v2455 = vpop.f32.mrf.mxu0
    %v2456 = vpop.f32.mrf.mxu0
    %v2457 = vadd.f32 %v2361, %v2456
    %v2458 = vpop.f32.mrf.mxu0
    %2459 = vmatprep.mubr.bf16.mxu0 0
    %2460 = vmatmul.mubr.bf16.gmra.mxu0 %v2326
    %v2461 = vpop.f32.mrf.mxu0
    %v2462 = vadd.f32 %v2361, %v2461
    %v2463 = vpop.f32.mrf.mxu0
    %v2464 = vpop.f32.mrf.mxu0
    %v2465 = vadd.f32 %v2361, %v2464
    %v2466 = vpop.f32.mrf.mxu0
    %2467 = vmatprep.mubr.bf16.mxu0 0
    %2468 = vmatmul.mubr.bf16.gmra.mxu0 %v2327
    %v2469 = vpop.f32.mrf.mxu0
    %v2470 = vadd.f32 %v2361, %v2469
    %v2471 = vpop.f32.mrf.mxu0
    %v2472 = vpop.f32.mrf.mxu0
    %v2473 = vadd.f32 %v2361, %v2472
    %v2474 = vpop.f32.mrf.mxu0
    %2475 = vmatprep.mubr.bf16.mxu0 0
    %2476 = vmatmul.mubr.bf16.gmra.mxu0 %v2328
    %v2477 = vpop.f32.mrf.mxu0
    %v2478 = vadd.f32 %v2361, %v2477
    %v2479 = vpop.f32.mrf.mxu0
    %v2480 = vpop.f32.mrf.mxu0
    %v2481 = vadd.f32 %v2361, %v2480
    %v2482 = vpop.f32.mrf.mxu0
    %2483 = vmatprep.mubr.bf16.mxu0 0
    %2484 = vmatmul.mubr.bf16.gmra.mxu0 %v2329
    %v2485 = vpop.f32.mrf.mxu0
    %v2486 = vadd.f32 %v2361, %v2485
    %v2487 = vpop.f32.mrf.mxu0
    %v2488 = vpop.f32.mrf.mxu0
    %v2489 = vadd.f32 %v2361, %v2488
    %v2490 = vpop.f32.mrf.mxu0
    %2491 = vmatprep.mubr.bf16.mxu0 0
    %2492 = vmatmul.mubr.bf16.gmra.mxu0 %v2330
    %v2493 = vpop.f32.mrf.mxu0
    %v2494 = vadd.f32 %v2361, %v2493
    %v2495 = vpop.f32.mrf.mxu0
    %v2496 = vpop.f32.mrf.mxu0
    %v2497 = vadd.f32 %v2361, %v2496
    %v2498 = vpop.f32.mrf.mxu0
    %2499 = vmatprep.mubr.bf16.mxu0 0
    %2500 = vmatmul.mubr.bf16.gmra.mxu0 %v2331
    %v2501 = vpop.f32.mrf.mxu0
    %v2502 = vadd.f32 %v2361, %v2501
    %v2503 = vpop.f32.mrf.mxu0
    %v2504 = vpop.f32.mrf.mxu0
    %v2505 = vadd.f32 %v2361, %v2504
    %v2506 = vpop.f32.mrf.mxu0
    %2507 = vmatprep.mubr.bf16.mxu0 0
    %2508 = vmatmul.mubr.bf16.gmra.mxu0 %v2332
    %v2509 = vpop.f32.mrf.mxu0
    %v2510 = vadd.f32 %v2361, %v2509
    %v2511 = vpop.f32.mrf.mxu0
    %v2512 = vpop.f32.mrf.mxu0
    %v2513 = vadd.f32 %v2361, %v2512
    %v2514 = vpop.f32.mrf.mxu0
    %2515 = vmatprep.mubr.bf16.mxu0 0
    %2516 = vmatmul.mubr.bf16.gmra.mxu0 %v2333
    %v2517 = vpop.f32.mrf.mxu0
    %v2518 = vadd.f32 %v2361, %v2517
    %v2519 = vpop.f32.mrf.mxu0
    %v2520 = vpop.f32.mrf.mxu0
    %v2521 = vadd.f32 %v2361, %v2520
    %v2522 = vpop.f32.mrf.mxu0
    %2523 = vmatprep.mubr.bf16.mxu0 0
    %2524 = vmatmul.mubr.bf16.gmra.mxu0 %v2334
    %v2525 = vpop.f32.mrf.mxu0
    %v2526 = vadd.f32 %v2361, %v2525
    %v2527 = vpop.f32.mrf.mxu0
    %v2528 = vpop.f32.mrf.mxu0
    %v2529 = vadd.f32 %v2361, %v2528
    %v2530 = vpop.f32.mrf.mxu0
    %2531 = vmatprep.mubr.bf16.mxu0 0
    %2532 = vmatmul.mubr.bf16.gmra.mxu0 %v2335
    %v2533 = vpop.f32.mrf.mxu0
    %v2534 = vadd.f32 %v2361, %v2533
    %v2535 = vpop.f32.mrf.mxu0
    %v2536 = vpop.f32.mrf.mxu0
    %v2537 = vadd.f32 %v2361, %v2536
    %v2538 = vpop.f32.mrf.mxu0
    %2539 = vmatprep.mubr.bf16.mxu0 0
    %2540 = vmatmul.mubr.bf16.gmra.mxu0 %v2336
    %v2541 = vpop.f32.mrf.mxu0
    %v2542 = vadd.f32 %v2361, %v2541
    %v2543 = vpop.f32.mrf.mxu0
    %v2544 = vpop.f32.mrf.mxu0
    %v2545 = vadd.f32 %v2361, %v2544
    %v2546 = vpop.f32.mrf.mxu0
    %2547 = vmatprep.mubr.bf16.mxu0 0
    %2548 = vmatmul.mubr.bf16.gmra.mxu0 %v2337
    %v2549 = vpop.f32.mrf.mxu0
    %v2550 = vadd.f32 %v2361, %v2549
    %v2551 = vpop.f32.mrf.mxu0
    %v2552 = vpop.f32.mrf.mxu0
    %v2553 = vadd.f32 %v2361, %v2552
    %v2554 = vpop.f32.mrf.mxu0
    %2555 = vmatprep.mubr.bf16.mxu0 0
    %2556 = vmatmul.mubr.bf16.gmra.mxu0 %v2338
    %v2557 = vpop.f32.mrf.mxu0
    %v2558 = vadd.f32 %v2361, %v2557
    %v2559 = vpop.f32.mrf.mxu0
    %v2560 = vpop.f32.mrf.mxu0
    %v2561 = vadd.f32 %v2361, %v2560
    %v2562 = vpop.f32.mrf.mxu0
    %2563 = vmatprep.mubr.bf16.mxu0 0
    %2564 = vmatmul.mubr.bf16.gmra.mxu0 %v2339
    %v2565 = vpop.f32.mrf.mxu0
    %v2566 = vadd.f32 %v2361, %v2565
    %v2567 = vpop.f32.mrf.mxu0
    %v2568 = vpop.f32.mrf.mxu0
    %v2569 = vadd.f32 %v2361, %v2568
    %v2570 = vpop.f32.mrf.mxu0
    %2571 = vdwg.mxu0
    %v2572 = vmax.f32 %v2446, 0.0
    %v2573 = vmax.f32 %v2449, 0.0
    %v2574 = vmax.f32 %v2454, 0.0
    %v2575 = vmax.f32 %v2457, 0.0
    %v2576 = vmax.f32 %v2462, 0.0
    %v2577 = vmax.f32 %v2465, 0.0
    %v2578 = vmax.f32 %v2470, 0.0
    %v2579 = vmax.f32 %v2473, 0.0
    %v2580 = vmax.f32 %v2478, 0.0
    %v2581 = vmax.f32 %v2481, 0.0
    %v2582 = vmax.f32 %v2486, 0.0
    %v2583 = vmax.f32 %v2489, 0.0
    %v2584 = vmax.f32 %v2494, 0.0
    %v2585 = vmax.f32 %v2497, 0.0
    %v2586 = vmax.f32 %v2502, 0.0
    %v2587 = vmax.f32 %v2505, 0.0
    %v2588 = vmax.f32 %v2510, 0.0
    %v2589 = vmax.f32 %v2513, 0.0
    %v2590 = vmax.f32 %v2518, 0.0
    %v2591 = vmax.f32 %v2521, 0.0
    %v2592 = vmax.f32 %v2526, 0.0
    %v2593 = vmax.f32 %v2529, 0.0
    %v2594 = vmax.f32 %v2534, 0.0
    %v2595 = vmax.f32 %v2537, 0.0
    %v2596 = vmax.f32 %v2542, 0.0
    %v2597 = vmax.f32 %v2545, 0.0
    %v2598 = vmax.f32 %v2550, 0.0
    %v2599 = vmax.f32 %v2553, 0.0
    %v2600 = vmax.f32 %v2558, 0.0
    %v2601 = vmax.f32 %v2561, 0.0
    %v2602 = vmax.f32 %v2566, 0.0
    %v2603 = vmax.f32 %v2569, 0.0
    %v2604 = vpack.c.bf16 %v2573, %v2572
    %v2605 = vpack.c.bf16 %v2575, %v2574
    %v2606 = vpack.c.bf16 %v2577, %v2576
    %v2607 = vpack.c.bf16 %v2579, %v2578
    %v2608 = vpack.c.bf16 %v2581, %v2580
    %v2609 = vpack.c.bf16 %v2583, %v2582
    %v2610 = vpack.c.bf16 %v2585, %v2584
    %v2611 = vpack.c.bf16 %v2587, %v2586
    %v2612 = vpack.c.bf16 %v2589, %v2588
    %v2613 = vpack.c.bf16 %v2591, %v2590
    %v2614 = vpack.c.bf16 %v2593, %v2592
    %v2615 = vpack.c.bf16 %v2595, %v2594
    %v2616 = vpack.c.bf16 %v2597, %v2596
    %v2617 = vpack.c.bf16 %v2599, %v2598
    %v2618 = vpack.c.bf16 %v2601, %v2600
    %v2619 = vpack.c.bf16 %v2603, %v2602
    %v2620 = vld [vmem:[#allocation8] sm:$0xf]
    %v2621 = vld [vmem:[#allocation8 + $0x4] sm:$0xf]
    %v2622 = vld [vmem:[#allocation8 + $0x8] sm:$0xf]
    %v2623 = vld [vmem:[#allocation8 + $0xc] sm:$0xf]
    %v2624 = vld [vmem:[#allocation8 + $0x10] sm:$0xf]
    %v2625 = vld [vmem:[#allocation8 + $0x14] sm:$0xf]
    %v2626 = vld [vmem:[#allocation8 + $0x18] sm:$0xf]
    %v2627 = vld [vmem:[#allocation8 + $0x1c] sm:$0xf]
    %v2628 = vld [vmem:[#allocation8 + $0x20] sm:$0xf]
    %v2629 = vld [vmem:[#allocation8 + $0x24] sm:$0xf]
    %v2630 = vld [vmem:[#allocation8 + $0x28] sm:$0xf]
    %v2631 = vld [vmem:[#allocation8 + $0x2c] sm:$0xf]
    %v2632 = vld [vmem:[#allocation8 + $0x30] sm:$0xf]
    %v2633 = vld [vmem:[#allocation8 + $0x34] sm:$0xf]
    %v2634 = vld [vmem:[#allocation8 + $0x38] sm:$0xf]
    %v2635 = vld [vmem:[#allocation8 + $0x3c] sm:$0xf]
    %v2636 = vld [vmem:[%s12] sm:$0x1]
    %v2638 = vlaneseq
    %v2639 = vshrl.u32 %v2638, 7
    %v2640 = vsub.s32 0, %v2639
    %v2641 = vrot.slane %v2636, %v2640
    %v2659 = vunpack.c.l.b16 %v2620
    %v2660 = vunpack.c.l.b16 %v2621
    %v2661 = vunpack.c.l.b16 %v2622
    %v2662 = vunpack.c.l.b16 %v2623
    %v2663 = vunpack.c.l.b16 %v2624
    %v2664 = vunpack.c.l.b16 %v2625
    %v2665 = vunpack.c.l.b16 %v2626
    %v2666 = vunpack.c.l.b16 %v2627
    %v2667 = vunpack.c.l.b16 %v2628
    %v2668 = vunpack.c.l.b16 %v2629
    %v2669 = vunpack.c.l.b16 %v2630
    %v2670 = vunpack.c.l.b16 %v2631
    %v2671 = vunpack.c.l.b16 %v2632
    %v2672 = vunpack.c.l.b16 %v2633
    %v2673 = vunpack.c.l.b16 %v2634
    %v2674 = vunpack.c.l.b16 %v2635
    %v2675 = vpack.c.b16 %v2660, %v2659
    %v2676 = vpack.c.b16 %v2662, %v2661
    %v2677 = vpack.c.b16 %v2664, %v2663
    %v2678 = vpack.c.b16 %v2666, %v2665
    %v2679 = vpack.c.b16 %v2668, %v2667
    %v2680 = vpack.c.b16 %v2670, %v2669
    %v2681 = vpack.c.b16 %v2672, %v2671
    %v2682 = vpack.c.b16 %v2674, %v2673
    %2691 = vmatprep.subr.bf16.mxu0 0
    %2692 = vmatpush1.bf16.msra.mxu0 %v2682
    %2693 = vmatprep.subr.bf16.mxu0 0
    %2694 = vmatpush1.bf16.msra.mxu0 %v2681
    %2695 = vmatprep.subr.bf16.mxu0 0
    %2696 = vmatpush1.bf16.msra.mxu0 %v2680
    %2697 = vmatprep.subr.bf16.mxu0 0
    %2698 = vmatpush1.bf16.msra.mxu0 %v2679
    %2699 = vmatprep.subr.bf16.mxu0 0
    %2700 = vmatpush1.bf16.msra.mxu0 %v2678
    %2701 = vmatprep.subr.bf16.mxu0 0
    %2702 = vmatpush1.bf16.msra.mxu0 %v2677
    %2703 = vmatprep.subr.bf16.mxu0 0
    %2704 = vmatpush1.bf16.msra.mxu0 %v2676
    %2705 = vmatprep.subr.bf16.mxu0 0
    %2706 = vmatpush1.bf16.msra.mxu0 %v2675
    %2707 = vmatprep.subr.bf16.mxu0 0
    %2708 = vmatpush2.bf16.msra.mxu0 0
    %2709 = vmatprep.subr.bf16.mxu0 0
    %2710 = vmatpush2.bf16.msra.mxu0 0
    %2711 = vmatprep.subr.bf16.mxu0 0
    %2712 = vmatpush2.bf16.msra.mxu0 0
    %2713 = vmatprep.subr.bf16.mxu0 0
    %2714 = vmatpush2.bf16.msra.mxu0 0
    %2715 = vmatprep.subr.bf16.mxu0 0
    %2716 = vmatpush2.bf16.msra.mxu0 0
    %2717 = vmatprep.subr.bf16.mxu0 0
    %2718 = vmatpush2.bf16.msra.mxu0 0
    %2719 = vmatprep.subr.bf16.mxu0 0
    %2720 = vmatpush2.bf16.msra.mxu0 0
    %2721 = vmatprep.subr.bf16.mxu0 0
    %2722 = vmatpush2.bf16.msra.mxu0 0
    %2723 = vmatprep.mubr.bf16.mxu0 0
    %2724 = vmatmul.mubr.bf16.gmra.mxu0 %v2604
    %v2725 = vpop.f32.mrf.mxu0
    %v2726 = vadd.f32 %v2641, %v2725
    %v2727 = vpop.f32.mrf.mxu0
    %v2728 = vpop.f32.mrf.mxu0
    %v2729 = vadd.f32 %v2641, %v2728
    %v2730 = vpop.f32.mrf.mxu0
    %2731 = vmatprep.mubr.bf16.mxu0 0
    %2732 = vmatmul.mubr.bf16.gmra.mxu0 %v2605
    %v2733 = vpop.f32.mrf.mxu0
    %v2734 = vadd.f32 %v2641, %v2733
    %v2735 = vpop.f32.mrf.mxu0
    %v2736 = vpop.f32.mrf.mxu0
    %v2737 = vadd.f32 %v2641, %v2736
    %v2738 = vpop.f32.mrf.mxu0
    %2739 = vmatprep.mubr.bf16.mxu0 0
    %2740 = vmatmul.mubr.bf16.gmra.mxu0 %v2606
    %v2741 = vpop.f32.mrf.mxu0
    %v2742 = vadd.f32 %v2641, %v2741
    %v2743 = vpop.f32.mrf.mxu0
    %v2744 = vpop.f32.mrf.mxu0
    %v2745 = vadd.f32 %v2641, %v2744
    %v2746 = vpop.f32.mrf.mxu0
    %2747 = vmatprep.mubr.bf16.mxu0 0
    %2748 = vmatmul.mubr.bf16.gmra.mxu0 %v2607
    %v2749 = vpop.f32.mrf.mxu0
    %v2750 = vadd.f32 %v2641, %v2749
    %v2751 = vpop.f32.mrf.mxu0
    %v2752 = vpop.f32.mrf.mxu0
    %v2753 = vadd.f32 %v2641, %v2752
    %v2754 = vpop.f32.mrf.mxu0
    %2755 = vmatprep.mubr.bf16.mxu0 0
    %2756 = vmatmul.mubr.bf16.gmra.mxu0 %v2608
    %v2757 = vpop.f32.mrf.mxu0
    %v2758 = vadd.f32 %v2641, %v2757
    %v2759 = vpop.f32.mrf.mxu0
    %v2760 = vpop.f32.mrf.mxu0
    %v2761 = vadd.f32 %v2641, %v2760
    %v2762 = vpop.f32.mrf.mxu0
    %2763 = vmatprep.mubr.bf16.mxu0 0
    %2764 = vmatmul.mubr.bf16.gmra.mxu0 %v2609
    %v2765 = vpop.f32.mrf.mxu0
    %v2766 = vadd.f32 %v2641, %v2765
    %v2767 = vpop.f32.mrf.mxu0
    %v2768 = vpop.f32.mrf.mxu0
    %v2769 = vadd.f32 %v2641, %v2768
    %v2770 = vpop.f32.mrf.mxu0
    %2771 = vmatprep.mubr.bf16.mxu0 0
    %2772 = vmatmul.mubr.bf16.gmra.mxu0 %v2610
    %v2773 = vpop.f32.mrf.mxu0
    %v2774 = vadd.f32 %v2641, %v2773
    %v2775 = vpop.f32.mrf.mxu0
    %v2776 = vpop.f32.mrf.mxu0
    %v2777 = vadd.f32 %v2641, %v2776
    %v2778 = vpop.f32.mrf.mxu0
    %2779 = vmatprep.mubr.bf16.mxu0 0
    %2780 = vmatmul.mubr.bf16.gmra.mxu0 %v2611
    %v2781 = vpop.f32.mrf.mxu0
    %v2782 = vadd.f32 %v2641, %v2781
    %v2783 = vpop.f32.mrf.mxu0
    %v2784 = vpop.f32.mrf.mxu0
    %v2785 = vadd.f32 %v2641, %v2784
    %v2786 = vpop.f32.mrf.mxu0
    %2787 = vmatprep.mubr.bf16.mxu0 0
    %2788 = vmatmul.mubr.bf16.gmra.mxu0 %v2612
    %v2789 = vpop.f32.mrf.mxu0
    %v2790 = vadd.f32 %v2641, %v2789
    %v2791 = vpop.f32.mrf.mxu0
    %v2792 = vpop.f32.mrf.mxu0
    %v2793 = vadd.f32 %v2641, %v2792
    %v2794 = vpop.f32.mrf.mxu0
    %2795 = vmatprep.mubr.bf16.mxu0 0
    %2796 = vmatmul.mubr.bf16.gmra.mxu0 %v2613
    %v2797 = vpop.f32.mrf.mxu0
    %v2798 = vadd.f32 %v2641, %v2797
    %v2799 = vpop.f32.mrf.mxu0
    %v2800 = vpop.f32.mrf.mxu0
    %v2801 = vadd.f32 %v2641, %v2800
    %v2802 = vpop.f32.mrf.mxu0
    %2803 = vmatprep.mubr.bf16.mxu0 0
    %2804 = vmatmul.mubr.bf16.gmra.mxu0 %v2614
    %v2805 = vpop.f32.mrf.mxu0
    %v2806 = vadd.f32 %v2641, %v2805
    %v2807 = vpop.f32.mrf.mxu0
    %v2808 = vpop.f32.mrf.mxu0
    %v2809 = vadd.f32 %v2641, %v2808
    %v2810 = vpop.f32.mrf.mxu0
    %2811 = vmatprep.mubr.bf16.mxu0 0
    %2812 = vmatmul.mubr.bf16.gmra.mxu0 %v2615
    %v2813 = vpop.f32.mrf.mxu0
    %v2814 = vadd.f32 %v2641, %v2813
    %v2815 = vpop.f32.mrf.mxu0
    %v2816 = vpop.f32.mrf.mxu0
    %v2817 = vadd.f32 %v2641, %v2816
    %v2818 = vpop.f32.mrf.mxu0
    %2819 = vmatprep.mubr.bf16.mxu0 0
    %2820 = vmatmul.mubr.bf16.gmra.mxu0 %v2616
    %v2821 = vpop.f32.mrf.mxu0
    %v2822 = vadd.f32 %v2641, %v2821
    %v2823 = vpop.f32.mrf.mxu0
    %v2824 = vpop.f32.mrf.mxu0
    %v2825 = vadd.f32 %v2641, %v2824
    %v2826 = vpop.f32.mrf.mxu0
    %2827 = vmatprep.mubr.bf16.mxu0 0
    %2828 = vmatmul.mubr.bf16.gmra.mxu0 %v2617
    %v2829 = vpop.f32.mrf.mxu0
    %v2830 = vadd.f32 %v2641, %v2829
    %v2831 = vpop.f32.mrf.mxu0
    %v2832 = vpop.f32.mrf.mxu0
    %v2833 = vadd.f32 %v2641, %v2832
    %v2834 = vpop.f32.mrf.mxu0
    %2835 = vmatprep.mubr.bf16.mxu0 0
    %2836 = vmatmul.mubr.bf16.gmra.mxu0 %v2618
    %v2837 = vpop.f32.mrf.mxu0
    %v2838 = vadd.f32 %v2641, %v2837
    %v2839 = vpop.f32.mrf.mxu0
    %v2840 = vpop.f32.mrf.mxu0
    %v2841 = vadd.f32 %v2641, %v2840
    %v2842 = vpop.f32.mrf.mxu0
    %2843 = vmatprep.mubr.bf16.mxu0 0
    %2844 = vmatmul.mubr.bf16.gmra.mxu0 %v2619
    %v2845 = vpop.f32.mrf.mxu0
    %v2846 = vadd.f32 %v2641, %v2845
    %v2847 = vpop.f32.mrf.mxu0
    %v2848 = vpop.f32.mrf.mxu0
    %v2849 = vadd.f32 %v2641, %v2848
    %v2850 = vpop.f32.mrf.mxu0
    %2851 = vdwg.mxu0
    %v2852 = vmax.f32 %v2726, 0.0
    %v2853 = vmax.f32 %v2729, 0.0
    %v2854 = vmax.f32 %v2734, 0.0
    %v2855 = vmax.f32 %v2737, 0.0
    %v2856 = vmax.f32 %v2742, 0.0
    %v2857 = vmax.f32 %v2745, 0.0
    %v2858 = vmax.f32 %v2750, 0.0
    %v2859 = vmax.f32 %v2753, 0.0
    %v2860 = vmax.f32 %v2758, 0.0
    %v2861 = vmax.f32 %v2761, 0.0
    %v2862 = vmax.f32 %v2766, 0.0
    %v2863 = vmax.f32 %v2769, 0.0
    %v2864 = vmax.f32 %v2774, 0.0
    %v2865 = vmax.f32 %v2777, 0.0
    %v2866 = vmax.f32 %v2782, 0.0
    %v2867 = vmax.f32 %v2785, 0.0
    %v2868 = vmax.f32 %v2790, 0.0
    %v2869 = vmax.f32 %v2793, 0.0
    %v2870 = vmax.f32 %v2798, 0.0
    %v2871 = vmax.f32 %v2801, 0.0
    %v2872 = vmax.f32 %v2806, 0.0
    %v2873 = vmax.f32 %v2809, 0.0
    %v2874 = vmax.f32 %v2814, 0.0
    %v2875 = vmax.f32 %v2817, 0.0
    %v2876 = vmax.f32 %v2822, 0.0
    %v2877 = vmax.f32 %v2825, 0.0
    %v2878 = vmax.f32 %v2830, 0.0
    %v2879 = vmax.f32 %v2833, 0.0
    %v2880 = vmax.f32 %v2838, 0.0
    %v2881 = vmax.f32 %v2841, 0.0
    %v2882 = vmax.f32 %v2846, 0.0
    %v2883 = vmax.f32 %v2849, 0.0
    %v2884 = vld [vmem:[%s13] sm:$0x1]
    %v2886 = vlaneseq
    %v2887 = vshrl.u32 %v2886, 7
    %v2888 = vsub.s32 0, %v2887
    %v2889 = vrot.slane %v2884, %v2888
    %v2891 = vmul.f32 %v2852, %v2889
    %v2892 = vmul.f32 %v2853, %v2889
    %v2893 = vmul.f32 %v2854, %v2889
    %v2894 = vmul.f32 %v2855, %v2889
    %v2895 = vmul.f32 %v2856, %v2889
    %v2896 = vmul.f32 %v2857, %v2889
    %v2897 = vmul.f32 %v2858, %v2889
    %v2898 = vmul.f32 %v2859, %v2889
    %v2899 = vmul.f32 %v2860, %v2889
    %v2900 = vmul.f32 %v2861, %v2889
    %v2901 = vmul.f32 %v2862, %v2889
    %v2902 = vmul.f32 %v2863, %v2889
    %v2903 = vmul.f32 %v2864, %v2889
    %v2904 = vmul.f32 %v2865, %v2889
    %v2905 = vmul.f32 %v2866, %v2889
    %v2906 = vmul.f32 %v2867, %v2889
    %v2907 = vmul.f32 %v2868, %v2889
    %v2908 = vmul.f32 %v2869, %v2889
    %v2909 = vmul.f32 %v2870, %v2889
    %v2910 = vmul.f32 %v2871, %v2889
    %v2911 = vmul.f32 %v2872, %v2889
    %v2912 = vmul.f32 %v2873, %v2889
    %v2913 = vmul.f32 %v2874, %v2889
    %v2914 = vmul.f32 %v2875, %v2889
    %v2915 = vmul.f32 %v2876, %v2889
    %v2916 = vmul.f32 %v2877, %v2889
    %v2917 = vmul.f32 %v2878, %v2889
    %v2918 = vmul.f32 %v2879, %v2889
    %v2919 = vmul.f32 %v2880, %v2889
    %v2920 = vmul.f32 %v2881, %v2889
    %v2921 = vmul.f32 %v2882, %v2889
    %v2922 = vmul.f32 %v2883, %v2889
    %2923 = vadd.xlane.f32.xlu0 %v2891
    %v2924 = vpop.xlane.xlu0 %2923
    %2925 = vadd.xlane.f32.xlu0 %v2892
    %v2926 = vpop.xlane.xlu0 %2925
    %2927 = vadd.xlane.f32.xlu0 %v2893
    %v2928 = vpop.xlane.xlu0 %2927
    %2929 = vadd.xlane.f32.xlu0 %v2894
    %v2930 = vpop.xlane.xlu0 %2929
    %2931 = vadd.xlane.f32.xlu0 %v2895
    %v2932 = vpop.xlane.xlu0 %2931
    %2933 = vadd.xlane.f32.xlu0 %v2896
    %v2934 = vpop.xlane.xlu0 %2933
    %2935 = vadd.xlane.f32.xlu0 %v2897
    %v2936 = vpop.xlane.xlu0 %2935
    %2937 = vadd.xlane.f32.xlu0 %v2898
    %v2938 = vpop.xlane.xlu0 %2937
    %2939 = vadd.xlane.f32.xlu0 %v2899
    %v2940 = vpop.xlane.xlu0 %2939
    %2941 = vadd.xlane.f32.xlu0 %v2900
    %v2942 = vpop.xlane.xlu0 %2941
    %2943 = vadd.xlane.f32.xlu0 %v2901
    %v2944 = vpop.xlane.xlu0 %2943
    %2945 = vadd.xlane.f32.xlu0 %v2902
    %v2946 = vpop.xlane.xlu0 %2945
    %2947 = vadd.xlane.f32.xlu0 %v2903
    %v2948 = vpop.xlane.xlu0 %2947
    %2949 = vadd.xlane.f32.xlu0 %v2904
    %v2950 = vpop.xlane.xlu0 %2949
    %2951 = vadd.xlane.f32.xlu0 %v2905
    %v2952 = vpop.xlane.xlu0 %2951
    %2953 = vadd.xlane.f32.xlu0 %v2906
    %v2954 = vpop.xlane.xlu0 %2953
    %2955 = vadd.xlane.f32.xlu0 %v2907
    %v2956 = vpop.xlane.xlu0 %2955
    %2957 = vadd.xlane.f32.xlu0 %v2908
    %v2958 = vpop.xlane.xlu0 %2957
    %2959 = vadd.xlane.f32.xlu0 %v2909
    %v2960 = vpop.xlane.xlu0 %2959
    %2961 = vadd.xlane.f32.xlu0 %v2910
    %v2962 = vpop.xlane.xlu0 %2961
    %2963 = vadd.xlane.f32.xlu0 %v2911
    %v2964 = vpop.xlane.xlu0 %2963
    %2965 = vadd.xlane.f32.xlu0 %v2912
    %v2966 = vpop.xlane.xlu0 %2965
    %2967 = vadd.xlane.f32.xlu0 %v2913
    %v2968 = vpop.xlane.xlu0 %2967
    %2969 = vadd.xlane.f32.xlu0 %v2914
    %v2970 = vpop.xlane.xlu0 %2969
    %2971 = vadd.xlane.f32.xlu0 %v2915
    %v2972 = vpop.xlane.xlu0 %2971
    %2973 = vadd.xlane.f32.xlu0 %v2916
    %v2974 = vpop.xlane.xlu0 %2973
    %2975 = vadd.xlane.f32.xlu0 %v2917
    %v2976 = vpop.xlane.xlu0 %2975
    %2977 = vadd.xlane.f32.xlu0 %v2918
    %v2978 = vpop.xlane.xlu0 %2977
    %2979 = vadd.xlane.f32.xlu0 %v2919
    %v2980 = vpop.xlane.xlu0 %2979
    %2981 = vadd.xlane.f32.xlu0 %v2920
    %v2982 = vpop.xlane.xlu0 %2981
    %2983 = vadd.xlane.f32.xlu0 %v2921
    %v2984 = vpop.xlane.xlu0 %2983
    %2985 = vadd.xlane.f32.xlu0 %v2922
    %v2986 = vpop.xlane.xlu0 %2985
    %v2987 = vld [vmem:[#allocation2] sm:$0x1]
    %2989 = vset.pattern.permute.xlu0 0
    %2990 = vperm.xlu0 %2989, %v2987
    %v2991 = vpop.permute.xlu0 %2990
    %v2993 = vlaneseq
    %v2994 = vshrl.u32 %v2993, 7
    %v2995 = vsub.s32 0, %v2994
    %v2996 = vrot.slane %v2991, %v2995
    %v2997 = vadd.f32 %v2924, %v2996
    %v2998 = vadd.f32 %v2926, %v2996
    %v2999 = vadd.f32 %v2928, %v2996
    %v3000 = vadd.f32 %v2930, %v2996
    %v3001 = vadd.f32 %v2932, %v2996
    %v3002 = vadd.f32 %v2934, %v2996
    %v3003 = vadd.f32 %v2936, %v2996
    %v3004 = vadd.f32 %v2938, %v2996
    %v3005 = vadd.f32 %v2940, %v2996
    %v3006 = vadd.f32 %v2942, %v2996
    %v3007 = vadd.f32 %v2944, %v2996
    %v3008 = vadd.f32 %v2946, %v2996
    %v3009 = vadd.f32 %v2948, %v2996
    %v3010 = vadd.f32 %v2950, %v2996
    %v3011 = vadd.f32 %v2952, %v2996
    %v3012 = vadd.f32 %v2954, %v2996
    %v3013 = vadd.f32 %v2956, %v2996
    %v3014 = vadd.f32 %v2958, %v2996
    %v3015 = vadd.f32 %v2960, %v2996
    %v3016 = vadd.f32 %v2962, %v2996
    %v3017 = vadd.f32 %v2964, %v2996
    %v3018 = vadd.f32 %v2966, %v2996
    %v3019 = vadd.f32 %v2968, %v2996
    %v3020 = vadd.f32 %v2970, %v2996
    %v3021 = vadd.f32 %v2972, %v2996
    %v3022 = vadd.f32 %v2974, %v2996
    %v3023 = vadd.f32 %v2976, %v2996
    %v3024 = vadd.f32 %v2978, %v2996
    %v3025 = vadd.f32 %v2980, %v2996
    %v3026 = vadd.f32 %v2982, %v2996
    %v3027 = vadd.f32 %v2984, %v2996
    %v3028 = vadd.f32 %v2986, %v2996
    %v3061 = vlaneseq
    %v3062 = vshrl.u32 %v3061, 7
    %v3063 = vsub.s32 0, %v3062
    %v3064 = vrot.slane %v2997, %v3063
    %v3065 = vlaneseq
    %v3066 = vshrl.u32 %v3065, 7
    %v3067 = vsub.s32 1, %v3066
    %v3068 = vrot.slane %v2997, %v3067
    %v3069 = vlaneseq
    %v3070 = vshrl.u32 %v3069, 7
    %v3071 = vsub.s32 2, %v3070
    %v3072 = vrot.slane %v2997, %v3071
    %v3073 = vlaneseq
    %v3074 = vshrl.u32 %v3073, 7
    %v3075 = vsub.s32 3, %v3074
    %v3076 = vrot.slane %v2997, %v3075
    %v3077 = vlaneseq
    %v3078 = vshrl.u32 %v3077, 7
    %v3079 = vsub.s32 4, %v3078
    %v3080 = vrot.slane %v2997, %v3079
    %v3081 = vlaneseq
    %v3082 = vshrl.u32 %v3081, 7
    %v3083 = vsub.s32 5, %v3082
    %v3084 = vrot.slane %v2997, %v3083
    %v3085 = vlaneseq
    %v3086 = vshrl.u32 %v3085, 7
    %v3087 = vsub.s32 6, %v3086
    %v3088 = vrot.slane %v2997, %v3087
    %v3089 = vlaneseq
    %v3090 = vshrl.u32 %v3089, 7
    %v3091 = vsub.s32 7, %v3090
    %v3092 = vrot.slane %v2997, %v3091
    %v3093 = vlaneseq
    %v3094 = vshrl.u32 %v3093, 7
    %v3095 = vsub.s32 0, %v3094
    %v3096 = vrot.slane %v2998, %v3095
    %v3097 = vlaneseq
    %v3098 = vshrl.u32 %v3097, 7
    %v3099 = vsub.s32 1, %v3098
    %v3100 = vrot.slane %v2998, %v3099
    %v3101 = vlaneseq
    %v3102 = vshrl.u32 %v3101, 7
    %v3103 = vsub.s32 2, %v3102
    %v3104 = vrot.slane %v2998, %v3103
    %v3105 = vlaneseq
    %v3106 = vshrl.u32 %v3105, 7
    %v3107 = vsub.s32 3, %v3106
    %v3108 = vrot.slane %v2998, %v3107
    %v3109 = vlaneseq
    %v3110 = vshrl.u32 %v3109, 7
    %v3111 = vsub.s32 4, %v3110
    %v3112 = vrot.slane %v2998, %v3111
    %v3113 = vlaneseq
    %v3114 = vshrl.u32 %v3113, 7
    %v3115 = vsub.s32 5, %v3114
    %v3116 = vrot.slane %v2998, %v3115
    %v3117 = vlaneseq
    %v3118 = vshrl.u32 %v3117, 7
    %v3119 = vsub.s32 6, %v3118
    %v3120 = vrot.slane %v2998, %v3119
    %v3121 = vlaneseq
    %v3122 = vshrl.u32 %v3121, 7
    %v3123 = vsub.s32 7, %v3122
    %v3124 = vrot.slane %v2998, %v3123
    %v3125 = vlaneseq
    %v3126 = vshrl.u32 %v3125, 7
    %v3127 = vsub.s32 0, %v3126
    %v3128 = vrot.slane %v2999, %v3127
    %v3129 = vlaneseq
    %v3130 = vshrl.u32 %v3129, 7
    %v3131 = vsub.s32 1, %v3130
    %v3132 = vrot.slane %v2999, %v3131
    %v3133 = vlaneseq
    %v3134 = vshrl.u32 %v3133, 7
    %v3135 = vsub.s32 2, %v3134
    %v3136 = vrot.slane %v2999, %v3135
    %v3137 = vlaneseq
    %v3138 = vshrl.u32 %v3137, 7
    %v3139 = vsub.s32 3, %v3138
    %v3140 = vrot.slane %v2999, %v3139
    %v3141 = vlaneseq
    %v3142 = vshrl.u32 %v3141, 7
    %v3143 = vsub.s32 4, %v3142
    %v3144 = vrot.slane %v2999, %v3143
    %v3145 = vlaneseq
    %v3146 = vshrl.u32 %v3145, 7
    %v3147 = vsub.s32 5, %v3146
    %v3148 = vrot.slane %v2999, %v3147
    %v3149 = vlaneseq
    %v3150 = vshrl.u32 %v3149, 7
    %v3151 = vsub.s32 6, %v3150
    %v3152 = vrot.slane %v2999, %v3151
    %v3153 = vlaneseq
    %v3154 = vshrl.u32 %v3153, 7
    %v3155 = vsub.s32 7, %v3154
    %v3156 = vrot.slane %v2999, %v3155
    %v3157 = vlaneseq
    %v3158 = vshrl.u32 %v3157, 7
    %v3159 = vsub.s32 0, %v3158
    %v3160 = vrot.slane %v3000, %v3159
    %v3161 = vlaneseq
    %v3162 = vshrl.u32 %v3161, 7
    %v3163 = vsub.s32 1, %v3162
    %v3164 = vrot.slane %v3000, %v3163
    %v3165 = vlaneseq
    %v3166 = vshrl.u32 %v3165, 7
    %v3167 = vsub.s32 2, %v3166
    %v3168 = vrot.slane %v3000, %v3167
    %v3169 = vlaneseq
    %v3170 = vshrl.u32 %v3169, 7
    %v3171 = vsub.s32 3, %v3170
    %v3172 = vrot.slane %v3000, %v3171
    %v3173 = vlaneseq
    %v3174 = vshrl.u32 %v3173, 7
    %v3175 = vsub.s32 4, %v3174
    %v3176 = vrot.slane %v3000, %v3175
    %v3177 = vlaneseq
    %v3178 = vshrl.u32 %v3177, 7
    %v3179 = vsub.s32 5, %v3178
    %v3180 = vrot.slane %v3000, %v3179
    %v3181 = vlaneseq
    %v3182 = vshrl.u32 %v3181, 7
    %v3183 = vsub.s32 6, %v3182
    %v3184 = vrot.slane %v3000, %v3183
    %v3185 = vlaneseq
    %v3186 = vshrl.u32 %v3185, 7
    %v3187 = vsub.s32 7, %v3186
    %v3188 = vrot.slane %v3000, %v3187
    %v3189 = vlaneseq
    %v3190 = vshrl.u32 %v3189, 7
    %v3191 = vsub.s32 0, %v3190
    %v3192 = vrot.slane %v3001, %v3191
    %v3193 = vlaneseq
    %v3194 = vshrl.u32 %v3193, 7
    %v3195 = vsub.s32 1, %v3194
    %v3196 = vrot.slane %v3001, %v3195
    %v3197 = vlaneseq
    %v3198 = vshrl.u32 %v3197, 7
    %v3199 = vsub.s32 2, %v3198
    %v3200 = vrot.slane %v3001, %v3199
    %v3201 = vlaneseq
    %v3202 = vshrl.u32 %v3201, 7
    %v3203 = vsub.s32 3, %v3202
    %v3204 = vrot.slane %v3001, %v3203
    %v3205 = vlaneseq
    %v3206 = vshrl.u32 %v3205, 7
    %v3207 = vsub.s32 4, %v3206
    %v3208 = vrot.slane %v3001, %v3207
    %v3209 = vlaneseq
    %v3210 = vshrl.u32 %v3209, 7
    %v3211 = vsub.s32 5, %v3210
    %v3212 = vrot.slane %v3001, %v3211
    %v3213 = vlaneseq
    %v3214 = vshrl.u32 %v3213, 7
    %v3215 = vsub.s32 6, %v3214
    %v3216 = vrot.slane %v3001, %v3215
    %v3217 = vlaneseq
    %v3218 = vshrl.u32 %v3217, 7
    %v3219 = vsub.s32 7, %v3218
    %v3220 = vrot.slane %v3001, %v3219
    %v3221 = vlaneseq
    %v3222 = vshrl.u32 %v3221, 7
    %v3223 = vsub.s32 0, %v3222
    %v3224 = vrot.slane %v3002, %v3223
    %v3225 = vlaneseq
    %v3226 = vshrl.u32 %v3225, 7
    %v3227 = vsub.s32 1, %v3226
    %v3228 = vrot.slane %v3002, %v3227
    %v3229 = vlaneseq
    %v3230 = vshrl.u32 %v3229, 7
    %v3231 = vsub.s32 2, %v3230
    %v3232 = vrot.slane %v3002, %v3231
    %v3233 = vlaneseq
    %v3234 = vshrl.u32 %v3233, 7
    %v3235 = vsub.s32 3, %v3234
    %v3236 = vrot.slane %v3002, %v3235
    %v3237 = vlaneseq
    %v3238 = vshrl.u32 %v3237, 7
    %v3239 = vsub.s32 4, %v3238
    %v3240 = vrot.slane %v3002, %v3239
    %v3241 = vlaneseq
    %v3242 = vshrl.u32 %v3241, 7
    %v3243 = vsub.s32 5, %v3242
    %v3244 = vrot.slane %v3002, %v3243
    %v3245 = vlaneseq
    %v3246 = vshrl.u32 %v3245, 7
    %v3247 = vsub.s32 6, %v3246
    %v3248 = vrot.slane %v3002, %v3247
    %v3249 = vlaneseq
    %v3250 = vshrl.u32 %v3249, 7
    %v3251 = vsub.s32 7, %v3250
    %v3252 = vrot.slane %v3002, %v3251
    %v3253 = vlaneseq
    %v3254 = vshrl.u32 %v3253, 7
    %v3255 = vsub.s32 0, %v3254
    %v3256 = vrot.slane %v3003, %v3255
    %v3257 = vlaneseq
    %v3258 = vshrl.u32 %v3257, 7
    %v3259 = vsub.s32 1, %v3258
    %v3260 = vrot.slane %v3003, %v3259
    %v3261 = vlaneseq
    %v3262 = vshrl.u32 %v3261, 7
    %v3263 = vsub.s32 2, %v3262
    %v3264 = vrot.slane %v3003, %v3263
    %v3265 = vlaneseq
    %v3266 = vshrl.u32 %v3265, 7
    %v3267 = vsub.s32 3, %v3266
    %v3268 = vrot.slane %v3003, %v3267
    %v3269 = vlaneseq
    %v3270 = vshrl.u32 %v3269, 7
    %v3271 = vsub.s32 4, %v3270
    %v3272 = vrot.slane %v3003, %v3271
    %v3273 = vlaneseq
    %v3274 = vshrl.u32 %v3273, 7
    %v3275 = vsub.s32 5, %v3274
    %v3276 = vrot.slane %v3003, %v3275
    %v3277 = vlaneseq
    %v3278 = vshrl.u32 %v3277, 7
    %v3279 = vsub.s32 6, %v3278
    %v3280 = vrot.slane %v3003, %v3279
    %v3281 = vlaneseq
    %v3282 = vshrl.u32 %v3281, 7
    %v3283 = vsub.s32 7, %v3282
    %v3284 = vrot.slane %v3003, %v3283
    %v3285 = vlaneseq
    %v3286 = vshrl.u32 %v3285, 7
    %v3287 = vsub.s32 0, %v3286
    %v3288 = vrot.slane %v3004, %v3287
    %v3289 = vlaneseq
    %v3290 = vshrl.u32 %v3289, 7
    %v3291 = vsub.s32 1, %v3290
    %v3292 = vrot.slane %v3004, %v3291
    %v3293 = vlaneseq
    %v3294 = vshrl.u32 %v3293, 7
    %v3295 = vsub.s32 2, %v3294
    %v3296 = vrot.slane %v3004, %v3295
    %v3297 = vlaneseq
    %v3298 = vshrl.u32 %v3297, 7
    %v3299 = vsub.s32 3, %v3298
    %v3300 = vrot.slane %v3004, %v3299
    %v3301 = vlaneseq
    %v3302 = vshrl.u32 %v3301, 7
    %v3303 = vsub.s32 4, %v3302
    %v3304 = vrot.slane %v3004, %v3303
    %v3305 = vlaneseq
    %v3306 = vshrl.u32 %v3305, 7
    %v3307 = vsub.s32 5, %v3306
    %v3308 = vrot.slane %v3004, %v3307
    %v3309 = vlaneseq
    %v3310 = vshrl.u32 %v3309, 7
    %v3311 = vsub.s32 6, %v3310
    %v3312 = vrot.slane %v3004, %v3311
    %v3313 = vlaneseq
    %v3314 = vshrl.u32 %v3313, 7
    %v3315 = vsub.s32 7, %v3314
    %v3316 = vrot.slane %v3004, %v3315
    %v3317 = vlaneseq
    %v3318 = vshrl.u32 %v3317, 7
    %v3319 = vsub.s32 0, %v3318
    %v3320 = vrot.slane %v3005, %v3319
    %v3321 = vlaneseq
    %v3322 = vshrl.u32 %v3321, 7
    %v3323 = vsub.s32 1, %v3322
    %v3324 = vrot.slane %v3005, %v3323
    %v3325 = vlaneseq
    %v3326 = vshrl.u32 %v3325, 7
    %v3327 = vsub.s32 2, %v3326
    %v3328 = vrot.slane %v3005, %v3327
    %v3329 = vlaneseq
    %v3330 = vshrl.u32 %v3329, 7
    %v3331 = vsub.s32 3, %v3330
    %v3332 = vrot.slane %v3005, %v3331
    %v3333 = vlaneseq
    %v3334 = vshrl.u32 %v3333, 7
    %v3335 = vsub.s32 4, %v3334
    %v3336 = vrot.slane %v3005, %v3335
    %v3337 = vlaneseq
    %v3338 = vshrl.u32 %v3337, 7
    %v3339 = vsub.s32 5, %v3338
    %v3340 = vrot.slane %v3005, %v3339
    %v3341 = vlaneseq
    %v3342 = vshrl.u32 %v3341, 7
    %v3343 = vsub.s32 6, %v3342
    %v3344 = vrot.slane %v3005, %v3343
    %v3345 = vlaneseq
    %v3346 = vshrl.u32 %v3345, 7
    %v3347 = vsub.s32 7, %v3346
    %v3348 = vrot.slane %v3005, %v3347
    %v3349 = vlaneseq
    %v3350 = vshrl.u32 %v3349, 7
    %v3351 = vsub.s32 0, %v3350
    %v3352 = vrot.slane %v3006, %v3351
    %v3353 = vlaneseq
    %v3354 = vshrl.u32 %v3353, 7
    %v3355 = vsub.s32 1, %v3354
    %v3356 = vrot.slane %v3006, %v3355
    %v3357 = vlaneseq
    %v3358 = vshrl.u32 %v3357, 7
    %v3359 = vsub.s32 2, %v3358
    %v3360 = vrot.slane %v3006, %v3359
    %v3361 = vlaneseq
    %v3362 = vshrl.u32 %v3361, 7
    %v3363 = vsub.s32 3, %v3362
    %v3364 = vrot.slane %v3006, %v3363
    %v3365 = vlaneseq
    %v3366 = vshrl.u32 %v3365, 7
    %v3367 = vsub.s32 4, %v3366
    %v3368 = vrot.slane %v3006, %v3367
    %v3369 = vlaneseq
    %v3370 = vshrl.u32 %v3369, 7
    %v3371 = vsub.s32 5, %v3370
    %v3372 = vrot.slane %v3006, %v3371
    %v3373 = vlaneseq
    %v3374 = vshrl.u32 %v3373, 7
    %v3375 = vsub.s32 6, %v3374
    %v3376 = vrot.slane %v3006, %v3375
    %v3377 = vlaneseq
    %v3378 = vshrl.u32 %v3377, 7
    %v3379 = vsub.s32 7, %v3378
    %v3380 = vrot.slane %v3006, %v3379
    %v3381 = vlaneseq
    %v3382 = vshrl.u32 %v3381, 7
    %v3383 = vsub.s32 0, %v3382
    %v3384 = vrot.slane %v3007, %v3383
    %v3385 = vlaneseq
    %v3386 = vshrl.u32 %v3385, 7
    %v3387 = vsub.s32 1, %v3386
    %v3388 = vrot.slane %v3007, %v3387
    %v3389 = vlaneseq
    %v3390 = vshrl.u32 %v3389, 7
    %v3391 = vsub.s32 2, %v3390
    %v3392 = vrot.slane %v3007, %v3391
    %v3393 = vlaneseq
    %v3394 = vshrl.u32 %v3393, 7
    %v3395 = vsub.s32 3, %v3394
    %v3396 = vrot.slane %v3007, %v3395
    %v3397 = vlaneseq
    %v3398 = vshrl.u32 %v3397, 7
    %v3399 = vsub.s32 4, %v3398
    %v3400 = vrot.slane %v3007, %v3399
    %v3401 = vlaneseq
    %v3402 = vshrl.u32 %v3401, 7
    %v3403 = vsub.s32 5, %v3402
    %v3404 = vrot.slane %v3007, %v3403
    %v3405 = vlaneseq
    %v3406 = vshrl.u32 %v3405, 7
    %v3407 = vsub.s32 6, %v3406
    %v3408 = vrot.slane %v3007, %v3407
    %v3409 = vlaneseq
    %v3410 = vshrl.u32 %v3409, 7
    %v3411 = vsub.s32 7, %v3410
    %v3412 = vrot.slane %v3007, %v3411
    %v3413 = vlaneseq
    %v3414 = vshrl.u32 %v3413, 7
    %v3415 = vsub.s32 0, %v3414
    %v3416 = vrot.slane %v3008, %v3415
    %v3417 = vlaneseq
    %v3418 = vshrl.u32 %v3417, 7
    %v3419 = vsub.s32 1, %v3418
    %v3420 = vrot.slane %v3008, %v3419
    %v3421 = vlaneseq
    %v3422 = vshrl.u32 %v3421, 7
    %v3423 = vsub.s32 2, %v3422
    %v3424 = vrot.slane %v3008, %v3423
    %v3425 = vlaneseq
    %v3426 = vshrl.u32 %v3425, 7
    %v3427 = vsub.s32 3, %v3426
    %v3428 = vrot.slane %v3008, %v3427
    %v3429 = vlaneseq
    %v3430 = vshrl.u32 %v3429, 7
    %v3431 = vsub.s32 4, %v3430
    %v3432 = vrot.slane %v3008, %v3431
    %v3433 = vlaneseq
    %v3434 = vshrl.u32 %v3433, 7
    %v3435 = vsub.s32 5, %v3434
    %v3436 = vrot.slane %v3008, %v3435
    %v3437 = vlaneseq
    %v3438 = vshrl.u32 %v3437, 7
    %v3439 = vsub.s32 6, %v3438
    %v3440 = vrot.slane %v3008, %v3439
    %v3441 = vlaneseq
    %v3442 = vshrl.u32 %v3441, 7
    %v3443 = vsub.s32 7, %v3442
    %v3444 = vrot.slane %v3008, %v3443
    %v3445 = vlaneseq
    %v3446 = vshrl.u32 %v3445, 7
    %v3447 = vsub.s32 0, %v3446
    %v3448 = vrot.slane %v3009, %v3447
    %v3449 = vlaneseq
    %v3450 = vshrl.u32 %v3449, 7
    %v3451 = vsub.s32 1, %v3450
    %v3452 = vrot.slane %v3009, %v3451
    %v3453 = vlaneseq
    %v3454 = vshrl.u32 %v3453, 7
    %v3455 = vsub.s32 2, %v3454
    %v3456 = vrot.slane %v3009, %v3455
    %v3457 = vlaneseq
    %v3458 = vshrl.u32 %v3457, 7
    %v3459 = vsub.s32 3, %v3458
    %v3460 = vrot.slane %v3009, %v3459
    %v3461 = vlaneseq
    %v3462 = vshrl.u32 %v3461, 7
    %v3463 = vsub.s32 4, %v3462
    %v3464 = vrot.slane %v3009, %v3463
    %v3465 = vlaneseq
    %v3466 = vshrl.u32 %v3465, 7
    %v3467 = vsub.s32 5, %v3466
    %v3468 = vrot.slane %v3009, %v3467
    %v3469 = vlaneseq
    %v3470 = vshrl.u32 %v3469, 7
    %v3471 = vsub.s32 6, %v3470
    %v3472 = vrot.slane %v3009, %v3471
    %v3473 = vlaneseq
    %v3474 = vshrl.u32 %v3473, 7
    %v3475 = vsub.s32 7, %v3474
    %v3476 = vrot.slane %v3009, %v3475
    %v3477 = vlaneseq
    %v3478 = vshrl.u32 %v3477, 7
    %v3479 = vsub.s32 0, %v3478
    %v3480 = vrot.slane %v3010, %v3479
    %v3481 = vlaneseq
    %v3482 = vshrl.u32 %v3481, 7
    %v3483 = vsub.s32 1, %v3482
    %v3484 = vrot.slane %v3010, %v3483
    %v3485 = vlaneseq
    %v3486 = vshrl.u32 %v3485, 7
    %v3487 = vsub.s32 2, %v3486
    %v3488 = vrot.slane %v3010, %v3487
    %v3489 = vlaneseq
    %v3490 = vshrl.u32 %v3489, 7
    %v3491 = vsub.s32 3, %v3490
    %v3492 = vrot.slane %v3010, %v3491
    %v3493 = vlaneseq
    %v3494 = vshrl.u32 %v3493, 7
    %v3495 = vsub.s32 4, %v3494
    %v3496 = vrot.slane %v3010, %v3495
    %v3497 = vlaneseq
    %v3498 = vshrl.u32 %v3497, 7
    %v3499 = vsub.s32 5, %v3498
    %v3500 = vrot.slane %v3010, %v3499
    %v3501 = vlaneseq
    %v3502 = vshrl.u32 %v3501, 7
    %v3503 = vsub.s32 6, %v3502
    %v3504 = vrot.slane %v3010, %v3503
    %v3505 = vlaneseq
    %v3506 = vshrl.u32 %v3505, 7
    %v3507 = vsub.s32 7, %v3506
    %v3508 = vrot.slane %v3010, %v3507
    %v3509 = vlaneseq
    %v3510 = vshrl.u32 %v3509, 7
    %v3511 = vsub.s32 0, %v3510
    %v3512 = vrot.slane %v3011, %v3511
    %v3513 = vlaneseq
    %v3514 = vshrl.u32 %v3513, 7
    %v3515 = vsub.s32 1, %v3514
    %v3516 = vrot.slane %v3011, %v3515
    %v3517 = vlaneseq
    %v3518 = vshrl.u32 %v3517, 7
    %v3519 = vsub.s32 2, %v3518
    %v3520 = vrot.slane %v3011, %v3519
    %v3521 = vlaneseq
    %v3522 = vshrl.u32 %v3521, 7
    %v3523 = vsub.s32 3, %v3522
    %v3524 = vrot.slane %v3011, %v3523
    %v3525 = vlaneseq
    %v3526 = vshrl.u32 %v3525, 7
    %v3527 = vsub.s32 4, %v3526
    %v3528 = vrot.slane %v3011, %v3527
    %v3529 = vlaneseq
    %v3530 = vshrl.u32 %v3529, 7
    %v3531 = vsub.s32 5, %v3530
    %v3532 = vrot.slane %v3011, %v3531
    %v3533 = vlaneseq
    %v3534 = vshrl.u32 %v3533, 7
    %v3535 = vsub.s32 6, %v3534
    %v3536 = vrot.slane %v3011, %v3535
    %v3537 = vlaneseq
    %v3538 = vshrl.u32 %v3537, 7
    %v3539 = vsub.s32 7, %v3538
    %v3540 = vrot.slane %v3011, %v3539
    %v3541 = vlaneseq
    %v3542 = vshrl.u32 %v3541, 7
    %v3543 = vsub.s32 0, %v3542
    %v3544 = vrot.slane %v3012, %v3543
    %v3545 = vlaneseq
    %v3546 = vshrl.u32 %v3545, 7
    %v3547 = vsub.s32 1, %v3546
    %v3548 = vrot.slane %v3012, %v3547
    %v3549 = vlaneseq
    %v3550 = vshrl.u32 %v3549, 7
    %v3551 = vsub.s32 2, %v3550
    %v3552 = vrot.slane %v3012, %v3551
    %v3553 = vlaneseq
    %v3554 = vshrl.u32 %v3553, 7
    %v3555 = vsub.s32 3, %v3554
    %v3556 = vrot.slane %v3012, %v3555
    %v3557 = vlaneseq
    %v3558 = vshrl.u32 %v3557, 7
    %v3559 = vsub.s32 4, %v3558
    %v3560 = vrot.slane %v3012, %v3559
    %v3561 = vlaneseq
    %v3562 = vshrl.u32 %v3561, 7
    %v3563 = vsub.s32 5, %v3562
    %v3564 = vrot.slane %v3012, %v3563
    %v3565 = vlaneseq
    %v3566 = vshrl.u32 %v3565, 7
    %v3567 = vsub.s32 6, %v3566
    %v3568 = vrot.slane %v3012, %v3567
    %v3569 = vlaneseq
    %v3570 = vshrl.u32 %v3569, 7
    %v3571 = vsub.s32 7, %v3570
    %v3572 = vrot.slane %v3012, %v3571
    %v3573 = vlaneseq
    %v3574 = vshrl.u32 %v3573, 7
    %v3575 = vsub.s32 0, %v3574
    %v3576 = vrot.slane %v3013, %v3575
    %v3577 = vlaneseq
    %v3578 = vshrl.u32 %v3577, 7
    %v3579 = vsub.s32 1, %v3578
    %v3580 = vrot.slane %v3013, %v3579
    %v3581 = vlaneseq
    %v3582 = vshrl.u32 %v3581, 7
    %v3583 = vsub.s32 2, %v3582
    %v3584 = vrot.slane %v3013, %v3583
    %v3585 = vlaneseq
    %v3586 = vshrl.u32 %v3585, 7
    %v3587 = vsub.s32 3, %v3586
    %v3588 = vrot.slane %v3013, %v3587
    %v3589 = vlaneseq
    %v3590 = vshrl.u32 %v3589, 7
    %v3591 = vsub.s32 4, %v3590
    %v3592 = vrot.slane %v3013, %v3591
    %v3593 = vlaneseq
    %v3594 = vshrl.u32 %v3593, 7
    %v3595 = vsub.s32 5, %v3594
    %v3596 = vrot.slane %v3013, %v3595
    %v3597 = vlaneseq
    %v3598 = vshrl.u32 %v3597, 7
    %v3599 = vsub.s32 6, %v3598
    %v3600 = vrot.slane %v3013, %v3599
    %v3601 = vlaneseq
    %v3602 = vshrl.u32 %v3601, 7
    %v3603 = vsub.s32 7, %v3602
    %v3604 = vrot.slane %v3013, %v3603
    %v3605 = vlaneseq
    %v3606 = vshrl.u32 %v3605, 7
    %v3607 = vsub.s32 0, %v3606
    %v3608 = vrot.slane %v3014, %v3607
    %v3609 = vlaneseq
    %v3610 = vshrl.u32 %v3609, 7
    %v3611 = vsub.s32 1, %v3610
    %v3612 = vrot.slane %v3014, %v3611
    %v3613 = vlaneseq
    %v3614 = vshrl.u32 %v3613, 7
    %v3615 = vsub.s32 2, %v3614
    %v3616 = vrot.slane %v3014, %v3615
    %v3617 = vlaneseq
    %v3618 = vshrl.u32 %v3617, 7
    %v3619 = vsub.s32 3, %v3618
    %v3620 = vrot.slane %v3014, %v3619
    %v3621 = vlaneseq
    %v3622 = vshrl.u32 %v3621, 7
    %v3623 = vsub.s32 4, %v3622
    %v3624 = vrot.slane %v3014, %v3623
    %v3625 = vlaneseq
    %v3626 = vshrl.u32 %v3625, 7
    %v3627 = vsub.s32 5, %v3626
    %v3628 = vrot.slane %v3014, %v3627
    %v3629 = vlaneseq
    %v3630 = vshrl.u32 %v3629, 7
    %v3631 = vsub.s32 6, %v3630
    %v3632 = vrot.slane %v3014, %v3631
    %v3633 = vlaneseq
    %v3634 = vshrl.u32 %v3633, 7
    %v3635 = vsub.s32 7, %v3634
    %v3636 = vrot.slane %v3014, %v3635
    %v3637 = vlaneseq
    %v3638 = vshrl.u32 %v3637, 7
    %v3639 = vsub.s32 0, %v3638
    %v3640 = vrot.slane %v3015, %v3639
    %v3641 = vlaneseq
    %v3642 = vshrl.u32 %v3641, 7
    %v3643 = vsub.s32 1, %v3642
    %v3644 = vrot.slane %v3015, %v3643
    %v3645 = vlaneseq
    %v3646 = vshrl.u32 %v3645, 7
    %v3647 = vsub.s32 2, %v3646
    %v3648 = vrot.slane %v3015, %v3647
    %v3649 = vlaneseq
    %v3650 = vshrl.u32 %v3649, 7
    %v3651 = vsub.s32 3, %v3650
    %v3652 = vrot.slane %v3015, %v3651
    %v3653 = vlaneseq
    %v3654 = vshrl.u32 %v3653, 7
    %v3655 = vsub.s32 4, %v3654
    %v3656 = vrot.slane %v3015, %v3655
    %v3657 = vlaneseq
    %v3658 = vshrl.u32 %v3657, 7
    %v3659 = vsub.s32 5, %v3658
    %v3660 = vrot.slane %v3015, %v3659
    %v3661 = vlaneseq
    %v3662 = vshrl.u32 %v3661, 7
    %v3663 = vsub.s32 6, %v3662
    %v3664 = vrot.slane %v3015, %v3663
    %v3665 = vlaneseq
    %v3666 = vshrl.u32 %v3665, 7
    %v3667 = vsub.s32 7, %v3666
    %v3668 = vrot.slane %v3015, %v3667
    %v3669 = vlaneseq
    %v3670 = vshrl.u32 %v3669, 7
    %v3671 = vsub.s32 0, %v3670
    %v3672 = vrot.slane %v3016, %v3671
    %v3673 = vlaneseq
    %v3674 = vshrl.u32 %v3673, 7
    %v3675 = vsub.s32 1, %v3674
    %v3676 = vrot.slane %v3016, %v3675
    %v3677 = vlaneseq
    %v3678 = vshrl.u32 %v3677, 7
    %v3679 = vsub.s32 2, %v3678
    %v3680 = vrot.slane %v3016, %v3679
    %v3681 = vlaneseq
    %v3682 = vshrl.u32 %v3681, 7
    %v3683 = vsub.s32 3, %v3682
    %v3684 = vrot.slane %v3016, %v3683
    %v3685 = vlaneseq
    %v3686 = vshrl.u32 %v3685, 7
    %v3687 = vsub.s32 4, %v3686
    %v3688 = vrot.slane %v3016, %v3687
    %v3689 = vlaneseq
    %v3690 = vshrl.u32 %v3689, 7
    %v3691 = vsub.s32 5, %v3690
    %v3692 = vrot.slane %v3016, %v3691
    %v3693 = vlaneseq
    %v3694 = vshrl.u32 %v3693, 7
    %v3695 = vsub.s32 6, %v3694
    %v3696 = vrot.slane %v3016, %v3695
    %v3697 = vlaneseq
    %v3698 = vshrl.u32 %v3697, 7
    %v3699 = vsub.s32 7, %v3698
    %v3700 = vrot.slane %v3016, %v3699
    %v3701 = vlaneseq
    %v3702 = vshrl.u32 %v3701, 7
    %v3703 = vsub.s32 0, %v3702
    %v3704 = vrot.slane %v3017, %v3703
    %v3705 = vlaneseq
    %v3706 = vshrl.u32 %v3705, 7
    %v3707 = vsub.s32 1, %v3706
    %v3708 = vrot.slane %v3017, %v3707
    %v3709 = vlaneseq
    %v3710 = vshrl.u32 %v3709, 7
    %v3711 = vsub.s32 2, %v3710
    %v3712 = vrot.slane %v3017, %v3711
    %v3713 = vlaneseq
    %v3714 = vshrl.u32 %v3713, 7
    %v3715 = vsub.s32 3, %v3714
    %v3716 = vrot.slane %v3017, %v3715
    %v3717 = vlaneseq
    %v3718 = vshrl.u32 %v3717, 7
    %v3719 = vsub.s32 4, %v3718
    %v3720 = vrot.slane %v3017, %v3719
    %v3721 = vlaneseq
    %v3722 = vshrl.u32 %v3721, 7
    %v3723 = vsub.s32 5, %v3722
    %v3724 = vrot.slane %v3017, %v3723
    %v3725 = vlaneseq
    %v3726 = vshrl.u32 %v3725, 7
    %v3727 = vsub.s32 6, %v3726
    %v3728 = vrot.slane %v3017, %v3727
    %v3729 = vlaneseq
    %v3730 = vshrl.u32 %v3729, 7
    %v3731 = vsub.s32 7, %v3730
    %v3732 = vrot.slane %v3017, %v3731
    %v3733 = vlaneseq
    %v3734 = vshrl.u32 %v3733, 7
    %v3735 = vsub.s32 0, %v3734
    %v3736 = vrot.slane %v3018, %v3735
    %v3737 = vlaneseq
    %v3738 = vshrl.u32 %v3737, 7
    %v3739 = vsub.s32 1, %v3738
    %v3740 = vrot.slane %v3018, %v3739
    %v3741 = vlaneseq
    %v3742 = vshrl.u32 %v3741, 7
    %v3743 = vsub.s32 2, %v3742
    %v3744 = vrot.slane %v3018, %v3743
    %v3745 = vlaneseq
    %v3746 = vshrl.u32 %v3745, 7
    %v3747 = vsub.s32 3, %v3746
    %v3748 = vrot.slane %v3018, %v3747
    %v3749 = vlaneseq
    %v3750 = vshrl.u32 %v3749, 7
    %v3751 = vsub.s32 4, %v3750
    %v3752 = vrot.slane %v3018, %v3751
    %v3753 = vlaneseq
    %v3754 = vshrl.u32 %v3753, 7
    %v3755 = vsub.s32 5, %v3754
    %v3756 = vrot.slane %v3018, %v3755
    %v3757 = vlaneseq
    %v3758 = vshrl.u32 %v3757, 7
    %v3759 = vsub.s32 6, %v3758
    %v3760 = vrot.slane %v3018, %v3759
    %v3761 = vlaneseq
    %v3762 = vshrl.u32 %v3761, 7
    %v3763 = vsub.s32 7, %v3762
    %v3764 = vrot.slane %v3018, %v3763
    %v3765 = vlaneseq
    %v3766 = vshrl.u32 %v3765, 7
    %v3767 = vsub.s32 0, %v3766
    %v3768 = vrot.slane %v3019, %v3767
    %v3769 = vlaneseq
    %v3770 = vshrl.u32 %v3769, 7
    %v3771 = vsub.s32 1, %v3770
    %v3772 = vrot.slane %v3019, %v3771
    %v3773 = vlaneseq
    %v3774 = vshrl.u32 %v3773, 7
    %v3775 = vsub.s32 2, %v3774
    %v3776 = vrot.slane %v3019, %v3775
    %v3777 = vlaneseq
    %v3778 = vshrl.u32 %v3777, 7
    %v3779 = vsub.s32 3, %v3778
    %v3780 = vrot.slane %v3019, %v3779
    %v3781 = vlaneseq
    %v3782 = vshrl.u32 %v3781, 7
    %v3783 = vsub.s32 4, %v3782
    %v3784 = vrot.slane %v3019, %v3783
    %v3785 = vlaneseq
    %v3786 = vshrl.u32 %v3785, 7
    %v3787 = vsub.s32 5, %v3786
    %v3788 = vrot.slane %v3019, %v3787
    %v3789 = vlaneseq
    %v3790 = vshrl.u32 %v3789, 7
    %v3791 = vsub.s32 6, %v3790
    %v3792 = vrot.slane %v3019, %v3791
    %v3793 = vlaneseq
    %v3794 = vshrl.u32 %v3793, 7
    %v3795 = vsub.s32 7, %v3794
    %v3796 = vrot.slane %v3019, %v3795
    %v3797 = vlaneseq
    %v3798 = vshrl.u32 %v3797, 7
    %v3799 = vsub.s32 0, %v3798
    %v3800 = vrot.slane %v3020, %v3799
    %v3801 = vlaneseq
    %v3802 = vshrl.u32 %v3801, 7
    %v3803 = vsub.s32 1, %v3802
    %v3804 = vrot.slane %v3020, %v3803
    %v3805 = vlaneseq
    %v3806 = vshrl.u32 %v3805, 7
    %v3807 = vsub.s32 2, %v3806
    %v3808 = vrot.slane %v3020, %v3807
    %v3809 = vlaneseq
    %v3810 = vshrl.u32 %v3809, 7
    %v3811 = vsub.s32 3, %v3810
    %v3812 = vrot.slane %v3020, %v3811
    %v3813 = vlaneseq
    %v3814 = vshrl.u32 %v3813, 7
    %v3815 = vsub.s32 4, %v3814
    %v3816 = vrot.slane %v3020, %v3815
    %v3817 = vlaneseq
    %v3818 = vshrl.u32 %v3817, 7
    %v3819 = vsub.s32 5, %v3818
    %v3820 = vrot.slane %v3020, %v3819
    %v3821 = vlaneseq
    %v3822 = vshrl.u32 %v3821, 7
    %v3823 = vsub.s32 6, %v3822
    %v3824 = vrot.slane %v3020, %v3823
    %v3825 = vlaneseq
    %v3826 = vshrl.u32 %v3825, 7
    %v3827 = vsub.s32 7, %v3826
    %v3828 = vrot.slane %v3020, %v3827
    %v3829 = vlaneseq
    %v3830 = vshrl.u32 %v3829, 7
    %v3831 = vsub.s32 0, %v3830
    %v3832 = vrot.slane %v3021, %v3831
    %v3833 = vlaneseq
    %v3834 = vshrl.u32 %v3833, 7
    %v3835 = vsub.s32 1, %v3834
    %v3836 = vrot.slane %v3021, %v3835
    %v3837 = vlaneseq
    %v3838 = vshrl.u32 %v3837, 7
    %v3839 = vsub.s32 2, %v3838
    %v3840 = vrot.slane %v3021, %v3839
    %v3841 = vlaneseq
    %v3842 = vshrl.u32 %v3841, 7
    %v3843 = vsub.s32 3, %v3842
    %v3844 = vrot.slane %v3021, %v3843
    %v3845 = vlaneseq
    %v3846 = vshrl.u32 %v3845, 7
    %v3847 = vsub.s32 4, %v3846
    %v3848 = vrot.slane %v3021, %v3847
    %v3849 = vlaneseq
    %v3850 = vshrl.u32 %v3849, 7
    %v3851 = vsub.s32 5, %v3850
    %v3852 = vrot.slane %v3021, %v3851
    %v3853 = vlaneseq
    %v3854 = vshrl.u32 %v3853, 7
    %v3855 = vsub.s32 6, %v3854
    %v3856 = vrot.slane %v3021, %v3855
    %v3857 = vlaneseq
    %v3858 = vshrl.u32 %v3857, 7
    %v3859 = vsub.s32 7, %v3858
    %v3860 = vrot.slane %v3021, %v3859
    %v3861 = vlaneseq
    %v3862 = vshrl.u32 %v3861, 7
    %v3863 = vsub.s32 0, %v3862
    %v3864 = vrot.slane %v3022, %v3863
    %v3865 = vlaneseq
    %v3866 = vshrl.u32 %v3865, 7
    %v3867 = vsub.s32 1, %v3866
    %v3868 = vrot.slane %v3022, %v3867
    %v3869 = vlaneseq
    %v3870 = vshrl.u32 %v3869, 7
    %v3871 = vsub.s32 2, %v3870
    %v3872 = vrot.slane %v3022, %v3871
    %v3873 = vlaneseq
    %v3874 = vshrl.u32 %v3873, 7
    %v3875 = vsub.s32 3, %v3874
    %v3876 = vrot.slane %v3022, %v3875
    %v3877 = vlaneseq
    %v3878 = vshrl.u32 %v3877, 7
    %v3879 = vsub.s32 4, %v3878
    %v3880 = vrot.slane %v3022, %v3879
    %v3881 = vlaneseq
    %v3882 = vshrl.u32 %v3881, 7
    %v3883 = vsub.s32 5, %v3882
    %v3884 = vrot.slane %v3022, %v3883
    %v3885 = vlaneseq
    %v3886 = vshrl.u32 %v3885, 7
    %v3887 = vsub.s32 6, %v3886
    %v3888 = vrot.slane %v3022, %v3887
    %v3889 = vlaneseq
    %v3890 = vshrl.u32 %v3889, 7
    %v3891 = vsub.s32 7, %v3890
    %v3892 = vrot.slane %v3022, %v3891
    %v3893 = vlaneseq
    %v3894 = vshrl.u32 %v3893, 7
    %v3895 = vsub.s32 0, %v3894
    %v3896 = vrot.slane %v3023, %v3895
    %v3897 = vlaneseq
    %v3898 = vshrl.u32 %v3897, 7
    %v3899 = vsub.s32 1, %v3898
    %v3900 = vrot.slane %v3023, %v3899
    %v3901 = vlaneseq
    %v3902 = vshrl.u32 %v3901, 7
    %v3903 = vsub.s32 2, %v3902
    %v3904 = vrot.slane %v3023, %v3903
    %v3905 = vlaneseq
    %v3906 = vshrl.u32 %v3905, 7
    %v3907 = vsub.s32 3, %v3906
    %v3908 = vrot.slane %v3023, %v3907
    %v3909 = vlaneseq
    %v3910 = vshrl.u32 %v3909, 7
    %v3911 = vsub.s32 4, %v3910
    %v3912 = vrot.slane %v3023, %v3911
    %v3913 = vlaneseq
    %v3914 = vshrl.u32 %v3913, 7
    %v3915 = vsub.s32 5, %v3914
    %v3916 = vrot.slane %v3023, %v3915
    %v3917 = vlaneseq
    %v3918 = vshrl.u32 %v3917, 7
    %v3919 = vsub.s32 6, %v3918
    %v3920 = vrot.slane %v3023, %v3919
    %v3921 = vlaneseq
    %v3922 = vshrl.u32 %v3921, 7
    %v3923 = vsub.s32 7, %v3922
    %v3924 = vrot.slane %v3023, %v3923
    %v3925 = vlaneseq
    %v3926 = vshrl.u32 %v3925, 7
    %v3927 = vsub.s32 0, %v3926
    %v3928 = vrot.slane %v3024, %v3927
    %v3929 = vlaneseq
    %v3930 = vshrl.u32 %v3929, 7
    %v3931 = vsub.s32 1, %v3930
    %v3932 = vrot.slane %v3024, %v3931
    %v3933 = vlaneseq
    %v3934 = vshrl.u32 %v3933, 7
    %v3935 = vsub.s32 2, %v3934
    %v3936 = vrot.slane %v3024, %v3935
    %v3937 = vlaneseq
    %v3938 = vshrl.u32 %v3937, 7
    %v3939 = vsub.s32 3, %v3938
    %v3940 = vrot.slane %v3024, %v3939
    %v3941 = vlaneseq
    %v3942 = vshrl.u32 %v3941, 7
    %v3943 = vsub.s32 4, %v3942
    %v3944 = vrot.slane %v3024, %v3943
    %v3945 = vlaneseq
    %v3946 = vshrl.u32 %v3945, 7
    %v3947 = vsub.s32 5, %v3946
    %v3948 = vrot.slane %v3024, %v3947
    %v3949 = vlaneseq
    %v3950 = vshrl.u32 %v3949, 7
    %v3951 = vsub.s32 6, %v3950
    %v3952 = vrot.slane %v3024, %v3951
    %v3953 = vlaneseq
    %v3954 = vshrl.u32 %v3953, 7
    %v3955 = vsub.s32 7, %v3954
    %v3956 = vrot.slane %v3024, %v3955
    %v3957 = vlaneseq
    %v3958 = vshrl.u32 %v3957, 7
    %v3959 = vsub.s32 0, %v3958
    %v3960 = vrot.slane %v3025, %v3959
    %v3961 = vlaneseq
    %v3962 = vshrl.u32 %v3961, 7
    %v3963 = vsub.s32 1, %v3962
    %v3964 = vrot.slane %v3025, %v3963
    %v3965 = vlaneseq
    %v3966 = vshrl.u32 %v3965, 7
    %v3967 = vsub.s32 2, %v3966
    %v3968 = vrot.slane %v3025, %v3967
    %v3969 = vlaneseq
    %v3970 = vshrl.u32 %v3969, 7
    %v3971 = vsub.s32 3, %v3970
    %v3972 = vrot.slane %v3025, %v3971
    %v3973 = vlaneseq
    %v3974 = vshrl.u32 %v3973, 7
    %v3975 = vsub.s32 4, %v3974
    %v3976 = vrot.slane %v3025, %v3975
    %v3977 = vlaneseq
    %v3978 = vshrl.u32 %v3977, 7
    %v3979 = vsub.s32 5, %v3978
    %v3980 = vrot.slane %v3025, %v3979
    %v3981 = vlaneseq
    %v3982 = vshrl.u32 %v3981, 7
    %v3983 = vsub.s32 6, %v3982
    %v3984 = vrot.slane %v3025, %v3983
    %v3985 = vlaneseq
    %v3986 = vshrl.u32 %v3985, 7
    %v3987 = vsub.s32 7, %v3986
    %v3988 = vrot.slane %v3025, %v3987
    %v3989 = vlaneseq
    %v3990 = vshrl.u32 %v3989, 7
    %v3991 = vsub.s32 0, %v3990
    %v3992 = vrot.slane %v3026, %v3991
    %v3993 = vlaneseq
    %v3994 = vshrl.u32 %v3993, 7
    %v3995 = vsub.s32 1, %v3994
    %v3996 = vrot.slane %v3026, %v3995
    %v3997 = vlaneseq
    %v3998 = vshrl.u32 %v3997, 7
    %v3999 = vsub.s32 2, %v3998
    %v4000 = vrot.slane %v3026, %v3999
    %v4001 = vlaneseq
    %v4002 = vshrl.u32 %v4001, 7
    %v4003 = vsub.s32 3, %v4002
    %v4004 = vrot.slane %v3026, %v4003
    %v4005 = vlaneseq
    %v4006 = vshrl.u32 %v4005, 7
    %v4007 = vsub.s32 4, %v4006
    %v4008 = vrot.slane %v3026, %v4007
    %v4009 = vlaneseq
    %v4010 = vshrl.u32 %v4009, 7
    %v4011 = vsub.s32 5, %v4010
    %v4012 = vrot.slane %v3026, %v4011
    %v4013 = vlaneseq
    %v4014 = vshrl.u32 %v4013, 7
    %v4015 = vsub.s32 6, %v4014
    %v4016 = vrot.slane %v3026, %v4015
    %v4017 = vlaneseq
    %v4018 = vshrl.u32 %v4017, 7
    %v4019 = vsub.s32 7, %v4018
    %v4020 = vrot.slane %v3026, %v4019
    %v4021 = vlaneseq
    %v4022 = vshrl.u32 %v4021, 7
    %v4023 = vsub.s32 0, %v4022
    %v4024 = vrot.slane %v3027, %v4023
    %v4025 = vlaneseq
    %v4026 = vshrl.u32 %v4025, 7
    %v4027 = vsub.s32 1, %v4026
    %v4028 = vrot.slane %v3027, %v4027
    %v4029 = vlaneseq
    %v4030 = vshrl.u32 %v4029, 7
    %v4031 = vsub.s32 2, %v4030
    %v4032 = vrot.slane %v3027, %v4031
    %v4033 = vlaneseq
    %v4034 = vshrl.u32 %v4033, 7
    %v4035 = vsub.s32 3, %v4034
    %v4036 = vrot.slane %v3027, %v4035
    %v4037 = vlaneseq
    %v4038 = vshrl.u32 %v4037, 7
    %v4039 = vsub.s32 4, %v4038
    %v4040 = vrot.slane %v3027, %v4039
    %v4041 = vlaneseq
    %v4042 = vshrl.u32 %v4041, 7
    %v4043 = vsub.s32 5, %v4042
    %v4044 = vrot.slane %v3027, %v4043
    %v4045 = vlaneseq
    %v4046 = vshrl.u32 %v4045, 7
    %v4047 = vsub.s32 6, %v4046
    %v4048 = vrot.slane %v3027, %v4047
    %v4049 = vlaneseq
    %v4050 = vshrl.u32 %v4049, 7
    %v4051 = vsub.s32 7, %v4050
    %v4052 = vrot.slane %v3027, %v4051
    %v4053 = vlaneseq
    %v4054 = vshrl.u32 %v4053, 7
    %v4055 = vsub.s32 0, %v4054
    %v4056 = vrot.slane %v3028, %v4055
    %v4057 = vlaneseq
    %v4058 = vshrl.u32 %v4057, 7
    %v4059 = vsub.s32 1, %v4058
    %v4060 = vrot.slane %v3028, %v4059
    %v4061 = vlaneseq
    %v4062 = vshrl.u32 %v4061, 7
    %v4063 = vsub.s32 2, %v4062
    %v4064 = vrot.slane %v3028, %v4063
    %v4065 = vlaneseq
    %v4066 = vshrl.u32 %v4065, 7
    %v4067 = vsub.s32 3, %v4066
    %v4068 = vrot.slane %v3028, %v4067
    %v4069 = vlaneseq
    %v4070 = vshrl.u32 %v4069, 7
    %v4071 = vsub.s32 4, %v4070
    %v4072 = vrot.slane %v3028, %v4071
    %v4073 = vlaneseq
    %v4074 = vshrl.u32 %v4073, 7
    %v4075 = vsub.s32 5, %v4074
    %v4076 = vrot.slane %v3028, %v4075
    %v4077 = vlaneseq
    %v4078 = vshrl.u32 %v4077, 7
    %v4079 = vsub.s32 6, %v4078
    %v4080 = vrot.slane %v3028, %v4079
    %v4081 = vlaneseq
    %v4082 = vshrl.u32 %v4081, 7
    %v4083 = vsub.s32 7, %v4082
    %v4084 = vrot.slane %v3028, %v4083
    %v4085 = vcombine.low %v3064, %v3068
    %v4086 = vcombine.low %v3072, %v3076
    %v4087 = vcombine.low %v3080, %v3084
    %v4088 = vcombine.low %v3088, %v3092
    %v4090 = vunpack.c.l.s4 1966171168
    %v4091 = vunpack.c.0.s8 %v4090
    %v4092 = vlaneseq
    %v4093 = vshrl.u32 %v4092, 7
    %v4094 = vsub.s32 %v4091, %v4093
    %v4095 = vrot.slane %v4085, %v4094
    %v4097 = vunpack.c.l.s4 1966171168
    %v4098 = vunpack.c.0.s8 %v4097
    %v4099 = vlaneseq
    %v4100 = vshrl.u32 %v4099, 7
    %v4101 = vsub.s32 %v4098, %v4100
    %v4102 = vrot.slane %v4086, %v4101
    %v4104 = vunpack.c.l.s4 1966171168
    %v4105 = vunpack.c.0.s8 %v4104
    %v4106 = vlaneseq
    %v4107 = vshrl.u32 %v4106, 7
    %v4108 = vsub.s32 %v4105, %v4107
    %v4109 = vrot.slane %v4087, %v4108
    %v4111 = vunpack.c.l.s4 1966171168
    %v4112 = vunpack.c.0.s8 %v4111
    %v4113 = vlaneseq
    %v4114 = vshrl.u32 %v4113, 7
    %v4115 = vsub.s32 %v4112, %v4114
    %v4116 = vrot.slane %v4088, %v4115
    %v4117 = vcombine.low %v4095, %v4102
    %v4118 = vcombine.low %v4109, %v4116
    %v4120 = vunpack.c.l.s4 1966171168
    %v4121 = vunpack.c.0.s8 %v4120
    %v4122 = vlaneseq
    %v4123 = vshrl.u32 %v4122, 7
    %v4124 = vsub.s32 %v4121, %v4123
    %v4125 = vrot.slane %v4117, %v4124
    %v4127 = vunpack.c.l.s4 1966171168
    %v4128 = vunpack.c.0.s8 %v4127
    %v4129 = vlaneseq
    %v4130 = vshrl.u32 %v4129, 7
    %v4131 = vsub.s32 %v4128, %v4130
    %v4132 = vrot.slane %v4118, %v4131
    %v4133 = vcombine.low %v4125, %v4132
    %v4134 = vcombine.low %v3096, %v3100
    %v4135 = vcombine.low %v3104, %v3108
    %v4136 = vcombine.low %v3112, %v3116
    %v4137 = vcombine.low %v3120, %v3124
    %v4139 = vunpack.c.l.s4 1966171168
    %v4140 = vunpack.c.0.s8 %v4139
    %v4141 = vlaneseq
    %v4142 = vshrl.u32 %v4141, 7
    %v4143 = vsub.s32 %v4140, %v4142
    %v4144 = vrot.slane %v4134, %v4143
    %v4146 = vunpack.c.l.s4 1966171168
    %v4147 = vunpack.c.0.s8 %v4146
    %v4148 = vlaneseq
    %v4149 = vshrl.u32 %v4148, 7
    %v4150 = vsub.s32 %v4147, %v4149
    %v4151 = vrot.slane %v4135, %v4150
    %v4153 = vunpack.c.l.s4 1966171168
    %v4154 = vunpack.c.0.s8 %v4153
    %v4155 = vlaneseq
    %v4156 = vshrl.u32 %v4155, 7
    %v4157 = vsub.s32 %v4154, %v4156
    %v4158 = vrot.slane %v4136, %v4157
    %v4160 = vunpack.c.l.s4 1966171168
    %v4161 = vunpack.c.0.s8 %v4160
    %v4162 = vlaneseq
    %v4163 = vshrl.u32 %v4162, 7
    %v4164 = vsub.s32 %v4161, %v4163
    %v4165 = vrot.slane %v4137, %v4164
    %v4166 = vcombine.low %v4144, %v4151
    %v4167 = vcombine.low %v4158, %v4165
    %v4169 = vunpack.c.l.s4 1966171168
    %v4170 = vunpack.c.0.s8 %v4169
    %v4171 = vlaneseq
    %v4172 = vshrl.u32 %v4171, 7
    %v4173 = vsub.s32 %v4170, %v4172
    %v4174 = vrot.slane %v4166, %v4173
    %v4176 = vunpack.c.l.s4 1966171168
    %v4177 = vunpack.c.0.s8 %v4176
    %v4178 = vlaneseq
    %v4179 = vshrl.u32 %v4178, 7
    %v4180 = vsub.s32 %v4177, %v4179
    %v4181 = vrot.slane %v4167, %v4180
    %v4182 = vcombine.low %v4174, %v4181
    %v4183 = vcombine.low %v3128, %v3132
    %v4184 = vcombine.low %v3136, %v3140
    %v4185 = vcombine.low %v3144, %v3148
    %v4186 = vcombine.low %v3152, %v3156
    %v4188 = vunpack.c.l.s4 1966171168
    %v4189 = vunpack.c.0.s8 %v4188
    %v4190 = vlaneseq
    %v4191 = vshrl.u32 %v4190, 7
    %v4192 = vsub.s32 %v4189, %v4191
    %v4193 = vrot.slane %v4183, %v4192
    %v4195 = vunpack.c.l.s4 1966171168
    %v4196 = vunpack.c.0.s8 %v4195
    %v4197 = vlaneseq
    %v4198 = vshrl.u32 %v4197, 7
    %v4199 = vsub.s32 %v4196, %v4198
    %v4200 = vrot.slane %v4184, %v4199
    %v4202 = vunpack.c.l.s4 1966171168
    %v4203 = vunpack.c.0.s8 %v4202
    %v4204 = vlaneseq
    %v4205 = vshrl.u32 %v4204, 7
    %v4206 = vsub.s32 %v4203, %v4205
    %v4207 = vrot.slane %v4185, %v4206
    %v4209 = vunpack.c.l.s4 1966171168
    %v4210 = vunpack.c.0.s8 %v4209
    %v4211 = vlaneseq
    %v4212 = vshrl.u32 %v4211, 7
    %v4213 = vsub.s32 %v4210, %v4212
    %v4214 = vrot.slane %v4186, %v4213
    %v4215 = vcombine.low %v4193, %v4200
    %v4216 = vcombine.low %v4207, %v4214
    %v4218 = vunpack.c.l.s4 1966171168
    %v4219 = vunpack.c.0.s8 %v4218
    %v4220 = vlaneseq
    %v4221 = vshrl.u32 %v4220, 7
    %v4222 = vsub.s32 %v4219, %v4221
    %v4223 = vrot.slane %v4215, %v4222
    %v4225 = vunpack.c.l.s4 1966171168
    %v4226 = vunpack.c.0.s8 %v4225
    %v4227 = vlaneseq
    %v4228 = vshrl.u32 %v4227, 7
    %v4229 = vsub.s32 %v4226, %v4228
    %v4230 = vrot.slane %v4216, %v4229
    %v4231 = vcombine.low %v4223, %v4230
    %v4232 = vcombine.low %v3160, %v3164
    %v4233 = vcombine.low %v3168, %v3172
    %v4234 = vcombine.low %v3176, %v3180
    %v4235 = vcombine.low %v3184, %v3188
    %v4237 = vunpack.c.l.s4 1966171168
    %v4238 = vunpack.c.0.s8 %v4237
    %v4239 = vlaneseq
    %v4240 = vshrl.u32 %v4239, 7
    %v4241 = vsub.s32 %v4238, %v4240
    %v4242 = vrot.slane %v4232, %v4241
    %v4244 = vunpack.c.l.s4 1966171168
    %v4245 = vunpack.c.0.s8 %v4244
    %v4246 = vlaneseq
    %v4247 = vshrl.u32 %v4246, 7
    %v4248 = vsub.s32 %v4245, %v4247
    %v4249 = vrot.slane %v4233, %v4248
    %v4251 = vunpack.c.l.s4 1966171168
    %v4252 = vunpack.c.0.s8 %v4251
    %v4253 = vlaneseq
    %v4254 = vshrl.u32 %v4253, 7
    %v4255 = vsub.s32 %v4252, %v4254
    %v4256 = vrot.slane %v4234, %v4255
    %v4258 = vunpack.c.l.s4 1966171168
    %v4259 = vunpack.c.0.s8 %v4258
    %v4260 = vlaneseq
    %v4261 = vshrl.u32 %v4260, 7
    %v4262 = vsub.s32 %v4259, %v4261
    %v4263 = vrot.slane %v4235, %v4262
    %v4264 = vcombine.low %v4242, %v4249
    %v4265 = vcombine.low %v4256, %v4263
    %v4267 = vunpack.c.l.s4 1966171168
    %v4268 = vunpack.c.0.s8 %v4267
    %v4269 = vlaneseq
    %v4270 = vshrl.u32 %v4269, 7
    %v4271 = vsub.s32 %v4268, %v4270
    %v4272 = vrot.slane %v4264, %v4271
    %v4274 = vunpack.c.l.s4 1966171168
    %v4275 = vunpack.c.0.s8 %v4274
    %v4276 = vlaneseq
    %v4277 = vshrl.u32 %v4276, 7
    %v4278 = vsub.s32 %v4275, %v4277
    %v4279 = vrot.slane %v4265, %v4278
    %v4280 = vcombine.low %v4272, %v4279
    %v4281 = vcombine.low %v3192, %v3196
    %v4282 = vcombine.low %v3200, %v3204
    %v4283 = vcombine.low %v3208, %v3212
    %v4284 = vcombine.low %v3216, %v3220
    %v4286 = vunpack.c.l.s4 1966171168
    %v4287 = vunpack.c.0.s8 %v4286
    %v4288 = vlaneseq
    %v4289 = vshrl.u32 %v4288, 7
    %v4290 = vsub.s32 %v4287, %v4289
    %v4291 = vrot.slane %v4281, %v4290
    %v4293 = vunpack.c.l.s4 1966171168
    %v4294 = vunpack.c.0.s8 %v4293
    %v4295 = vlaneseq
    %v4296 = vshrl.u32 %v4295, 7
    %v4297 = vsub.s32 %v4294, %v4296
    %v4298 = vrot.slane %v4282, %v4297
    %v4300 = vunpack.c.l.s4 1966171168
    %v4301 = vunpack.c.0.s8 %v4300
    %v4302 = vlaneseq
    %v4303 = vshrl.u32 %v4302, 7
    %v4304 = vsub.s32 %v4301, %v4303
    %v4305 = vrot.slane %v4283, %v4304
    %v4307 = vunpack.c.l.s4 1966171168
    %v4308 = vunpack.c.0.s8 %v4307
    %v4309 = vlaneseq
    %v4310 = vshrl.u32 %v4309, 7
    %v4311 = vsub.s32 %v4308, %v4310
    %v4312 = vrot.slane %v4284, %v4311
    %v4313 = vcombine.low %v4291, %v4298
    %v4314 = vcombine.low %v4305, %v4312
    %v4316 = vunpack.c.l.s4 1966171168
    %v4317 = vunpack.c.0.s8 %v4316
    %v4318 = vlaneseq
    %v4319 = vshrl.u32 %v4318, 7
    %v4320 = vsub.s32 %v4317, %v4319
    %v4321 = vrot.slane %v4313, %v4320
    %v4323 = vunpack.c.l.s4 1966171168
    %v4324 = vunpack.c.0.s8 %v4323
    %v4325 = vlaneseq
    %v4326 = vshrl.u32 %v4325, 7
    %v4327 = vsub.s32 %v4324, %v4326
    %v4328 = vrot.slane %v4314, %v4327
    %v4329 = vcombine.low %v4321, %v4328
    %v4330 = vcombine.low %v3224, %v3228
    %v4331 = vcombine.low %v3232, %v3236
    %v4332 = vcombine.low %v3240, %v3244
    %v4333 = vcombine.low %v3248, %v3252
    %v4335 = vunpack.c.l.s4 1966171168
    %v4336 = vunpack.c.0.s8 %v4335
    %v4337 = vlaneseq
    %v4338 = vshrl.u32 %v4337, 7
    %v4339 = vsub.s32 %v4336, %v4338
    %v4340 = vrot.slane %v4330, %v4339
    %v4342 = vunpack.c.l.s4 1966171168
    %v4343 = vunpack.c.0.s8 %v4342
    %v4344 = vlaneseq
    %v4345 = vshrl.u32 %v4344, 7
    %v4346 = vsub.s32 %v4343, %v4345
    %v4347 = vrot.slane %v4331, %v4346
    %v4349 = vunpack.c.l.s4 1966171168
    %v4350 = vunpack.c.0.s8 %v4349
    %v4351 = vlaneseq
    %v4352 = vshrl.u32 %v4351, 7
    %v4353 = vsub.s32 %v4350, %v4352
    %v4354 = vrot.slane %v4332, %v4353
    %v4356 = vunpack.c.l.s4 1966171168
    %v4357 = vunpack.c.0.s8 %v4356
    %v4358 = vlaneseq
    %v4359 = vshrl.u32 %v4358, 7
    %v4360 = vsub.s32 %v4357, %v4359
    %v4361 = vrot.slane %v4333, %v4360
    %v4362 = vcombine.low %v4340, %v4347
    %v4363 = vcombine.low %v4354, %v4361
    %v4365 = vunpack.c.l.s4 1966171168
    %v4366 = vunpack.c.0.s8 %v4365
    %v4367 = vlaneseq
    %v4368 = vshrl.u32 %v4367, 7
    %v4369 = vsub.s32 %v4366, %v4368
    %v4370 = vrot.slane %v4362, %v4369
    %v4372 = vunpack.c.l.s4 1966171168
    %v4373 = vunpack.c.0.s8 %v4372
    %v4374 = vlaneseq
    %v4375 = vshrl.u32 %v4374, 7
    %v4376 = vsub.s32 %v4373, %v4375
    %v4377 = vrot.slane %v4363, %v4376
    %v4378 = vcombine.low %v4370, %v4377
    %v4379 = vcombine.low %v3256, %v3260
    %v4380 = vcombine.low %v3264, %v3268
    %v4381 = vcombine.low %v3272, %v3276
    %v4382 = vcombine.low %v3280, %v3284
    %v4384 = vunpack.c.l.s4 1966171168
    %v4385 = vunpack.c.0.s8 %v4384
    %v4386 = vlaneseq
    %v4387 = vshrl.u32 %v4386, 7
    %v4388 = vsub.s32 %v4385, %v4387
    %v4389 = vrot.slane %v4379, %v4388
    %v4391 = vunpack.c.l.s4 1966171168
    %v4392 = vunpack.c.0.s8 %v4391
    %v4393 = vlaneseq
    %v4394 = vshrl.u32 %v4393, 7
    %v4395 = vsub.s32 %v4392, %v4394
    %v4396 = vrot.slane %v4380, %v4395
    %v4398 = vunpack.c.l.s4 1966171168
    %v4399 = vunpack.c.0.s8 %v4398
    %v4400 = vlaneseq
    %v4401 = vshrl.u32 %v4400, 7
    %v4402 = vsub.s32 %v4399, %v4401
    %v4403 = vrot.slane %v4381, %v4402
    %v4405 = vunpack.c.l.s4 1966171168
    %v4406 = vunpack.c.0.s8 %v4405
    %v4407 = vlaneseq
    %v4408 = vshrl.u32 %v4407, 7
    %v4409 = vsub.s32 %v4406, %v4408
    %v4410 = vrot.slane %v4382, %v4409
    %v4411 = vcombine.low %v4389, %v4396
    %v4412 = vcombine.low %v4403, %v4410
    %v4414 = vunpack.c.l.s4 1966171168
    %v4415 = vunpack.c.0.s8 %v4414
    %v4416 = vlaneseq
    %v4417 = vshrl.u32 %v4416, 7
    %v4418 = vsub.s32 %v4415, %v4417
    %v4419 = vrot.slane %v4411, %v4418
    %v4421 = vunpack.c.l.s4 1966171168
    %v4422 = vunpack.c.0.s8 %v4421
    %v4423 = vlaneseq
    %v4424 = vshrl.u32 %v4423, 7
    %v4425 = vsub.s32 %v4422, %v4424
    %v4426 = vrot.slane %v4412, %v4425
    %v4427 = vcombine.low %v4419, %v4426
    %v4428 = vcombine.low %v3288, %v3292
    %v4429 = vcombine.low %v3296, %v3300
    %v4430 = vcombine.low %v3304, %v3308
    %v4431 = vcombine.low %v3312, %v3316
    %v4433 = vunpack.c.l.s4 1966171168
    %v4434 = vunpack.c.0.s8 %v4433
    %v4435 = vlaneseq
    %v4436 = vshrl.u32 %v4435, 7
    %v4437 = vsub.s32 %v4434, %v4436
    %v4438 = vrot.slane %v4428, %v4437
    %v4440 = vunpack.c.l.s4 1966171168
    %v4441 = vunpack.c.0.s8 %v4440
    %v4442 = vlaneseq
    %v4443 = vshrl.u32 %v4442, 7
    %v4444 = vsub.s32 %v4441, %v4443
    %v4445 = vrot.slane %v4429, %v4444
    %v4447 = vunpack.c.l.s4 1966171168
    %v4448 = vunpack.c.0.s8 %v4447
    %v4449 = vlaneseq
    %v4450 = vshrl.u32 %v4449, 7
    %v4451 = vsub.s32 %v4448, %v4450
    %v4452 = vrot.slane %v4430, %v4451
    %v4454 = vunpack.c.l.s4 1966171168
    %v4455 = vunpack.c.0.s8 %v4454
    %v4456 = vlaneseq
    %v4457 = vshrl.u32 %v4456, 7
    %v4458 = vsub.s32 %v4455, %v4457
    %v4459 = vrot.slane %v4431, %v4458
    %v4460 = vcombine.low %v4438, %v4445
    %v4461 = vcombine.low %v4452, %v4459
    %v4463 = vunpack.c.l.s4 1966171168
    %v4464 = vunpack.c.0.s8 %v4463
    %v4465 = vlaneseq
    %v4466 = vshrl.u32 %v4465, 7
    %v4467 = vsub.s32 %v4464, %v4466
    %v4468 = vrot.slane %v4460, %v4467
    %v4470 = vunpack.c.l.s4 1966171168
    %v4471 = vunpack.c.0.s8 %v4470
    %v4472 = vlaneseq
    %v4473 = vshrl.u32 %v4472, 7
    %v4474 = vsub.s32 %v4471, %v4473
    %v4475 = vrot.slane %v4461, %v4474
    %v4476 = vcombine.low %v4468, %v4475
    %v4477 = vcombine.low %v3320, %v3324
    %v4478 = vcombine.low %v3328, %v3332
    %v4479 = vcombine.low %v3336, %v3340
    %v4480 = vcombine.low %v3344, %v3348
    %v4482 = vunpack.c.l.s4 1966171168
    %v4483 = vunpack.c.0.s8 %v4482
    %v4484 = vlaneseq
    %v4485 = vshrl.u32 %v4484, 7
    %v4486 = vsub.s32 %v4483, %v4485
    %v4487 = vrot.slane %v4477, %v4486
    %v4489 = vunpack.c.l.s4 1966171168
    %v4490 = vunpack.c.0.s8 %v4489
    %v4491 = vlaneseq
    %v4492 = vshrl.u32 %v4491, 7
    %v4493 = vsub.s32 %v4490, %v4492
    %v4494 = vrot.slane %v4478, %v4493
    %v4496 = vunpack.c.l.s4 1966171168
    %v4497 = vunpack.c.0.s8 %v4496
    %v4498 = vlaneseq
    %v4499 = vshrl.u32 %v4498, 7
    %v4500 = vsub.s32 %v4497, %v4499
    %v4501 = vrot.slane %v4479, %v4500
    %v4503 = vunpack.c.l.s4 1966171168
    %v4504 = vunpack.c.0.s8 %v4503
    %v4505 = vlaneseq
    %v4506 = vshrl.u32 %v4505, 7
    %v4507 = vsub.s32 %v4504, %v4506
    %v4508 = vrot.slane %v4480, %v4507
    %v4509 = vcombine.low %v4487, %v4494
    %v4510 = vcombine.low %v4501, %v4508
    %v4512 = vunpack.c.l.s4 1966171168
    %v4513 = vunpack.c.0.s8 %v4512
    %v4514 = vlaneseq
    %v4515 = vshrl.u32 %v4514, 7
    %v4516 = vsub.s32 %v4513, %v4515
    %v4517 = vrot.slane %v4509, %v4516
    %v4519 = vunpack.c.l.s4 1966171168
    %v4520 = vunpack.c.0.s8 %v4519
    %v4521 = vlaneseq
    %v4522 = vshrl.u32 %v4521, 7
    %v4523 = vsub.s32 %v4520, %v4522
    %v4524 = vrot.slane %v4510, %v4523
    %v4525 = vcombine.low %v4517, %v4524
    %v4526 = vcombine.low %v3352, %v3356
    %v4527 = vcombine.low %v3360, %v3364
    %v4528 = vcombine.low %v3368, %v3372
    %v4529 = vcombine.low %v3376, %v3380
    %v4531 = vunpack.c.l.s4 1966171168
    %v4532 = vunpack.c.0.s8 %v4531
    %v4533 = vlaneseq
    %v4534 = vshrl.u32 %v4533, 7
    %v4535 = vsub.s32 %v4532, %v4534
    %v4536 = vrot.slane %v4526, %v4535
    %v4538 = vunpack.c.l.s4 1966171168
    %v4539 = vunpack.c.0.s8 %v4538
    %v4540 = vlaneseq
    %v4541 = vshrl.u32 %v4540, 7
    %v4542 = vsub.s32 %v4539, %v4541
    %v4543 = vrot.slane %v4527, %v4542
    %v4545 = vunpack.c.l.s4 1966171168
    %v4546 = vunpack.c.0.s8 %v4545
    %v4547 = vlaneseq
    %v4548 = vshrl.u32 %v4547, 7
    %v4549 = vsub.s32 %v4546, %v4548
    %v4550 = vrot.slane %v4528, %v4549
    %v4552 = vunpack.c.l.s4 1966171168
    %v4553 = vunpack.c.0.s8 %v4552
    %v4554 = vlaneseq
    %v4555 = vshrl.u32 %v4554, 7
    %v4556 = vsub.s32 %v4553, %v4555
    %v4557 = vrot.slane %v4529, %v4556
    %v4558 = vcombine.low %v4536, %v4543
    %v4559 = vcombine.low %v4550, %v4557
    %v4561 = vunpack.c.l.s4 1966171168
    %v4562 = vunpack.c.0.s8 %v4561
    %v4563 = vlaneseq
    %v4564 = vshrl.u32 %v4563, 7
    %v4565 = vsub.s32 %v4562, %v4564
    %v4566 = vrot.slane %v4558, %v4565
    %v4568 = vunpack.c.l.s4 1966171168
    %v4569 = vunpack.c.0.s8 %v4568
    %v4570 = vlaneseq
    %v4571 = vshrl.u32 %v4570, 7
    %v4572 = vsub.s32 %v4569, %v4571
    %v4573 = vrot.slane %v4559, %v4572
    %v4574 = vcombine.low %v4566, %v4573
    %v4575 = vcombine.low %v3384, %v3388
    %v4576 = vcombine.low %v3392, %v3396
    %v4577 = vcombine.low %v3400, %v3404
    %v4578 = vcombine.low %v3408, %v3412
    %v4580 = vunpack.c.l.s4 1966171168
    %v4581 = vunpack.c.0.s8 %v4580
    %v4582 = vlaneseq
    %v4583 = vshrl.u32 %v4582, 7
    %v4584 = vsub.s32 %v4581, %v4583
    %v4585 = vrot.slane %v4575, %v4584
    %v4587 = vunpack.c.l.s4 1966171168
    %v4588 = vunpack.c.0.s8 %v4587
    %v4589 = vlaneseq
    %v4590 = vshrl.u32 %v4589, 7
    %v4591 = vsub.s32 %v4588, %v4590
    %v4592 = vrot.slane %v4576, %v4591
    %v4594 = vunpack.c.l.s4 1966171168
    %v4595 = vunpack.c.0.s8 %v4594
    %v4596 = vlaneseq
    %v4597 = vshrl.u32 %v4596, 7
    %v4598 = vsub.s32 %v4595, %v4597
    %v4599 = vrot.slane %v4577, %v4598
    %v4601 = vunpack.c.l.s4 1966171168
    %v4602 = vunpack.c.0.s8 %v4601
    %v4603 = vlaneseq
    %v4604 = vshrl.u32 %v4603, 7
    %v4605 = vsub.s32 %v4602, %v4604
    %v4606 = vrot.slane %v4578, %v4605
    %v4607 = vcombine.low %v4585, %v4592
    %v4608 = vcombine.low %v4599, %v4606
    %v4610 = vunpack.c.l.s4 1966171168
    %v4611 = vunpack.c.0.s8 %v4610
    %v4612 = vlaneseq
    %v4613 = vshrl.u32 %v4612, 7
    %v4614 = vsub.s32 %v4611, %v4613
    %v4615 = vrot.slane %v4607, %v4614
    %v4617 = vunpack.c.l.s4 1966171168
    %v4618 = vunpack.c.0.s8 %v4617
    %v4619 = vlaneseq
    %v4620 = vshrl.u32 %v4619, 7
    %v4621 = vsub.s32 %v4618, %v4620
    %v4622 = vrot.slane %v4608, %v4621
    %v4623 = vcombine.low %v4615, %v4622
    %v4624 = vcombine.low %v3416, %v3420
    %v4625 = vcombine.low %v3424, %v3428
    %v4626 = vcombine.low %v3432, %v3436
    %v4627 = vcombine.low %v3440, %v3444
    %v4629 = vunpack.c.l.s4 1966171168
    %v4630 = vunpack.c.0.s8 %v4629
    %v4631 = vlaneseq
    %v4632 = vshrl.u32 %v4631, 7
    %v4633 = vsub.s32 %v4630, %v4632
    %v4634 = vrot.slane %v4624, %v4633
    %v4636 = vunpack.c.l.s4 1966171168
    %v4637 = vunpack.c.0.s8 %v4636
    %v4638 = vlaneseq
    %v4639 = vshrl.u32 %v4638, 7
    %v4640 = vsub.s32 %v4637, %v4639
    %v4641 = vrot.slane %v4625, %v4640
    %v4643 = vunpack.c.l.s4 1966171168
    %v4644 = vunpack.c.0.s8 %v4643
    %v4645 = vlaneseq
    %v4646 = vshrl.u32 %v4645, 7
    %v4647 = vsub.s32 %v4644, %v4646
    %v4648 = vrot.slane %v4626, %v4647
    %v4650 = vunpack.c.l.s4 1966171168
    %v4651 = vunpack.c.0.s8 %v4650
    %v4652 = vlaneseq
    %v4653 = vshrl.u32 %v4652, 7
    %v4654 = vsub.s32 %v4651, %v4653
    %v4655 = vrot.slane %v4627, %v4654
    %v4656 = vcombine.low %v4634, %v4641
    %v4657 = vcombine.low %v4648, %v4655
    %v4659 = vunpack.c.l.s4 1966171168
    %v4660 = vunpack.c.0.s8 %v4659
    %v4661 = vlaneseq
    %v4662 = vshrl.u32 %v4661, 7
    %v4663 = vsub.s32 %v4660, %v4662
    %v4664 = vrot.slane %v4656, %v4663
    %v4666 = vunpack.c.l.s4 1966171168
    %v4667 = vunpack.c.0.s8 %v4666
    %v4668 = vlaneseq
    %v4669 = vshrl.u32 %v4668, 7
    %v4670 = vsub.s32 %v4667, %v4669
    %v4671 = vrot.slane %v4657, %v4670
    %v4672 = vcombine.low %v4664, %v4671
    %v4673 = vcombine.low %v3448, %v3452
    %v4674 = vcombine.low %v3456, %v3460
    %v4675 = vcombine.low %v3464, %v3468
    %v4676 = vcombine.low %v3472, %v3476
    %v4678 = vunpack.c.l.s4 1966171168
    %v4679 = vunpack.c.0.s8 %v4678
    %v4680 = vlaneseq
    %v4681 = vshrl.u32 %v4680, 7
    %v4682 = vsub.s32 %v4679, %v4681
    %v4683 = vrot.slane %v4673, %v4682
    %v4685 = vunpack.c.l.s4 1966171168
    %v4686 = vunpack.c.0.s8 %v4685
    %v4687 = vlaneseq
    %v4688 = vshrl.u32 %v4687, 7
    %v4689 = vsub.s32 %v4686, %v4688
    %v4690 = vrot.slane %v4674, %v4689
    %v4692 = vunpack.c.l.s4 1966171168
    %v4693 = vunpack.c.0.s8 %v4692
    %v4694 = vlaneseq
    %v4695 = vshrl.u32 %v4694, 7
    %v4696 = vsub.s32 %v4693, %v4695
    %v4697 = vrot.slane %v4675, %v4696
    %v4699 = vunpack.c.l.s4 1966171168
    %v4700 = vunpack.c.0.s8 %v4699
    %v4701 = vlaneseq
    %v4702 = vshrl.u32 %v4701, 7
    %v4703 = vsub.s32 %v4700, %v4702
    %v4704 = vrot.slane %v4676, %v4703
    %v4705 = vcombine.low %v4683, %v4690
    %v4706 = vcombine.low %v4697, %v4704
    %v4708 = vunpack.c.l.s4 1966171168
    %v4709 = vunpack.c.0.s8 %v4708
    %v4710 = vlaneseq
    %v4711 = vshrl.u32 %v4710, 7
    %v4712 = vsub.s32 %v4709, %v4711
    %v4713 = vrot.slane %v4705, %v4712
    %v4715 = vunpack.c.l.s4 1966171168
    %v4716 = vunpack.c.0.s8 %v4715
    %v4717 = vlaneseq
    %v4718 = vshrl.u32 %v4717, 7
    %v4719 = vsub.s32 %v4716, %v4718
    %v4720 = vrot.slane %v4706, %v4719
    %v4721 = vcombine.low %v4713, %v4720
    %v4722 = vcombine.low %v3480, %v3484
    %v4723 = vcombine.low %v3488, %v3492
    %v4724 = vcombine.low %v3496, %v3500
    %v4725 = vcombine.low %v3504, %v3508
    %v4727 = vunpack.c.l.s4 1966171168
    %v4728 = vunpack.c.0.s8 %v4727
    %v4729 = vlaneseq
    %v4730 = vshrl.u32 %v4729, 7
    %v4731 = vsub.s32 %v4728, %v4730
    %v4732 = vrot.slane %v4722, %v4731
    %v4734 = vunpack.c.l.s4 1966171168
    %v4735 = vunpack.c.0.s8 %v4734
    %v4736 = vlaneseq
    %v4737 = vshrl.u32 %v4736, 7
    %v4738 = vsub.s32 %v4735, %v4737
    %v4739 = vrot.slane %v4723, %v4738
    %v4741 = vunpack.c.l.s4 1966171168
    %v4742 = vunpack.c.0.s8 %v4741
    %v4743 = vlaneseq
    %v4744 = vshrl.u32 %v4743, 7
    %v4745 = vsub.s32 %v4742, %v4744
    %v4746 = vrot.slane %v4724, %v4745
    %v4748 = vunpack.c.l.s4 1966171168
    %v4749 = vunpack.c.0.s8 %v4748
    %v4750 = vlaneseq
    %v4751 = vshrl.u32 %v4750, 7
    %v4752 = vsub.s32 %v4749, %v4751
    %v4753 = vrot.slane %v4725, %v4752
    %v4754 = vcombine.low %v4732, %v4739
    %v4755 = vcombine.low %v4746, %v4753
    %v4757 = vunpack.c.l.s4 1966171168
    %v4758 = vunpack.c.0.s8 %v4757
    %v4759 = vlaneseq
    %v4760 = vshrl.u32 %v4759, 7
    %v4761 = vsub.s32 %v4758, %v4760
    %v4762 = vrot.slane %v4754, %v4761
    %v4764 = vunpack.c.l.s4 1966171168
    %v4765 = vunpack.c.0.s8 %v4764
    %v4766 = vlaneseq
    %v4767 = vshrl.u32 %v4766, 7
    %v4768 = vsub.s32 %v4765, %v4767
    %v4769 = vrot.slane %v4755, %v4768
    %v4770 = vcombine.low %v4762, %v4769
    %v4771 = vcombine.low %v3512, %v3516
    %v4772 = vcombine.low %v3520, %v3524
    %v4773 = vcombine.low %v3528, %v3532
    %v4774 = vcombine.low %v3536, %v3540
    %v4776 = vunpack.c.l.s4 1966171168
    %v4777 = vunpack.c.0.s8 %v4776
    %v4778 = vlaneseq
    %v4779 = vshrl.u32 %v4778, 7
    %v4780 = vsub.s32 %v4777, %v4779
    %v4781 = vrot.slane %v4771, %v4780
    %v4783 = vunpack.c.l.s4 1966171168
    %v4784 = vunpack.c.0.s8 %v4783
    %v4785 = vlaneseq
    %v4786 = vshrl.u32 %v4785, 7
    %v4787 = vsub.s32 %v4784, %v4786
    %v4788 = vrot.slane %v4772, %v4787
    %v4790 = vunpack.c.l.s4 1966171168
    %v4791 = vunpack.c.0.s8 %v4790
    %v4792 = vlaneseq
    %v4793 = vshrl.u32 %v4792, 7
    %v4794 = vsub.s32 %v4791, %v4793
    %v4795 = vrot.slane %v4773, %v4794
    %v4797 = vunpack.c.l.s4 1966171168
    %v4798 = vunpack.c.0.s8 %v4797
    %v4799 = vlaneseq
    %v4800 = vshrl.u32 %v4799, 7
    %v4801 = vsub.s32 %v4798, %v4800
    %v4802 = vrot.slane %v4774, %v4801
    %v4803 = vcombine.low %v4781, %v4788
    %v4804 = vcombine.low %v4795, %v4802
    %v4806 = vunpack.c.l.s4 1966171168
    %v4807 = vunpack.c.0.s8 %v4806
    %v4808 = vlaneseq
    %v4809 = vshrl.u32 %v4808, 7
    %v4810 = vsub.s32 %v4807, %v4809
    %v4811 = vrot.slane %v4803, %v4810
    %v4813 = vunpack.c.l.s4 1966171168
    %v4814 = vunpack.c.0.s8 %v4813
    %v4815 = vlaneseq
    %v4816 = vshrl.u32 %v4815, 7
    %v4817 = vsub.s32 %v4814, %v4816
    %v4818 = vrot.slane %v4804, %v4817
    %v4819 = vcombine.low %v4811, %v4818
    %v4820 = vcombine.low %v3544, %v3548
    %v4821 = vcombine.low %v3552, %v3556
    %v4822 = vcombine.low %v3560, %v3564
    %v4823 = vcombine.low %v3568, %v3572
    %v4825 = vunpack.c.l.s4 1966171168
    %v4826 = vunpack.c.0.s8 %v4825
    %v4827 = vlaneseq
    %v4828 = vshrl.u32 %v4827, 7
    %v4829 = vsub.s32 %v4826, %v4828
    %v4830 = vrot.slane %v4820, %v4829
    %v4832 = vunpack.c.l.s4 1966171168
    %v4833 = vunpack.c.0.s8 %v4832
    %v4834 = vlaneseq
    %v4835 = vshrl.u32 %v4834, 7
    %v4836 = vsub.s32 %v4833, %v4835
    %v4837 = vrot.slane %v4821, %v4836
    %v4839 = vunpack.c.l.s4 1966171168
    %v4840 = vunpack.c.0.s8 %v4839
    %v4841 = vlaneseq
    %v4842 = vshrl.u32 %v4841, 7
    %v4843 = vsub.s32 %v4840, %v4842
    %v4844 = vrot.slane %v4822, %v4843
    %v4846 = vunpack.c.l.s4 1966171168
    %v4847 = vunpack.c.0.s8 %v4846
    %v4848 = vlaneseq
    %v4849 = vshrl.u32 %v4848, 7
    %v4850 = vsub.s32 %v4847, %v4849
    %v4851 = vrot.slane %v4823, %v4850
    %v4852 = vcombine.low %v4830, %v4837
    %v4853 = vcombine.low %v4844, %v4851
    %v4855 = vunpack.c.l.s4 1966171168
    %v4856 = vunpack.c.0.s8 %v4855
    %v4857 = vlaneseq
    %v4858 = vshrl.u32 %v4857, 7
    %v4859 = vsub.s32 %v4856, %v4858
    %v4860 = vrot.slane %v4852, %v4859
    %v4862 = vunpack.c.l.s4 1966171168
    %v4863 = vunpack.c.0.s8 %v4862
    %v4864 = vlaneseq
    %v4865 = vshrl.u32 %v4864, 7
    %v4866 = vsub.s32 %v4863, %v4865
    %v4867 = vrot.slane %v4853, %v4866
    %v4868 = vcombine.low %v4860, %v4867
    %v4869 = vcombine.low %v3576, %v3580
    %v4870 = vcombine.low %v3584, %v3588
    %v4871 = vcombine.low %v3592, %v3596
    %v4872 = vcombine.low %v3600, %v3604
    %v4874 = vunpack.c.l.s4 1966171168
    %v4875 = vunpack.c.0.s8 %v4874
    %v4876 = vlaneseq
    %v4877 = vshrl.u32 %v4876, 7
    %v4878 = vsub.s32 %v4875, %v4877
    %v4879 = vrot.slane %v4869, %v4878
    %v4881 = vunpack.c.l.s4 1966171168
    %v4882 = vunpack.c.0.s8 %v4881
    %v4883 = vlaneseq
    %v4884 = vshrl.u32 %v4883, 7
    %v4885 = vsub.s32 %v4882, %v4884
    %v4886 = vrot.slane %v4870, %v4885
    %v4888 = vunpack.c.l.s4 1966171168
    %v4889 = vunpack.c.0.s8 %v4888
    %v4890 = vlaneseq
    %v4891 = vshrl.u32 %v4890, 7
    %v4892 = vsub.s32 %v4889, %v4891
    %v4893 = vrot.slane %v4871, %v4892
    %v4895 = vunpack.c.l.s4 1966171168
    %v4896 = vunpack.c.0.s8 %v4895
    %v4897 = vlaneseq
    %v4898 = vshrl.u32 %v4897, 7
    %v4899 = vsub.s32 %v4896, %v4898
    %v4900 = vrot.slane %v4872, %v4899
    %v4901 = vcombine.low %v4879, %v4886
    %v4902 = vcombine.low %v4893, %v4900
    %v4904 = vunpack.c.l.s4 1966171168
    %v4905 = vunpack.c.0.s8 %v4904
    %v4906 = vlaneseq
    %v4907 = vshrl.u32 %v4906, 7
    %v4908 = vsub.s32 %v4905, %v4907
    %v4909 = vrot.slane %v4901, %v4908
    %v4911 = vunpack.c.l.s4 1966171168
    %v4912 = vunpack.c.0.s8 %v4911
    %v4913 = vlaneseq
    %v4914 = vshrl.u32 %v4913, 7
    %v4915 = vsub.s32 %v4912, %v4914
    %v4916 = vrot.slane %v4902, %v4915
    %v4917 = vcombine.low %v4909, %v4916
    %v4918 = vcombine.low %v3608, %v3612
    %v4919 = vcombine.low %v3616, %v3620
    %v4920 = vcombine.low %v3624, %v3628
    %v4921 = vcombine.low %v3632, %v3636
    %v4923 = vunpack.c.l.s4 1966171168
    %v4924 = vunpack.c.0.s8 %v4923
    %v4925 = vlaneseq
    %v4926 = vshrl.u32 %v4925, 7
    %v4927 = vsub.s32 %v4924, %v4926
    %v4928 = vrot.slane %v4918, %v4927
    %v4930 = vunpack.c.l.s4 1966171168
    %v4931 = vunpack.c.0.s8 %v4930
    %v4932 = vlaneseq
    %v4933 = vshrl.u32 %v4932, 7
    %v4934 = vsub.s32 %v4931, %v4933
    %v4935 = vrot.slane %v4919, %v4934
    %v4937 = vunpack.c.l.s4 1966171168
    %v4938 = vunpack.c.0.s8 %v4937
    %v4939 = vlaneseq
    %v4940 = vshrl.u32 %v4939, 7
    %v4941 = vsub.s32 %v4938, %v4940
    %v4942 = vrot.slane %v4920, %v4941
    %v4944 = vunpack.c.l.s4 1966171168
    %v4945 = vunpack.c.0.s8 %v4944
    %v4946 = vlaneseq
    %v4947 = vshrl.u32 %v4946, 7
    %v4948 = vsub.s32 %v4945, %v4947
    %v4949 = vrot.slane %v4921, %v4948
    %v4950 = vcombine.low %v4928, %v4935
    %v4951 = vcombine.low %v4942, %v4949
    %v4953 = vunpack.c.l.s4 1966171168
    %v4954 = vunpack.c.0.s8 %v4953
    %v4955 = vlaneseq
    %v4956 = vshrl.u32 %v4955, 7
    %v4957 = vsub.s32 %v4954, %v4956
    %v4958 = vrot.slane %v4950, %v4957
    %v4960 = vunpack.c.l.s4 1966171168
    %v4961 = vunpack.c.0.s8 %v4960
    %v4962 = vlaneseq
    %v4963 = vshrl.u32 %v4962, 7
    %v4964 = vsub.s32 %v4961, %v4963
    %v4965 = vrot.slane %v4951, %v4964
    %v4966 = vcombine.low %v4958, %v4965
    %v4967 = vcombine.low %v3640, %v3644
    %v4968 = vcombine.low %v3648, %v3652
    %v4969 = vcombine.low %v3656, %v3660
    %v4970 = vcombine.low %v3664, %v3668
    %v4972 = vunpack.c.l.s4 1966171168
    %v4973 = vunpack.c.0.s8 %v4972
    %v4974 = vlaneseq
    %v4975 = vshrl.u32 %v4974, 7
    %v4976 = vsub.s32 %v4973, %v4975
    %v4977 = vrot.slane %v4967, %v4976
    %v4979 = vunpack.c.l.s4 1966171168
    %v4980 = vunpack.c.0.s8 %v4979
    %v4981 = vlaneseq
    %v4982 = vshrl.u32 %v4981, 7
    %v4983 = vsub.s32 %v4980, %v4982
    %v4984 = vrot.slane %v4968, %v4983
    %v4986 = vunpack.c.l.s4 1966171168
    %v4987 = vunpack.c.0.s8 %v4986
    %v4988 = vlaneseq
    %v4989 = vshrl.u32 %v4988, 7
    %v4990 = vsub.s32 %v4987, %v4989
    %v4991 = vrot.slane %v4969, %v4990
    %v4993 = vunpack.c.l.s4 1966171168
    %v4994 = vunpack.c.0.s8 %v4993
    %v4995 = vlaneseq
    %v4996 = vshrl.u32 %v4995, 7
    %v4997 = vsub.s32 %v4994, %v4996
    %v4998 = vrot.slane %v4970, %v4997
    %v4999 = vcombine.low %v4977, %v4984
    %v5000 = vcombine.low %v4991, %v4998
    %v5002 = vunpack.c.l.s4 1966171168
    %v5003 = vunpack.c.0.s8 %v5002
    %v5004 = vlaneseq
    %v5005 = vshrl.u32 %v5004, 7
    %v5006 = vsub.s32 %v5003, %v5005
    %v5007 = vrot.slane %v4999, %v5006
    %v5009 = vunpack.c.l.s4 1966171168
    %v5010 = vunpack.c.0.s8 %v5009
    %v5011 = vlaneseq
    %v5012 = vshrl.u32 %v5011, 7
    %v5013 = vsub.s32 %v5010, %v5012
    %v5014 = vrot.slane %v5000, %v5013
    %v5015 = vcombine.low %v5007, %v5014
    %v5016 = vcombine.low %v3672, %v3676
    %v5017 = vcombine.low %v3680, %v3684
    %v5018 = vcombine.low %v3688, %v3692
    %v5019 = vcombine.low %v3696, %v3700
    %v5021 = vunpack.c.l.s4 1966171168
    %v5022 = vunpack.c.0.s8 %v5021
    %v5023 = vlaneseq
    %v5024 = vshrl.u32 %v5023, 7
    %v5025 = vsub.s32 %v5022, %v5024
    %v5026 = vrot.slane %v5016, %v5025
    %v5028 = vunpack.c.l.s4 1966171168
    %v5029 = vunpack.c.0.s8 %v5028
    %v5030 = vlaneseq
    %v5031 = vshrl.u32 %v5030, 7
    %v5032 = vsub.s32 %v5029, %v5031
    %v5033 = vrot.slane %v5017, %v5032
    %v5035 = vunpack.c.l.s4 1966171168
    %v5036 = vunpack.c.0.s8 %v5035
    %v5037 = vlaneseq
    %v5038 = vshrl.u32 %v5037, 7
    %v5039 = vsub.s32 %v5036, %v5038
    %v5040 = vrot.slane %v5018, %v5039
    %v5042 = vunpack.c.l.s4 1966171168
    %v5043 = vunpack.c.0.s8 %v5042
    %v5044 = vlaneseq
    %v5045 = vshrl.u32 %v5044, 7
    %v5046 = vsub.s32 %v5043, %v5045
    %v5047 = vrot.slane %v5019, %v5046
    %v5048 = vcombine.low %v5026, %v5033
    %v5049 = vcombine.low %v5040, %v5047
    %v5051 = vunpack.c.l.s4 1966171168
    %v5052 = vunpack.c.0.s8 %v5051
    %v5053 = vlaneseq
    %v5054 = vshrl.u32 %v5053, 7
    %v5055 = vsub.s32 %v5052, %v5054
    %v5056 = vrot.slane %v5048, %v5055
    %v5058 = vunpack.c.l.s4 1966171168
    %v5059 = vunpack.c.0.s8 %v5058
    %v5060 = vlaneseq
    %v5061 = vshrl.u32 %v5060, 7
    %v5062 = vsub.s32 %v5059, %v5061
    %v5063 = vrot.slane %v5049, %v5062
    %v5064 = vcombine.low %v5056, %v5063
    %v5065 = vcombine.low %v3704, %v3708
    %v5066 = vcombine.low %v3712, %v3716
    %v5067 = vcombine.low %v3720, %v3724
    %v5068 = vcombine.low %v3728, %v3732
    %v5070 = vunpack.c.l.s4 1966171168
    %v5071 = vunpack.c.0.s8 %v5070
    %v5072 = vlaneseq
    %v5073 = vshrl.u32 %v5072, 7
    %v5074 = vsub.s32 %v5071, %v5073
    %v5075 = vrot.slane %v5065, %v5074
    %v5077 = vunpack.c.l.s4 1966171168
    %v5078 = vunpack.c.0.s8 %v5077
    %v5079 = vlaneseq
    %v5080 = vshrl.u32 %v5079, 7
    %v5081 = vsub.s32 %v5078, %v5080
    %v5082 = vrot.slane %v5066, %v5081
    %v5084 = vunpack.c.l.s4 1966171168
    %v5085 = vunpack.c.0.s8 %v5084
    %v5086 = vlaneseq
    %v5087 = vshrl.u32 %v5086, 7
    %v5088 = vsub.s32 %v5085, %v5087
    %v5089 = vrot.slane %v5067, %v5088
    %v5091 = vunpack.c.l.s4 1966171168
    %v5092 = vunpack.c.0.s8 %v5091
    %v5093 = vlaneseq
    %v5094 = vshrl.u32 %v5093, 7
    %v5095 = vsub.s32 %v5092, %v5094
    %v5096 = vrot.slane %v5068, %v5095
    %v5097 = vcombine.low %v5075, %v5082
    %v5098 = vcombine.low %v5089, %v5096
    %v5100 = vunpack.c.l.s4 1966171168
    %v5101 = vunpack.c.0.s8 %v5100
    %v5102 = vlaneseq
    %v5103 = vshrl.u32 %v5102, 7
    %v5104 = vsub.s32 %v5101, %v5103
    %v5105 = vrot.slane %v5097, %v5104
    %v5107 = vunpack.c.l.s4 1966171168
    %v5108 = vunpack.c.0.s8 %v5107
    %v5109 = vlaneseq
    %v5110 = vshrl.u32 %v5109, 7
    %v5111 = vsub.s32 %v5108, %v5110
    %v5112 = vrot.slane %v5098, %v5111
    %v5113 = vcombine.low %v5105, %v5112
    %v5114 = vcombine.low %v3736, %v3740
    %v5115 = vcombine.low %v3744, %v3748
    %v5116 = vcombine.low %v3752, %v3756
    %v5117 = vcombine.low %v3760, %v3764
    %v5119 = vunpack.c.l.s4 1966171168
    %v5120 = vunpack.c.0.s8 %v5119
    %v5121 = vlaneseq
    %v5122 = vshrl.u32 %v5121, 7
    %v5123 = vsub.s32 %v5120, %v5122
    %v5124 = vrot.slane %v5114, %v5123
    %v5126 = vunpack.c.l.s4 1966171168
    %v5127 = vunpack.c.0.s8 %v5126
    %v5128 = vlaneseq
    %v5129 = vshrl.u32 %v5128, 7
    %v5130 = vsub.s32 %v5127, %v5129
    %v5131 = vrot.slane %v5115, %v5130
    %v5133 = vunpack.c.l.s4 1966171168
    %v5134 = vunpack.c.0.s8 %v5133
    %v5135 = vlaneseq
    %v5136 = vshrl.u32 %v5135, 7
    %v5137 = vsub.s32 %v5134, %v5136
    %v5138 = vrot.slane %v5116, %v5137
    %v5140 = vunpack.c.l.s4 1966171168
    %v5141 = vunpack.c.0.s8 %v5140
    %v5142 = vlaneseq
    %v5143 = vshrl.u32 %v5142, 7
    %v5144 = vsub.s32 %v5141, %v5143
    %v5145 = vrot.slane %v5117, %v5144
    %v5146 = vcombine.low %v5124, %v5131
    %v5147 = vcombine.low %v5138, %v5145
    %v5149 = vunpack.c.l.s4 1966171168
    %v5150 = vunpack.c.0.s8 %v5149
    %v5151 = vlaneseq
    %v5152 = vshrl.u32 %v5151, 7
    %v5153 = vsub.s32 %v5150, %v5152
    %v5154 = vrot.slane %v5146, %v5153
    %v5156 = vunpack.c.l.s4 1966171168
    %v5157 = vunpack.c.0.s8 %v5156
    %v5158 = vlaneseq
    %v5159 = vshrl.u32 %v5158, 7
    %v5160 = vsub.s32 %v5157, %v5159
    %v5161 = vrot.slane %v5147, %v5160
    %v5162 = vcombine.low %v5154, %v5161
    %v5163 = vcombine.low %v3768, %v3772
    %v5164 = vcombine.low %v3776, %v3780
    %v5165 = vcombine.low %v3784, %v3788
    %v5166 = vcombine.low %v3792, %v3796
    %v5168 = vunpack.c.l.s4 1966171168
    %v5169 = vunpack.c.0.s8 %v5168
    %v5170 = vlaneseq
    %v5171 = vshrl.u32 %v5170, 7
    %v5172 = vsub.s32 %v5169, %v5171
    %v5173 = vrot.slane %v5163, %v5172
    %v5175 = vunpack.c.l.s4 1966171168
    %v5176 = vunpack.c.0.s8 %v5175
    %v5177 = vlaneseq
    %v5178 = vshrl.u32 %v5177, 7
    %v5179 = vsub.s32 %v5176, %v5178
    %v5180 = vrot.slane %v5164, %v5179
    %v5182 = vunpack.c.l.s4 1966171168
    %v5183 = vunpack.c.0.s8 %v5182
    %v5184 = vlaneseq
    %v5185 = vshrl.u32 %v5184, 7
    %v5186 = vsub.s32 %v5183, %v5185
    %v5187 = vrot.slane %v5165, %v5186
    %v5189 = vunpack.c.l.s4 1966171168
    %v5190 = vunpack.c.0.s8 %v5189
    %v5191 = vlaneseq
    %v5192 = vshrl.u32 %v5191, 7
    %v5193 = vsub.s32 %v5190, %v5192
    %v5194 = vrot.slane %v5166, %v5193
    %v5195 = vcombine.low %v5173, %v5180
    %v5196 = vcombine.low %v5187, %v5194
    %v5198 = vunpack.c.l.s4 1966171168
    %v5199 = vunpack.c.0.s8 %v5198
    %v5200 = vlaneseq
    %v5201 = vshrl.u32 %v5200, 7
    %v5202 = vsub.s32 %v5199, %v5201
    %v5203 = vrot.slane %v5195, %v5202
    %v5205 = vunpack.c.l.s4 1966171168
    %v5206 = vunpack.c.0.s8 %v5205
    %v5207 = vlaneseq
    %v5208 = vshrl.u32 %v5207, 7
    %v5209 = vsub.s32 %v5206, %v5208
    %v5210 = vrot.slane %v5196, %v5209
    %v5211 = vcombine.low %v5203, %v5210
    %v5212 = vcombine.low %v3800, %v3804
    %v5213 = vcombine.low %v3808, %v3812
    %v5214 = vcombine.low %v3816, %v3820
    %v5215 = vcombine.low %v3824, %v3828
    %v5217 = vunpack.c.l.s4 1966171168
    %v5218 = vunpack.c.0.s8 %v5217
    %v5219 = vlaneseq
    %v5220 = vshrl.u32 %v5219, 7
    %v5221 = vsub.s32 %v5218, %v5220
    %v5222 = vrot.slane %v5212, %v5221
    %v5224 = vunpack.c.l.s4 1966171168
    %v5225 = vunpack.c.0.s8 %v5224
    %v5226 = vlaneseq
    %v5227 = vshrl.u32 %v5226, 7
    %v5228 = vsub.s32 %v5225, %v5227
    %v5229 = vrot.slane %v5213, %v5228
    %v5231 = vunpack.c.l.s4 1966171168
    %v5232 = vunpack.c.0.s8 %v5231
    %v5233 = vlaneseq
    %v5234 = vshrl.u32 %v5233, 7
    %v5235 = vsub.s32 %v5232, %v5234
    %v5236 = vrot.slane %v5214, %v5235
    %v5238 = vunpack.c.l.s4 1966171168
    %v5239 = vunpack.c.0.s8 %v5238
    %v5240 = vlaneseq
    %v5241 = vshrl.u32 %v5240, 7
    %v5242 = vsub.s32 %v5239, %v5241
    %v5243 = vrot.slane %v5215, %v5242
    %v5244 = vcombine.low %v5222, %v5229
    %v5245 = vcombine.low %v5236, %v5243
    %v5247 = vunpack.c.l.s4 1966171168
    %v5248 = vunpack.c.0.s8 %v5247
    %v5249 = vlaneseq
    %v5250 = vshrl.u32 %v5249, 7
    %v5251 = vsub.s32 %v5248, %v5250
    %v5252 = vrot.slane %v5244, %v5251
    %v5254 = vunpack.c.l.s4 1966171168
    %v5255 = vunpack.c.0.s8 %v5254
    %v5256 = vlaneseq
    %v5257 = vshrl.u32 %v5256, 7
    %v5258 = vsub.s32 %v5255, %v5257
    %v5259 = vrot.slane %v5245, %v5258
    %v5260 = vcombine.low %v5252, %v5259
    %v5261 = vcombine.low %v3832, %v3836
    %v5262 = vcombine.low %v3840, %v3844
    %v5263 = vcombine.low %v3848, %v3852
    %v5264 = vcombine.low %v3856, %v3860
    %v5266 = vunpack.c.l.s4 1966171168
    %v5267 = vunpack.c.0.s8 %v5266
    %v5268 = vlaneseq
    %v5269 = vshrl.u32 %v5268, 7
    %v5270 = vsub.s32 %v5267, %v5269
    %v5271 = vrot.slane %v5261, %v5270
    %v5273 = vunpack.c.l.s4 1966171168
    %v5274 = vunpack.c.0.s8 %v5273
    %v5275 = vlaneseq
    %v5276 = vshrl.u32 %v5275, 7
    %v5277 = vsub.s32 %v5274, %v5276
    %v5278 = vrot.slane %v5262, %v5277
    %v5280 = vunpack.c.l.s4 1966171168
    %v5281 = vunpack.c.0.s8 %v5280
    %v5282 = vlaneseq
    %v5283 = vshrl.u32 %v5282, 7
    %v5284 = vsub.s32 %v5281, %v5283
    %v5285 = vrot.slane %v5263, %v5284
    %v5287 = vunpack.c.l.s4 1966171168
    %v5288 = vunpack.c.0.s8 %v5287
    %v5289 = vlaneseq
    %v5290 = vshrl.u32 %v5289, 7
    %v5291 = vsub.s32 %v5288, %v5290
    %v5292 = vrot.slane %v5264, %v5291
    %v5293 = vcombine.low %v5271, %v5278
    %v5294 = vcombine.low %v5285, %v5292
    %v5296 = vunpack.c.l.s4 1966171168
    %v5297 = vunpack.c.0.s8 %v5296
    %v5298 = vlaneseq
    %v5299 = vshrl.u32 %v5298, 7
    %v5300 = vsub.s32 %v5297, %v5299
    %v5301 = vrot.slane %v5293, %v5300
    %v5303 = vunpack.c.l.s4 1966171168
    %v5304 = vunpack.c.0.s8 %v5303
    %v5305 = vlaneseq
    %v5306 = vshrl.u32 %v5305, 7
    %v5307 = vsub.s32 %v5304, %v5306
    %v5308 = vrot.slane %v5294, %v5307
    %v5309 = vcombine.low %v5301, %v5308
    %v5310 = vcombine.low %v3864, %v3868
    %v5311 = vcombine.low %v3872, %v3876
    %v5312 = vcombine.low %v3880, %v3884
    %v5313 = vcombine.low %v3888, %v3892
    %v5315 = vunpack.c.l.s4 1966171168
    %v5316 = vunpack.c.0.s8 %v5315
    %v5317 = vlaneseq
    %v5318 = vshrl.u32 %v5317, 7
    %v5319 = vsub.s32 %v5316, %v5318
    %v5320 = vrot.slane %v5310, %v5319
    %v5322 = vunpack.c.l.s4 1966171168
    %v5323 = vunpack.c.0.s8 %v5322
    %v5324 = vlaneseq
    %v5325 = vshrl.u32 %v5324, 7
    %v5326 = vsub.s32 %v5323, %v5325
    %v5327 = vrot.slane %v5311, %v5326
    %v5329 = vunpack.c.l.s4 1966171168
    %v5330 = vunpack.c.0.s8 %v5329
    %v5331 = vlaneseq
    %v5332 = vshrl.u32 %v5331, 7
    %v5333 = vsub.s32 %v5330, %v5332
    %v5334 = vrot.slane %v5312, %v5333
    %v5336 = vunpack.c.l.s4 1966171168
    %v5337 = vunpack.c.0.s8 %v5336
    %v5338 = vlaneseq
    %v5339 = vshrl.u32 %v5338, 7
    %v5340 = vsub.s32 %v5337, %v5339
    %v5341 = vrot.slane %v5313, %v5340
    %v5342 = vcombine.low %v5320, %v5327
    %v5343 = vcombine.low %v5334, %v5341
    %v5345 = vunpack.c.l.s4 1966171168
    %v5346 = vunpack.c.0.s8 %v5345
    %v5347 = vlaneseq
    %v5348 = vshrl.u32 %v5347, 7
    %v5349 = vsub.s32 %v5346, %v5348
    %v5350 = vrot.slane %v5342, %v5349
    %v5352 = vunpack.c.l.s4 1966171168
    %v5353 = vunpack.c.0.s8 %v5352
    %v5354 = vlaneseq
    %v5355 = vshrl.u32 %v5354, 7
    %v5356 = vsub.s32 %v5353, %v5355
    %v5357 = vrot.slane %v5343, %v5356
    %v5358 = vcombine.low %v5350, %v5357
    %v5359 = vcombine.low %v3896, %v3900
    %v5360 = vcombine.low %v3904, %v3908
    %v5361 = vcombine.low %v3912, %v3916
    %v5362 = vcombine.low %v3920, %v3924
    %v5364 = vunpack.c.l.s4 1966171168
    %v5365 = vunpack.c.0.s8 %v5364
    %v5366 = vlaneseq
    %v5367 = vshrl.u32 %v5366, 7
    %v5368 = vsub.s32 %v5365, %v5367
    %v5369 = vrot.slane %v5359, %v5368
    %v5371 = vunpack.c.l.s4 1966171168
    %v5372 = vunpack.c.0.s8 %v5371
    %v5373 = vlaneseq
    %v5374 = vshrl.u32 %v5373, 7
    %v5375 = vsub.s32 %v5372, %v5374
    %v5376 = vrot.slane %v5360, %v5375
    %v5378 = vunpack.c.l.s4 1966171168
    %v5379 = vunpack.c.0.s8 %v5378
    %v5380 = vlaneseq
    %v5381 = vshrl.u32 %v5380, 7
    %v5382 = vsub.s32 %v5379, %v5381
    %v5383 = vrot.slane %v5361, %v5382
    %v5385 = vunpack.c.l.s4 1966171168
    %v5386 = vunpack.c.0.s8 %v5385
    %v5387 = vlaneseq
    %v5388 = vshrl.u32 %v5387, 7
    %v5389 = vsub.s32 %v5386, %v5388
    %v5390 = vrot.slane %v5362, %v5389
    %v5391 = vcombine.low %v5369, %v5376
    %v5392 = vcombine.low %v5383, %v5390
    %v5394 = vunpack.c.l.s4 1966171168
    %v5395 = vunpack.c.0.s8 %v5394
    %v5396 = vlaneseq
    %v5397 = vshrl.u32 %v5396, 7
    %v5398 = vsub.s32 %v5395, %v5397
    %v5399 = vrot.slane %v5391, %v5398
    %v5401 = vunpack.c.l.s4 1966171168
    %v5402 = vunpack.c.0.s8 %v5401
    %v5403 = vlaneseq
    %v5404 = vshrl.u32 %v5403, 7
    %v5405 = vsub.s32 %v5402, %v5404
    %v5406 = vrot.slane %v5392, %v5405
    %v5407 = vcombine.low %v5399, %v5406
    %v5408 = vcombine.low %v3928, %v3932
    %v5409 = vcombine.low %v3936, %v3940
    %v5410 = vcombine.low %v3944, %v3948
    %v5411 = vcombine.low %v3952, %v3956
    %v5413 = vunpack.c.l.s4 1966171168
    %v5414 = vunpack.c.0.s8 %v5413
    %v5415 = vlaneseq
    %v5416 = vshrl.u32 %v5415, 7
    %v5417 = vsub.s32 %v5414, %v5416
    %v5418 = vrot.slane %v5408, %v5417
    %v5420 = vunpack.c.l.s4 1966171168
    %v5421 = vunpack.c.0.s8 %v5420
    %v5422 = vlaneseq
    %v5423 = vshrl.u32 %v5422, 7
    %v5424 = vsub.s32 %v5421, %v5423
    %v5425 = vrot.slane %v5409, %v5424
    %v5427 = vunpack.c.l.s4 1966171168
    %v5428 = vunpack.c.0.s8 %v5427
    %v5429 = vlaneseq
    %v5430 = vshrl.u32 %v5429, 7
    %v5431 = vsub.s32 %v5428, %v5430
    %v5432 = vrot.slane %v5410, %v5431
    %v5434 = vunpack.c.l.s4 1966171168
    %v5435 = vunpack.c.0.s8 %v5434
    %v5436 = vlaneseq
    %v5437 = vshrl.u32 %v5436, 7
    %v5438 = vsub.s32 %v5435, %v5437
    %v5439 = vrot.slane %v5411, %v5438
    %v5440 = vcombine.low %v5418, %v5425
    %v5441 = vcombine.low %v5432, %v5439
    %v5443 = vunpack.c.l.s4 1966171168
    %v5444 = vunpack.c.0.s8 %v5443
    %v5445 = vlaneseq
    %v5446 = vshrl.u32 %v5445, 7
    %v5447 = vsub.s32 %v5444, %v5446
    %v5448 = vrot.slane %v5440, %v5447
    %v5450 = vunpack.c.l.s4 1966171168
    %v5451 = vunpack.c.0.s8 %v5450
    %v5452 = vlaneseq
    %v5453 = vshrl.u32 %v5452, 7
    %v5454 = vsub.s32 %v5451, %v5453
    %v5455 = vrot.slane %v5441, %v5454
    %v5456 = vcombine.low %v5448, %v5455
    %v5457 = vcombine.low %v3960, %v3964
    %v5458 = vcombine.low %v3968, %v3972
    %v5459 = vcombine.low %v3976, %v3980
    %v5460 = vcombine.low %v3984, %v3988
    %v5462 = vunpack.c.l.s4 1966171168
    %v5463 = vunpack.c.0.s8 %v5462
    %v5464 = vlaneseq
    %v5465 = vshrl.u32 %v5464, 7
    %v5466 = vsub.s32 %v5463, %v5465
    %v5467 = vrot.slane %v5457, %v5466
    %v5469 = vunpack.c.l.s4 1966171168
    %v5470 = vunpack.c.0.s8 %v5469
    %v5471 = vlaneseq
    %v5472 = vshrl.u32 %v5471, 7
    %v5473 = vsub.s32 %v5470, %v5472
    %v5474 = vrot.slane %v5458, %v5473
    %v5476 = vunpack.c.l.s4 1966171168
    %v5477 = vunpack.c.0.s8 %v5476
    %v5478 = vlaneseq
    %v5479 = vshrl.u32 %v5478, 7
    %v5480 = vsub.s32 %v5477, %v5479
    %v5481 = vrot.slane %v5459, %v5480
    %v5483 = vunpack.c.l.s4 1966171168
    %v5484 = vunpack.c.0.s8 %v5483
    %v5485 = vlaneseq
    %v5486 = vshrl.u32 %v5485, 7
    %v5487 = vsub.s32 %v5484, %v5486
    %v5488 = vrot.slane %v5460, %v5487
    %v5489 = vcombine.low %v5467, %v5474
    %v5490 = vcombine.low %v5481, %v5488
    %v5492 = vunpack.c.l.s4 1966171168
    %v5493 = vunpack.c.0.s8 %v5492
    %v5494 = vlaneseq
    %v5495 = vshrl.u32 %v5494, 7
    %v5496 = vsub.s32 %v5493, %v5495
    %v5497 = vrot.slane %v5489, %v5496
    %v5499 = vunpack.c.l.s4 1966171168
    %v5500 = vunpack.c.0.s8 %v5499
    %v5501 = vlaneseq
    %v5502 = vshrl.u32 %v5501, 7
    %v5503 = vsub.s32 %v5500, %v5502
    %v5504 = vrot.slane %v5490, %v5503
    %v5505 = vcombine.low %v5497, %v5504
    %v5506 = vcombine.low %v3992, %v3996
    %v5507 = vcombine.low %v4000, %v4004
    %v5508 = vcombine.low %v4008, %v4012
    %v5509 = vcombine.low %v4016, %v4020
    %v5511 = vunpack.c.l.s4 1966171168
    %v5512 = vunpack.c.0.s8 %v5511
    %v5513 = vlaneseq
    %v5514 = vshrl.u32 %v5513, 7
    %v5515 = vsub.s32 %v5512, %v5514
    %v5516 = vrot.slane %v5506, %v5515
    %v5518 = vunpack.c.l.s4 1966171168
    %v5519 = vunpack.c.0.s8 %v5518
    %v5520 = vlaneseq
    %v5521 = vshrl.u32 %v5520, 7
    %v5522 = vsub.s32 %v5519, %v5521
    %v5523 = vrot.slane %v5507, %v5522
    %v5525 = vunpack.c.l.s4 1966171168
    %v5526 = vunpack.c.0.s8 %v5525
    %v5527 = vlaneseq
    %v5528 = vshrl.u32 %v5527, 7
    %v5529 = vsub.s32 %v5526, %v5528
    %v5530 = vrot.slane %v5508, %v5529
    %v5532 = vunpack.c.l.s4 1966171168
    %v5533 = vunpack.c.0.s8 %v5532
    %v5534 = vlaneseq
    %v5535 = vshrl.u32 %v5534, 7
    %v5536 = vsub.s32 %v5533, %v5535
    %v5537 = vrot.slane %v5509, %v5536
    %v5538 = vcombine.low %v5516, %v5523
    %v5539 = vcombine.low %v5530, %v5537
    %v5541 = vunpack.c.l.s4 1966171168
    %v5542 = vunpack.c.0.s8 %v5541
    %v5543 = vlaneseq
    %v5544 = vshrl.u32 %v5543, 7
    %v5545 = vsub.s32 %v5542, %v5544
    %v5546 = vrot.slane %v5538, %v5545
    %v5548 = vunpack.c.l.s4 1966171168
    %v5549 = vunpack.c.0.s8 %v5548
    %v5550 = vlaneseq
    %v5551 = vshrl.u32 %v5550, 7
    %v5552 = vsub.s32 %v5549, %v5551
    %v5553 = vrot.slane %v5539, %v5552
    %v5554 = vcombine.low %v5546, %v5553
    %v5555 = vcombine.low %v4024, %v4028
    %v5556 = vcombine.low %v4032, %v4036
    %v5557 = vcombine.low %v4040, %v4044
    %v5558 = vcombine.low %v4048, %v4052
    %v5560 = vunpack.c.l.s4 1966171168
    %v5561 = vunpack.c.0.s8 %v5560
    %v5562 = vlaneseq
    %v5563 = vshrl.u32 %v5562, 7
    %v5564 = vsub.s32 %v5561, %v5563
    %v5565 = vrot.slane %v5555, %v5564
    %v5567 = vunpack.c.l.s4 1966171168
    %v5568 = vunpack.c.0.s8 %v5567
    %v5569 = vlaneseq
    %v5570 = vshrl.u32 %v5569, 7
    %v5571 = vsub.s32 %v5568, %v5570
    %v5572 = vrot.slane %v5556, %v5571
    %v5574 = vunpack.c.l.s4 1966171168
    %v5575 = vunpack.c.0.s8 %v5574
    %v5576 = vlaneseq
    %v5577 = vshrl.u32 %v5576, 7
    %v5578 = vsub.s32 %v5575, %v5577
    %v5579 = vrot.slane %v5557, %v5578
    %v5581 = vunpack.c.l.s4 1966171168
    %v5582 = vunpack.c.0.s8 %v5581
    %v5583 = vlaneseq
    %v5584 = vshrl.u32 %v5583, 7
    %v5585 = vsub.s32 %v5582, %v5584
    %v5586 = vrot.slane %v5558, %v5585
    %v5587 = vcombine.low %v5565, %v5572
    %v5588 = vcombine.low %v5579, %v5586
    %v5590 = vunpack.c.l.s4 1966171168
    %v5591 = vunpack.c.0.s8 %v5590
    %v5592 = vlaneseq
    %v5593 = vshrl.u32 %v5592, 7
    %v5594 = vsub.s32 %v5591, %v5593
    %v5595 = vrot.slane %v5587, %v5594
    %v5597 = vunpack.c.l.s4 1966171168
    %v5598 = vunpack.c.0.s8 %v5597
    %v5599 = vlaneseq
    %v5600 = vshrl.u32 %v5599, 7
    %v5601 = vsub.s32 %v5598, %v5600
    %v5602 = vrot.slane %v5588, %v5601
    %v5603 = vcombine.low %v5595, %v5602
    %v5604 = vcombine.low %v4056, %v4060
    %v5605 = vcombine.low %v4064, %v4068
    %v5606 = vcombine.low %v4072, %v4076
    %v5607 = vcombine.low %v4080, %v4084
    %v5609 = vunpack.c.l.s4 1966171168
    %v5610 = vunpack.c.0.s8 %v5609
    %v5611 = vlaneseq
    %v5612 = vshrl.u32 %v5611, 7
    %v5613 = vsub.s32 %v5610, %v5612
    %v5614 = vrot.slane %v5604, %v5613
    %v5616 = vunpack.c.l.s4 1966171168
    %v5617 = vunpack.c.0.s8 %v5616
    %v5618 = vlaneseq
    %v5619 = vshrl.u32 %v5618, 7
    %v5620 = vsub.s32 %v5617, %v5619
    %v5621 = vrot.slane %v5605, %v5620
    %v5623 = vunpack.c.l.s4 1966171168
    %v5624 = vunpack.c.0.s8 %v5623
    %v5625 = vlaneseq
    %v5626 = vshrl.u32 %v5625, 7
    %v5627 = vsub.s32 %v5624, %v5626
    %v5628 = vrot.slane %v5606, %v5627
    %v5630 = vunpack.c.l.s4 1966171168
    %v5631 = vunpack.c.0.s8 %v5630
    %v5632 = vlaneseq
    %v5633 = vshrl.u32 %v5632, 7
    %v5634 = vsub.s32 %v5631, %v5633
    %v5635 = vrot.slane %v5607, %v5634
    %v5636 = vcombine.low %v5614, %v5621
    %v5637 = vcombine.low %v5628, %v5635
    %v5639 = vunpack.c.l.s4 1966171168
    %v5640 = vunpack.c.0.s8 %v5639
    %v5641 = vlaneseq
    %v5642 = vshrl.u32 %v5641, 7
    %v5643 = vsub.s32 %v5640, %v5642
    %v5644 = vrot.slane %v5636, %v5643
    %v5646 = vunpack.c.l.s4 1966171168
    %v5647 = vunpack.c.0.s8 %v5646
    %v5648 = vlaneseq
    %v5649 = vshrl.u32 %v5648, 7
    %v5650 = vsub.s32 %v5647, %v5649
    %v5651 = vrot.slane %v5637, %v5650
    %v5652 = vcombine.low %v5644, %v5651
    %5653 = vset.pattern.permute.xlu0 0
    %5654 = vperm.xlu0 %5653, %v4133
    %v5655 = vpop.permute.xlu0 %5654
    %5656 = vset.pattern.permute.xlu0 0
    %5657 = vperm.xlu0 %5656, %v4182
    %v5658 = vpop.permute.xlu0 %5657
    %5659 = vset.pattern.permute.xlu0 0
    %5660 = vperm.xlu0 %5659, %v4231
    %v5661 = vpop.permute.xlu0 %5660
    %5662 = vset.pattern.permute.xlu0 0
    %5663 = vperm.xlu0 %5662, %v4280
    %v5664 = vpop.permute.xlu0 %5663
    %5665 = vset.pattern.permute.xlu0 0
    %5666 = vperm.xlu0 %5665, %v4329
    %v5667 = vpop.permute.xlu0 %5666
    %5668 = vset.pattern.permute.xlu0 0
    %5669 = vperm.xlu0 %5668, %v4378
    %v5670 = vpop.permute.xlu0 %5669
    %5671 = vset.pattern.permute.xlu0 0
    %5672 = vperm.xlu0 %5671, %v4427
    %v5673 = vpop.permute.xlu0 %5672
    %5674 = vset.pattern.permute.xlu0 0
    %5675 = vperm.xlu0 %5674, %v4476
    %v5676 = vpop.permute.xlu0 %5675
    %5677 = vset.pattern.permute.xlu0 0
    %5678 = vperm.xlu0 %5677, %v4525
    %v5679 = vpop.permute.xlu0 %5678
    %5680 = vset.pattern.permute.xlu0 0
    %5681 = vperm.xlu0 %5680, %v4574
    %v5682 = vpop.permute.xlu0 %5681
    %5683 = vset.pattern.permute.xlu0 0
    %5684 = vperm.xlu0 %5683, %v4623
    %v5685 = vpop.permute.xlu0 %5684
    %5686 = vset.pattern.permute.xlu0 0
    %5687 = vperm.xlu0 %5686, %v4672
    %v5688 = vpop.permute.xlu0 %5687
    %5689 = vset.pattern.permute.xlu0 0
    %5690 = vperm.xlu0 %5689, %v4721
    %v5691 = vpop.permute.xlu0 %5690
    %5692 = vset.pattern.permute.xlu0 0
    %5693 = vperm.xlu0 %5692, %v4770
    %v5694 = vpop.permute.xlu0 %5693
    %5695 = vset.pattern.permute.xlu0 0
    %5696 = vperm.xlu0 %5695, %v4819
    %v5697 = vpop.permute.xlu0 %5696
    %5698 = vset.pattern.permute.xlu0 0
    %5699 = vperm.xlu0 %5698, %v4868
    %v5700 = vpop.permute.xlu0 %5699
    %5701 = vset.pattern.permute.xlu0 0
    %5702 = vperm.xlu0 %5701, %v4917
    %v5703 = vpop.permute.xlu0 %5702
    %5704 = vset.pattern.permute.xlu0 0
    %5705 = vperm.xlu0 %5704, %v4966
    %v5706 = vpop.permute.xlu0 %5705
    %5707 = vset.pattern.permute.xlu0 0
    %5708 = vperm.xlu0 %5707, %v5015
    %v5709 = vpop.permute.xlu0 %5708
    %5710 = vset.pattern.permute.xlu0 0
    %5711 = vperm.xlu0 %5710, %v5064
    %v5712 = vpop.permute.xlu0 %5711
    %5713 = vset.pattern.permute.xlu0 0
    %5714 = vperm.xlu0 %5713, %v5113
    %v5715 = vpop.permute.xlu0 %5714
    %5716 = vset.pattern.permute.xlu0 0
    %5717 = vperm.xlu0 %5716, %v5162
    %v5718 = vpop.permute.xlu0 %5717
    %5719 = vset.pattern.permute.xlu0 0
    %5720 = vperm.xlu0 %5719, %v5211
    %v5721 = vpop.permute.xlu0 %5720
    %5722 = vset.pattern.permute.xlu0 0
    %5723 = vperm.xlu0 %5722, %v5260
    %v5724 = vpop.permute.xlu0 %5723
    %5725 = vset.pattern.permute.xlu0 0
    %5726 = vperm.xlu0 %5725, %v5309
    %v5727 = vpop.permute.xlu0 %5726
    %5728 = vset.pattern.permute.xlu0 0
    %5729 = vperm.xlu0 %5728, %v5358
    %v5730 = vpop.permute.xlu0 %5729
    %5731 = vset.pattern.permute.xlu0 0
    %5732 = vperm.xlu0 %5731, %v5407
    %v5733 = vpop.permute.xlu0 %5732
    %5734 = vset.pattern.permute.xlu0 0
    %5735 = vperm.xlu0 %5734, %v5456
    %v5736 = vpop.permute.xlu0 %5735
    %5737 = vset.pattern.permute.xlu0 0
    %5738 = vperm.xlu0 %5737, %v5505
    %v5739 = vpop.permute.xlu0 %5738
    %5740 = vset.pattern.permute.xlu0 0
    %5741 = vperm.xlu0 %5740, %v5554
    %v5742 = vpop.permute.xlu0 %5741
    %5743 = vset.pattern.permute.xlu0 0
    %5744 = vperm.xlu0 %5743, %v5603
    %v5745 = vpop.permute.xlu0 %5744
    %5746 = vset.pattern.permute.xlu0 0
    %5747 = vperm.xlu0 %5746, %v5652
    %v5748 = vpop.permute.xlu0 %5747
    %v5749 = vlaneseq
    %v5750 = vand.u32 %v5749, 127
    %v5751 = vlaneseq
    %v5752 = vshrl.u32 %v5751, 7
    %v5753 = vsub.s32 %v5750, %v5752
    %v5754 = vrot.slane %v5655, %v5753
    %v5755 = vadd.s32 %v5750, 4294967288
    %v5756 = vlaneseq
    %v5757 = vshrl.u32 %v5756, 7
    %v5758 = vsub.s32 %v5755, %v5757
    %v5759 = vrot.slane %v5658, %v5758
    %vm5760 = vcmask 130112
    %v5761 = vsel %vm5760, %v5759, %v5754
    %v5762 = vadd.s32 %v5750, 4294967280
    %v5763 = vlaneseq
    %v5764 = vshrl.u32 %v5763, 7
    %v5765 = vsub.s32 %v5762, %v5764
    %v5766 = vrot.slane %v5661, %v5765
    %vm5767 = vcmask 195712
    %v5768 = vsel %vm5767, %v5766, %v5761
    %v5769 = vadd.s32 %v5750, 4294967272
    %v5770 = vlaneseq
    %v5771 = vshrl.u32 %v5770, 7
    %v5772 = vsub.s32 %v5769, %v5771
    %v5773 = vrot.slane %v5664, %v5772
    %vm5774 = vcmask 261312
    %v5775 = vsel %vm5774, %v5773, %v5768
    %v5776 = vadd.s32 %v5750, 4294967264
    %v5777 = vlaneseq
    %v5778 = vshrl.u32 %v5777, 7
    %v5779 = vsub.s32 %v5776, %v5778
    %v5780 = vrot.slane %v5667, %v5779
    %vm5781 = vcmask 326912
    %v5782 = vsel %vm5781, %v5780, %v5775
    %v5783 = vadd.s32 %v5750, 4294967256
    %v5784 = vlaneseq
    %v5785 = vshrl.u32 %v5784, 7
    %v5786 = vsub.s32 %v5783, %v5785
    %v5787 = vrot.slane %v5670, %v5786
    %vm5788 = vcmask 392512
    %v5789 = vsel %vm5788, %v5787, %v5782
    %v5790 = vadd.s32 %v5750, 4294967248
    %v5791 = vlaneseq
    %v5792 = vshrl.u32 %v5791, 7
    %v5793 = vsub.s32 %v5790, %v5792
    %v5794 = vrot.slane %v5673, %v5793
    %vm5795 = vcmask 458112
    %v5796 = vsel %vm5795, %v5794, %v5789
    %v5797 = vadd.s32 %v5750, 4294967240
    %v5798 = vlaneseq
    %v5799 = vshrl.u32 %v5798, 7
    %v5800 = vsub.s32 %v5797, %v5799
    %v5801 = vrot.slane %v5676, %v5800
    %vm5802 = vcmask 523712
    %v5803 = vsel %vm5802, %v5801, %v5796
    %v5804 = vadd.s32 %v5750, 4294967232
    %v5805 = vlaneseq
    %v5806 = vshrl.u32 %v5805, 7
    %v5807 = vsub.s32 %v5804, %v5806
    %v5808 = vrot.slane %v5679, %v5807
    %vm5809 = vcmask 589312
    %v5810 = vsel %vm5809, %v5808, %v5803
    %v5811 = vadd.s32 %v5750, 4294967224
    %v5812 = vlaneseq
    %v5813 = vshrl.u32 %v5812, 7
    %v5814 = vsub.s32 %v5811, %v5813
    %v5815 = vrot.slane %v5682, %v5814
    %vm5816 = vcmask 654912
    %v5817 = vsel %vm5816, %v5815, %v5810
    %v5818 = vadd.s32 %v5750, 4294967216
    %v5819 = vlaneseq
    %v5820 = vshrl.u32 %v5819, 7
    %v5821 = vsub.s32 %v5818, %v5820
    %v5822 = vrot.slane %v5685, %v5821
    %vm5823 = vcmask 720512
    %v5824 = vsel %vm5823, %v5822, %v5817
    %v5825 = vadd.s32 %v5750, 4294967208
    %v5826 = vlaneseq
    %v5827 = vshrl.u32 %v5826, 7
    %v5828 = vsub.s32 %v5825, %v5827
    %v5829 = vrot.slane %v5688, %v5828
    %vm5830 = vcmask 786112
    %v5831 = vsel %vm5830, %v5829, %v5824
    %v5832 = vadd.s32 %v5750, 4294967200
    %v5833 = vlaneseq
    %v5834 = vshrl.u32 %v5833, 7
    %v5835 = vsub.s32 %v5832, %v5834
    %v5836 = vrot.slane %v5691, %v5835
    %vm5837 = vcmask 851712
    %v5838 = vsel %vm5837, %v5836, %v5831
    %v5839 = vadd.s32 %v5750, 4294967192
    %v5840 = vlaneseq
    %v5841 = vshrl.u32 %v5840, 7
    %v5842 = vsub.s32 %v5839, %v5841
    %v5843 = vrot.slane %v5694, %v5842
    %vm5844 = vcmask 917312
    %v5845 = vsel %vm5844, %v5843, %v5838
    %v5846 = vadd.s32 %v5750, 4294967184
    %v5847 = vlaneseq
    %v5848 = vshrl.u32 %v5847, 7
    %v5849 = vsub.s32 %v5846, %v5848
    %v5850 = vrot.slane %v5697, %v5849
    %vm5851 = vcmask 982912
    %v5852 = vsel %vm5851, %v5850, %v5845
    %v5853 = vadd.s32 %v5750, 4294967176
    %v5854 = vlaneseq
    %v5855 = vshrl.u32 %v5854, 7
    %v5856 = vsub.s32 %v5853, %v5855
    %v5857 = vrot.slane %v5700, %v5856
    %vm5858 = vcmask 1048512
    %v5859 = vsel %vm5858, %v5857, %v5852
    %v5860 = vlaneseq
    %v5861 = vshrl.u32 %v5860, 7
    %v5862 = vsub.s32 %v5750, %v5861
    %v5863 = vrot.slane %v5703, %v5862
    %v5864 = vlaneseq
    %v5865 = vshrl.u32 %v5864, 7
    %v5866 = vsub.s32 %v5755, %v5865
    %v5867 = vrot.slane %v5706, %v5866
    %v5868 = vsel %vm5760, %v5867, %v5863
    %v5869 = vlaneseq
    %v5870 = vshrl.u32 %v5869, 7
    %v5871 = vsub.s32 %v5762, %v5870
    %v5872 = vrot.slane %v5709, %v5871
    %v5873 = vsel %vm5767, %v5872, %v5868
    %v5874 = vlaneseq
    %v5875 = vshrl.u32 %v5874, 7
    %v5876 = vsub.s32 %v5769, %v5875
    %v5877 = vrot.slane %v5712, %v5876
    %v5878 = vsel %vm5774, %v5877, %v5873
    %v5879 = vlaneseq
    %v5880 = vshrl.u32 %v5879, 7
    %v5881 = vsub.s32 %v5776, %v5880
    %v5882 = vrot.slane %v5715, %v5881
    %v5883 = vsel %vm5781, %v5882, %v5878
    %v5884 = vlaneseq
    %v5885 = vshrl.u32 %v5884, 7
    %v5886 = vsub.s32 %v5783, %v5885
    %v5887 = vrot.slane %v5718, %v5886
    %v5888 = vsel %vm5788, %v5887, %v5883
    %v5889 = vlaneseq
    %v5890 = vshrl.u32 %v5889, 7
    %v5891 = vsub.s32 %v5790, %v5890
    %v5892 = vrot.slane %v5721, %v5891
    %v5893 = vsel %vm5795, %v5892, %v5888
    %v5894 = vlaneseq
    %v5895 = vshrl.u32 %v5894, 7
    %v5896 = vsub.s32 %v5797, %v5895
    %v5897 = vrot.slane %v5724, %v5896
    %v5898 = vsel %vm5802, %v5897, %v5893
    %v5899 = vlaneseq
    %v5900 = vshrl.u32 %v5899, 7
    %v5901 = vsub.s32 %v5804, %v5900
    %v5902 = vrot.slane %v5727, %v5901
    %v5903 = vsel %vm5809, %v5902, %v5898
    %v5904 = vlaneseq
    %v5905 = vshrl.u32 %v5904, 7
    %v5906 = vsub.s32 %v5811, %v5905
    %v5907 = vrot.slane %v5730, %v5906
    %v5908 = vsel %vm5816, %v5907, %v5903
    %v5909 = vlaneseq
    %v5910 = vshrl.u32 %v5909, 7
    %v5911 = vsub.s32 %v5818, %v5910
    %v5912 = vrot.slane %v5733, %v5911
    %v5913 = vsel %vm5823, %v5912, %v5908
    %v5914 = vlaneseq
    %v5915 = vshrl.u32 %v5914, 7
    %v5916 = vsub.s32 %v5825, %v5915
    %v5917 = vrot.slane %v5736, %v5916
    %v5918 = vsel %vm5830, %v5917, %v5913
    %v5919 = vlaneseq
    %v5920 = vshrl.u32 %v5919, 7
    %v5921 = vsub.s32 %v5832, %v5920
    %v5922 = vrot.slane %v5739, %v5921
    %v5923 = vsel %vm5837, %v5922, %v5918
    %v5924 = vlaneseq
    %v5925 = vshrl.u32 %v5924, 7
    %v5926 = vsub.s32 %v5839, %v5925
    %v5927 = vrot.slane %v5742, %v5926
    %v5928 = vsel %vm5844, %v5927, %v5923
    %v5929 = vlaneseq
    %v5930 = vshrl.u32 %v5929, 7
    %v5931 = vsub.s32 %v5846, %v5930
    %v5932 = vrot.slane %v5745, %v5931
    %v5933 = vsel %vm5851, %v5932, %v5928
    %v5934 = vlaneseq
    %v5935 = vshrl.u32 %v5934, 7
    %v5936 = vsub.s32 %v5853, %v5935
    %v5937 = vrot.slane %v5748, %v5936
    %v5938 = vsel %vm5858, %v5937, %v5933
    %v5939 = vcombine.low %v5859, %v5938
    %v5941 = vunpack.c.l.s4 1966171168
    %v5942 = vunpack.c.0.s8 %v5941
    %v5943 = vlaneseq
    %v5944 = vshrl.u32 %v5943, 7
    %v5945 = vsub.s32 %v5942, %v5944
    %v5946 = vrot.slane %v5939, %v5945
    %v5948 = vunpack.c.l.s4 1966171168
    %v5949 = vunpack.c.0.s8 %v5948
    %v5950 = vlaneseq
    %v5951 = vshrl.u32 %v5950, 7
    %v5952 = vsub.s32 %v5949, %v5951
    %v5953 = vrot.slane %v5946, %v5952
    %v5955 = vlaneseq
    %vm5956 = vcmp.ge.s32.totalorder %v5955, 0
    %vm5957 = vcmp.lt.s32.totalorder %v5955, 256
    %vm5958 = vmand %vm5956, %vm5957
    %5959 = vst.msk [vmem:[#allocation9] sm:$0x3] %vm5958, %v5953
    // Predicated region
    $region74: #{tpu_custom_call.1} parent=1 // pred_check
      _
    $region75: #{tpu_custom_call.1} parent=1 // pred_check_branch
      %5961 = sbr.rel (0) target = $region77
    $region76: #{tpu_custom_call.1} parent=1 // pred_region
      %s5963 = ssub.s32 32, 32
      %5964 = vsyncadd [#allocation5], %s5963
      %s5966 = sshll.u32 [#allocation9], 4
      %s5967 = int_to_ptr.vmem [resolvable:$true] %s5966
      %5969 = dma.vmem_to_hbm [thread:$0]  %s5967, 32, %s15, [#allocation5]
    $region77: #{tpu_custom_call.1} parent=1 // pred_fallthru
      _
    // Predicated region
    $region78: #{tpu_custom_call.1} parent=1 // pred_check
      _
    $region79: #{tpu_custom_call.1} parent=1 // pred_check_branch
      %5971 = sbr.rel (0) target = $region81
    $region80: #{tpu_custom_call.1} parent=1 // pred_region
      %5972 = dma.done [#allocation5], 32
    $region81: #{tpu_custom_call.1} parent=1 // pred_fallthru
      _
    %5973 = vsyncpa [#allocation4], 1
    %5974 = vsyncpa [#allocation7], 1
    %5975 = vsyncpa [#allocation5], 1

</llo_original>
